<compile_context>
chip_gen: v5e
topology: v5e:2x2
jax: 0.10.0
libtpu: 0.0.40
codegen_flags: <defaults>
</compile_context>

<pallas_src>
import functools
import numpy as np
import jax
import jax.numpy as jnp
from jax.experimental import pallas as pl
from jax.experimental.pallas import tpu as pltpu


def _window_attn_kernel(*refs, num_heads, has_mask):
    """One grid step = Bb whole windows.

    Refs (in order):
      x_ref        (Bb*N, C)   input rows (compute dtype)
      wqkv_ref     (C, 3C)     qkv weight (resident)
      bqkv_ref     (1, 3C)     qkv bias, f32 (resident)
      rel_bias_ref (H, N, N)   relative-position bias, f32 (resident)
      [mask_ref]   (Bb, N, N)  per-window additive mask, f32 (resident)
      wp_ref       (C, C)      output projection weight (resident)
      bp_ref       (1, C)      output projection bias, f32 (resident)
      o_ref        (Bb*N, C)   output rows
    """
    if has_mask:
        (x_ref, wqkv_ref, bqkv_ref, rel_bias_ref, mask_ref,
         wp_ref, bp_ref, o_ref) = refs
    else:
        (x_ref, wqkv_ref, bqkv_ref, rel_bias_ref,
         wp_ref, bp_ref, o_ref) = refs
        mask_ref = None

    H = num_heads
    N = rel_bias_ref.shape[-1]
    rows, C = x_ref.shape
    Bb = rows // N
    hd = C // H
    scale = hd ** (-0.5)

    x2d = x_ref[...]                       # (Bb*N, C) — keep input dtype for MXU
    cdt = x2d.dtype                        # MXU operand dtype (bf16 or f32)

    # One large qkv projection matmul, f32 accumulation.
    qkv = jnp.dot(x2d, wqkv_ref[...],
                  preferred_element_type=jnp.float32) + bqkv_ref[...]   # (Bb*N, 3C) f32

    mask = mask_ref[...] if has_mask else None                          # hoisted load

    head_outs = []
    for h in range(H):                     # static unroll over heads
        # Lane slices of the fused qkv result; reshapes only split the leading
        # (row) dimension — no transposes / lane relayouts (N % 8 == 0 here).
        q = (qkv[:, h * hd:(h + 1) * hd] * scale).astype(cdt).reshape(Bb, N, hd)
        k = qkv[:, C + h * hd:C + (h + 1) * hd].astype(cdt).reshape(Bb, N, hd)
        v = qkv[:, 2 * C + h * hd:2 * C + (h + 1) * hd].astype(cdt).reshape(Bb, N, hd)

        s = jnp.einsum('bnd,bmd->bnm', q, k,
                       preferred_element_type=jnp.float32)              # (Bb, N, N)
        s = s + rel_bias_ref[h]                                         # (N, N) bcast
        if has_mask:
            s = s + mask                                                # (Bb, N, N)

        # numerically stable softmax in f32; divide -> EUP approx reciprocal
        m = jnp.max(s, axis=-1, keepdims=True)
        e = jnp.exp(s - m)
        denom = jnp.sum(e, axis=-1, keepdims=True)
        p = (e * pl.reciprocal(denom, approx=True)).astype(cdt)

        o = jnp.einsum('bnm,bmd->bnd', p, v,
                       preferred_element_type=jnp.float32)              # (Bb, N, hd)
        head_outs.append(o.reshape(Bb * N, hd).astype(cdt))

    out2d = jnp.concatenate(head_outs, axis=-1)                         # (Bb*N, C)

    proj = jnp.dot(out2d, wp_ref[...],
                   preferred_element_type=jnp.float32) + bp_ref[...]
    o_ref[...] = proj.astype(o_ref.dtype)


def _choose_groups_per_block(n_groups, group, N, C, H, itemsize,
                             row_target=512, vmem_budget=20 * 2 ** 20):
    """Pick k = number of mask-groups per grid step (block has group*k windows)."""
    def rows(k):
        return group * k * N

    def layout_ok(k):
        # second-to-last block dim must be a multiple of 8 or cover the array
        return rows(k) % 8 == 0 or k == n_groups

    def vmem_est(k):
        r = rows(k)
        b = 0
        b += 4 * r * C * itemsize                  # x + out blocks, double buffered
        b += r * 3 * C * 4                         # qkv f32 intermediate
        b += 3 * r * (C // H) * itemsize           # per-head q/k/v
        b += 3 * group * k * N * N * 4             # logits / exp / probs
        b += r * C * 4                             # concatenated head outputs
        b += 2 * (3 * C * C + C * C) * itemsize    # weights (conservatively x2)
        b += (H + group * k) * N * N * 4           # rel bias + mask
        return b

    divisors = [d for d in range(1, n_groups + 1) if n_groups % d == 0]
    candidates = [k for k in divisors if layout_ok(k)] or [n_groups]
    good = [k for k in candidates
            if rows(k) <= max(row_target, rows(1)) and vmem_est(k) <= vmem_budget]
    k = max(good) if good else min(candidates)
    return k, vmem_est(k)


def window_attention_pallas(x, wqkv, bqkv, wp, bp, rel_bias, mask, num_heads):
    """x: (B_, N, C); wqkv: (C, 3C); bqkv: (3C,); wp: (C, C); bp: (C,);
       rel_bias: (H, N, N); mask: (nW, N, N) or None.

    MXU operand dtype follows x/wqkv/wp (pass bf16 for speed); biases, bias
    adds, softmax and accumulation are f32.
    """
    B_, N, C = x.shape
    H = num_heads
    assert C % H == 0

    if mask is not None:
        nW = mask.shape[0]
        assert B_ % nW == 0
        group = nW
    else:
        group = 1
    n_groups = B_ // group

    itemsize = jnp.dtype(x.dtype).itemsize
    k, est_bytes = _choose_groups_per_block(n_groups, group, N, C, H, itemsize)
    Bb = group * k                       # windows per grid step
    grid = (n_groups // k,)

    x2d = x.reshape(B_ * N, C)           # free metadata reshape outside the kernel
    bqkv2 = bqkv.reshape(1, 3 * C).astype(jnp.float32)
    bp2 = bp.reshape(1, C).astype(jnp.float32)
    rel_bias_f = rel_bias.astype(jnp.float32)

    row_spec = pl.BlockSpec((Bb * N, C), lambda g: (g, 0))

    inputs = [x2d, wqkv, bqkv2, rel_bias_f]
    in_specs = [
        row_spec,                                            # x rows (streamed)
        pl.BlockSpec((C, 3 * C), lambda g: (0, 0)),          # wqkv (resident)
        pl.BlockSpec((1, 3 * C), lambda g: (0, 0)),          # bqkv (resident)
        pl.BlockSpec((H, N, N), lambda g: (0, 0, 0)),        # rel bias (resident)
    ]
    if mask is not None:
        # Tiny (nW,N,N) mask tiled to the block's window count; resident.
        mask_blk = jnp.tile(mask.astype(jnp.float32), (k, 1, 1))   # (Bb, N, N)
        inputs.append(mask_blk)
        in_specs.append(pl.BlockSpec((Bb, N, N), lambda g: (0, 0, 0)))
    inputs += [wp, bp2]
    in_specs += [
        pl.BlockSpec((C, C), lambda g: (0, 0)),              # wp (resident)
        pl.BlockSpec((1, C), lambda g: (0, 0)),              # bp (resident)
    ]
    # NOTE: constant-index inputs are fetched once (block index never changes);
    # single-buffering them (pl.Buffered(1)) would only shave VMEM further.

    kernel = functools.partial(_window_attn_kernel, num_heads=H,
                               has_mask=mask is not None)

    # VMEM headroom: v7x only has 64 MiB physical — never request > 48 MiB.
    vmem_limit = int(min(48 * 2 ** 20, max(32 * 2 ** 20, 2 * est_bytes)))

    out2d = pl.pallas_call(
        kernel,
        out_shape=jax.ShapeDtypeStruct((B_ * N, C), x.dtype),
        grid_spec=pltpu.PrefetchScalarGridSpec(
            num_scalar_prefetch=0,
            grid=grid,
            in_specs=in_specs,
            out_specs=row_spec,
        ),
        compiler_params=pltpu.CompilerParams(
            dimension_semantics=("parallel",),
            vmem_limit_bytes=vmem_limit),
    )(*inputs)
    return out2d.reshape(B_, N, C)


def build_relative_position_index(window_size):
    Wh, Ww = window_size
    coords_h = np.arange(Wh)
    coords_w = np.arange(Ww)
    coords = np.stack(np.meshgrid(coords_h, coords_w, indexing='ij'))  # (2, Wh, Ww)
    coords_flatten = coords.reshape(2, -1)                              # (2, N)
    relative_coords = coords_flatten[:, :, None] - coords_flatten[:, None, :]
    relative_coords = relative_coords.transpose(1, 2, 0).copy()         # (N, N, 2)
    relative_coords[:, :, 0] += Wh - 1
    relative_coords[:, :, 1] += Ww - 1
    relative_coords[:, :, 0] *= 2 * Ww - 1
    return relative_coords.sum(-1)                                      # (N, N)


def reference_window_attention(x, wqkv, bqkv, wp, bp, rel_bias, mask, num_heads):
    """Pure-JAX reference reproducing the PyTorch forward."""
    B_, N, C = x.shape
    H = num_heads
    hd = C // H
    scale = hd ** (-0.5)
    qkv = x @ wqkv + bqkv                                  # (B_, N, 3C)
    qkv = qkv.reshape(B_, N, 3, H, hd).transpose(2, 0, 3, 1, 4)
    q, k, v = qkv[0], qkv[1], qkv[2]                       # (B_, H, N, hd)
    q = q * scale
    attn = jnp.einsum('bhnd,bhmd->bhnm', q, k)             # (B_, H, N, N)
    attn = attn + rel_bias[None]
    if mask is not None:
        nW = mask.shape[0]
        attn = attn.reshape(B_ // nW, nW, H, N, N) + mask[None, :, None, :, :]
        attn = attn.reshape(B_, H, N, N)
    attn = jax.nn.softmax(attn, axis=-1)
    out = jnp.einsum('bhnm,bhmd->bhnd', attn, v)
    out = out.transpose(0, 2, 1, 3).reshape(B_, N, C)
    return out @ wp + bp


if __name__ == "__main__":
    # Small Swin-style config.
    dim = 32
    num_heads = 4
    window_size = (4, 4)
    Wh, Ww = window_size
    N = Wh * Ww
    nW = 4          # number of windows per image
    B = 2           # batch
    B_ = B * nW     # num_windows * B

    key = jax.random.PRNGKey(0)
    kx, kt, kw1, kb1, kw2, kb2, km = jax.random.split(key, 7)

    x = jax.random.normal(kx, (B_, N, dim), dtype=jnp.float32)

    # Deterministic "trunc_normal_(std=0.02)"-style parameter init.
    table_size = (2 * Wh - 1) * (2 * Ww - 1)
    rel_pos_table = 0.02 * jax.random.normal(kt, (table_size, num_heads), jnp.float32)
    wqkv = 0.02 * jax.random.normal(kw1, (dim, 3 * dim), jnp.float32)   # (in, out)
    bqkv = 0.02 * jax.random.normal(kb1, (3 * dim,), jnp.float32)
    wp = 0.02 * jax.random.normal(kw2, (dim, dim), jnp.float32)         # (in, out)
    bp = 0.02 * jax.random.normal(kb2, (dim,), jnp.float32)

    # Relative position bias: gather from table -> (H, N, N).
    rel_index = build_relative_position_index(window_size)              # (N, N)
    rel_bias = rel_pos_table[jnp.asarray(rel_index.reshape(-1))]        # (N*N, H)
    rel_bias = rel_bias.reshape(N, N, num_heads).transpose(2, 0, 1)     # (H, N, N)

    # 0 / -100 style attention mask per window (as Swin does).
    mask_bits = jax.random.bernoulli(km, p=0.25, shape=(nW, N, N))
    mask = jnp.where(mask_bits, -100.0, 0.0).astype(jnp.float32)

    # f32, with mask
    out = jax.block_until_ready(
        window_attention_pallas(x, wqkv, bqkv, wp, bp, rel_bias, mask, num_heads))
    ref = reference_window_attention(x, wqkv, bqkv, wp, bp, rel_bias, mask, num_heads)
    np.testing.assert_allclose(np.asarray(out), np.asarray(ref), rtol=2e-3, atol=2e-3)

    # f32, mask=None path
    out2 = jax.block_until_ready(
        window_attention_pallas(x, wqkv, bqkv, wp, bp, rel_bias, None, num_heads))
    ref2 = reference_window_attention(x, wqkv, bqkv, wp, bp, rel_bias, None, num_heads)
    np.testing.assert_allclose(np.asarray(out2), np.asarray(ref2), rtol=2e-3, atol=2e-3)

    # bf16 MXU operands (f32 accumulation / softmax), loose tolerance.
    bf = jnp.bfloat16
    x_b, wqkv_b = x.astype(bf), wqkv.astype(bf)
    bqkv_b, wp_b, bp_b = bqkv.astype(bf), wp.astype(bf), bp.astype(bf)
    out3 = jax.block_until_ready(
        window_attention_pallas(x_b, wqkv_b, bqkv_b, wp_b, bp_b,
                                rel_bias, mask, num_heads))
    ref3 = reference_window_attention(
        x_b.astype(jnp.float32), wqkv_b.astype(jnp.float32),
        bqkv_b.astype(jnp.float32), wp_b.astype(jnp.float32),
        bp_b.astype(jnp.float32), rel_bias, mask, num_heads)
    np.testing.assert_allclose(np.asarray(out3.astype(jnp.float32)),
                               np.asarray(ref3), rtol=5e-2, atol=5e-3)

    print("KERNEL_OK")
</pallas_src>

<mosaic_0001>
module attributes {stable_mosaic.version = 11 : i64} {
  func.func @_window_attn_kernel(%arg0: i32, %arg1: memref<128x32xf32, #tpu.memory_space<vmem>>, %arg2: memref<32x96xf32, #tpu.memory_space<vmem>>, %arg3: memref<1x96xf32, #tpu.memory_space<vmem>>, %arg4: memref<4x16x16xf32, #tpu.memory_space<vmem>>, %arg5: memref<8x16x16xf32, #tpu.memory_space<vmem>>, %arg6: memref<32x32xf32, #tpu.memory_space<vmem>>, %arg7: memref<1x32xf32, #tpu.memory_space<vmem>>, %arg8: memref<128x32xf32, #tpu.memory_space<vmem>>) attributes {dimension_semantics = [#tpu.dimension_semantics<parallel>], iteration_bounds = array<i64: 1>, scalar_prefetch = 0 : i64, scratch_operands = 0 : i64, tpu.core_type = #tpu.core_type<tc>, window_params = [{transform_indices = @transform_0, window_bounds = array<i64: 128, 32>}, {pipeline_mode = #tpu.pipeline_mode<synchronous>, transform_indices = @transform_1, window_bounds = array<i64: 32, 96>}, {pipeline_mode = #tpu.pipeline_mode<synchronous>, transform_indices = @transform_2, window_bounds = array<i64: 1, 96>}, {pipeline_mode = #tpu.pipeline_mode<synchronous>, transform_indices = @transform_3, window_bounds = array<i64: 4, 16, 16>}, {pipeline_mode = #tpu.pipeline_mode<synchronous>, transform_indices = @transform_4, window_bounds = array<i64: 8, 16, 16>}, {pipeline_mode = #tpu.pipeline_mode<synchronous>, transform_indices = @transform_5, window_bounds = array<i64: 32, 32>}, {pipeline_mode = #tpu.pipeline_mode<synchronous>, transform_indices = @transform_6, window_bounds = array<i64: 1, 32>}, {transform_indices = @transform_7, window_bounds = array<i64: 128, 32>}]} {
    %c0 = arith.constant 0 : index
    %c0_0 = arith.constant 0 : index
    %0 = vector.load %arg1[%c0, %c0_0] : memref<128x32xf32, #tpu.memory_space<vmem>>, vector<128x32xf32>
    %c0_1 = arith.constant 0 : index
    %c0_2 = arith.constant 0 : index
    %1 = vector.load %arg2[%c0_1, %c0_2] : memref<32x96xf32, #tpu.memory_space<vmem>>, vector<32x96xf32>
    %cst = arith.constant dense<0.000000e+00> : vector<128x96xf32>
    %2 = tpu.matmul %0, %1, %cst {dimension_numbers = #tpu.dot_dimension_numbers<[1], [0], [0], [1], [0, 0, 1, 1], [], []>} : vector<128x32xf32>, vector<32x96xf32>, vector<128x96xf32> -> vector<128x96xf32>
    %c0_3 = arith.constant 0 : index
    %c0_4 = arith.constant 0 : index
    %3 = vector.load %arg3[%c0_3, %c0_4] : memref<1x96xf32, #tpu.memory_space<vmem>>, vector<1x96xf32>
    %4 = vector.broadcast %3 : vector<1x96xf32> to vector<128x96xf32>
    %5 = arith.addf %2, %4 : vector<128x96xf32>
    %c0_5 = arith.constant 0 : index
    %c0_6 = arith.constant 0 : index
    %c0_7 = arith.constant 0 : index
    %6 = vector.load %arg5[%c0_5, %c0_6, %c0_7] : memref<8x16x16xf32, #tpu.memory_space<vmem>>, vector<8x16x16xf32>
    %7 = vector.extract_strided_slice %5 {offsets = [0, 0], sizes = [128, 8], strides = [1, 1]} : vector<128x96xf32> to vector<128x8xf32>
    %cst_8 = arith.constant 0.353553385 : f32
    %8 = vector.broadcast %cst_8 : f32 to vector<128x8xf32>
    %9 = arith.mulf %7, %8 : vector<128x8xf32>
    %10 = vector.shape_cast %9 : vector<128x8xf32> to vector<8x16x8xf32>
    %11 = vector.extract_strided_slice %5 {offsets = [0, 32], sizes = [128, 8], strides = [1, 1]} : vector<128x96xf32> to vector<128x8xf32>
    %12 = vector.shape_cast %11 : vector<128x8xf32> to vector<8x16x8xf32>
    %13 = vector.extract_strided_slice %5 {offsets = [0, 64], sizes = [128, 8], strides = [1, 1]} : vector<128x96xf32> to vector<128x8xf32>
    %14 = vector.shape_cast %13 : vector<128x8xf32> to vector<8x16x8xf32>
    "tpu.trace_start"() <{level = 10 : i32, message = "bnd,bmd->bnm"}> : () -> ()
    %cst_9 = arith.constant dense<0.000000e+00> : vector<8x16x16xf32>
    %15 = tpu.matmul %10, %12, %cst_9 {dimension_numbers = #tpu.dot_dimension_numbers<[2], [2], [1], [1], [0, 0, 0, 1, 1, 1], [0], [0]>} : vector<8x16x8xf32>, vector<8x16x8xf32>, vector<8x16x16xf32> -> vector<8x16x16xf32>
    "tpu.trace_stop"() : () -> ()
    %c0_10 = arith.constant 0 : index
    %c0_11 = arith.constant 0 : index
    %c0_12 = arith.constant 0 : index
    %16 = vector.load %arg4[%c0_10, %c0_11, %c0_12] : memref<4x16x16xf32, #tpu.memory_space<vmem>>, vector<1x16x16xf32>
    %17 = vector.shape_cast %16 : vector<1x16x16xf32> to vector<16x16xf32>
    %18 = vector.shape_cast %17 : vector<16x16xf32> to vector<1x16x16xf32>
    %19 = vector.broadcast %18 : vector<1x16x16xf32> to vector<8x16x16xf32>
    %20 = arith.addf %15, %19 : vector<8x16x16xf32>
    %21 = arith.addf %20, %6 : vector<8x16x16xf32>
    %cst_13 = arith.constant dense<0xFF800000> : vector<8x16xf32>
    %22 = vector.multi_reduction <maximumf>, %21, %cst_13 [2] : vector<8x16x16xf32> to vector<8x16xf32>
    %23 = vector.shape_cast %22 : vector<8x16xf32> to vector<8x16x1xf32>
    %24 = vector.broadcast %23 : vector<8x16x1xf32> to vector<8x16x16xf32>
    %25 = arith.subf %21, %24 : vector<8x16x16xf32>
    %26 = math.exp %25 : vector<8x16x16xf32>
    %cst_14 = arith.constant dense<0.000000e+00> : vector<8x16xf32>
    %27 = vector.multi_reduction <add>, %26, %cst_14 [2] : vector<8x16x16xf32> to vector<8x16xf32>
    %28 = vector.shape_cast %27 : vector<8x16xf32> to vector<8x16x1xf32>
    %29 = tpu.reciprocal %28 {approx = true} : vector<8x16x1xf32> -> vector<8x16x1xf32>
    %30 = vector.broadcast %29 : vector<8x16x1xf32> to vector<8x16x16xf32>
    %31 = arith.mulf %26, %30 : vector<8x16x16xf32>
    "tpu.trace_start"() <{level = 10 : i32, message = "bnm,bmd->bnd"}> : () -> ()
    %cst_15 = arith.constant dense<0.000000e+00> : vector<8x16x8xf32>
    %32 = tpu.matmul %31, %14, %cst_15 {dimension_numbers = #tpu.dot_dimension_numbers<[2], [1], [1], [2], [0, 0, 0, 1, 1, 2], [0], [0]>} : vector<8x16x16xf32>, vector<8x16x8xf32>, vector<8x16x8xf32> -> vector<8x16x8xf32>
    "tpu.trace_stop"() : () -> ()
    %33 = vector.shape_cast %32 : vector<8x16x8xf32> to vector<128x8xf32>
    %34 = vector.extract_strided_slice %5 {offsets = [0, 8], sizes = [128, 8], strides = [1, 1]} : vector<128x96xf32> to vector<128x8xf32>
    %cst_16 = arith.constant 0.353553385 : f32
    %35 = vector.broadcast %cst_16 : f32 to vector<128x8xf32>
    %36 = arith.mulf %34, %35 : vector<128x8xf32>
    %37 = vector.shape_cast %36 : vector<128x8xf32> to vector<8x16x8xf32>
    %38 = vector.extract_strided_slice %5 {offsets = [0, 40], sizes = [128, 8], strides = [1, 1]} : vector<128x96xf32> to vector<128x8xf32>
    %39 = vector.shape_cast %38 : vector<128x8xf32> to vector<8x16x8xf32>
    %40 = vector.extract_strided_slice %5 {offsets = [0, 72], sizes = [128, 8], strides = [1, 1]} : vector<128x96xf32> to vector<128x8xf32>
    %41 = vector.shape_cast %40 : vector<128x8xf32> to vector<8x16x8xf32>
    "tpu.trace_start"() <{level = 10 : i32, message = "bnd,bmd->bnm"}> : () -> ()
    %cst_17 = arith.constant dense<0.000000e+00> : vector<8x16x16xf32>
    %42 = tpu.matmul %37, %39, %cst_17 {dimension_numbers = #tpu.dot_dimension_numbers<[2], [2], [1], [1], [0, 0, 0, 1, 1, 1], [0], [0]>} : vector<8x16x8xf32>, vector<8x16x8xf32>, vector<8x16x16xf32> -> vector<8x16x16xf32>
    "tpu.trace_stop"() : () -> ()
    %c1 = arith.constant 1 : index
    %c0_18 = arith.constant 0 : index
    %c0_19 = arith.constant 0 : index
    %43 = vector.load %arg4[%c1, %c0_18, %c0_19] : memref<4x16x16xf32, #tpu.memory_space<vmem>>, vector<1x16x16xf32>
    %44 = vector.shape_cast %43 : vector<1x16x16xf32> to vector<16x16xf32>
    %45 = vector.shape_cast %44 : vector<16x16xf32> to vector<1x16x16xf32>
    %46 = vector.broadcast %45 : vector<1x16x16xf32> to vector<8x16x16xf32>
    %47 = arith.addf %42, %46 : vector<8x16x16xf32>
    %48 = arith.addf %47, %6 : vector<8x16x16xf32>
    %cst_20 = arith.constant dense<0xFF800000> : vector<8x16xf32>
    %49 = vector.multi_reduction <maximumf>, %48, %cst_20 [2] : vector<8x16x16xf32> to vector<8x16xf32>
    %50 = vector.shape_cast %49 : vector<8x16xf32> to vector<8x16x1xf32>
    %51 = vector.broadcast %50 : vector<8x16x1xf32> to vector<8x16x16xf32>
    %52 = arith.subf %48, %51 : vector<8x16x16xf32>
    %53 = math.exp %52 : vector<8x16x16xf32>
    %cst_21 = arith.constant dense<0.000000e+00> : vector<8x16xf32>
    %54 = vector.multi_reduction <add>, %53, %cst_21 [2] : vector<8x16x16xf32> to vector<8x16xf32>
    %55 = vector.shape_cast %54 : vector<8x16xf32> to vector<8x16x1xf32>
    %56 = tpu.reciprocal %55 {approx = true} : vector<8x16x1xf32> -> vector<8x16x1xf32>
    %57 = vector.broadcast %56 : vector<8x16x1xf32> to vector<8x16x16xf32>
    %58 = arith.mulf %53, %57 : vector<8x16x16xf32>
    "tpu.trace_start"() <{level = 10 : i32, message = "bnm,bmd->bnd"}> : () -> ()
    %cst_22 = arith.constant dense<0.000000e+00> : vector<8x16x8xf32>
    %59 = tpu.matmul %58, %41, %cst_22 {dimension_numbers = #tpu.dot_dimension_numbers<[2], [1], [1], [2], [0, 0, 0, 1, 1, 2], [0], [0]>} : vector<8x16x16xf32>, vector<8x16x8xf32>, vector<8x16x8xf32> -> vector<8x16x8xf32>
    "tpu.trace_stop"() : () -> ()
    %60 = vector.shape_cast %59 : vector<8x16x8xf32> to vector<128x8xf32>
    %61 = vector.extract_strided_slice %5 {offsets = [0, 16], sizes = [128, 8], strides = [1, 1]} : vector<128x96xf32> to vector<128x8xf32>
    %cst_23 = arith.constant 0.353553385 : f32
    %62 = vector.broadcast %cst_23 : f32 to vector<128x8xf32>
    %63 = arith.mulf %61, %62 : vector<128x8xf32>
    %64 = vector.shape_cast %63 : vector<128x8xf32> to vector<8x16x8xf32>
    %65 = vector.extract_strided_slice %5 {offsets = [0, 48], sizes = [128, 8], strides = [1, 1]} : vector<128x96xf32> to vector<128x8xf32>
    %66 = vector.shape_cast %65 : vector<128x8xf32> to vector<8x16x8xf32>
    %67 = vector.extract_strided_slice %5 {offsets = [0, 80], sizes = [128, 8], strides = [1, 1]} : vector<128x96xf32> to vector<128x8xf32>
    %68 = vector.shape_cast %67 : vector<128x8xf32> to vector<8x16x8xf32>
    "tpu.trace_start"() <{level = 10 : i32, message = "bnd,bmd->bnm"}> : () -> ()
    %cst_24 = arith.constant dense<0.000000e+00> : vector<8x16x16xf32>
    %69 = tpu.matmul %64, %66, %cst_24 {dimension_numbers = #tpu.dot_dimension_numbers<[2], [2], [1], [1], [0, 0, 0, 1, 1, 1], [0], [0]>} : vector<8x16x8xf32>, vector<8x16x8xf32>, vector<8x16x16xf32> -> vector<8x16x16xf32>
    "tpu.trace_stop"() : () -> ()
    %c2 = arith.constant 2 : index
    %c0_25 = arith.constant 0 : index
    %c0_26 = arith.constant 0 : index
    %70 = vector.load %arg4[%c2, %c0_25, %c0_26] : memref<4x16x16xf32, #tpu.memory_space<vmem>>, vector<1x16x16xf32>
    %71 = vector.shape_cast %70 : vector<1x16x16xf32> to vector<16x16xf32>
    %72 = vector.shape_cast %71 : vector<16x16xf32> to vector<1x16x16xf32>
    %73 = vector.broadcast %72 : vector<1x16x16xf32> to vector<8x16x16xf32>
    %74 = arith.addf %69, %73 : vector<8x16x16xf32>
    %75 = arith.addf %74, %6 : vector<8x16x16xf32>
    %cst_27 = arith.constant dense<0xFF800000> : vector<8x16xf32>
    %76 = vector.multi_reduction <maximumf>, %75, %cst_27 [2] : vector<8x16x16xf32> to vector<8x16xf32>
    %77 = vector.shape_cast %76 : vector<8x16xf32> to vector<8x16x1xf32>
    %78 = vector.broadcast %77 : vector<8x16x1xf32> to vector<8x16x16xf32>
    %79 = arith.subf %75, %78 : vector<8x16x16xf32>
    %80 = math.exp %79 : vector<8x16x16xf32>
    %cst_28 = arith.constant dense<0.000000e+00> : vector<8x16xf32>
    %81 = vector.multi_reduction <add>, %80, %cst_28 [2] : vector<8x16x16xf32> to vector<8x16xf32>
    %82 = vector.shape_cast %81 : vector<8x16xf32> to vector<8x16x1xf32>
    %83 = tpu.reciprocal %82 {approx = true} : vector<8x16x1xf32> -> vector<8x16x1xf32>
    %84 = vector.broadcast %83 : vector<8x16x1xf32> to vector<8x16x16xf32>
    %85 = arith.mulf %80, %84 : vector<8x16x16xf32>
    "tpu.trace_start"() <{level = 10 : i32, message = "bnm,bmd->bnd"}> : () -> ()
    %cst_29 = arith.constant dense<0.000000e+00> : vector<8x16x8xf32>
    %86 = tpu.matmul %85, %68, %cst_29 {dimension_numbers = #tpu.dot_dimension_numbers<[2], [1], [1], [2], [0, 0, 0, 1, 1, 2], [0], [0]>} : vector<8x16x16xf32>, vector<8x16x8xf32>, vector<8x16x8xf32> -> vector<8x16x8xf32>
    "tpu.trace_stop"() : () -> ()
    %87 = vector.shape_cast %86 : vector<8x16x8xf32> to vector<128x8xf32>
    %88 = vector.extract_strided_slice %5 {offsets = [0, 24], sizes = [128, 8], strides = [1, 1]} : vector<128x96xf32> to vector<128x8xf32>
    %cst_30 = arith.constant 0.353553385 : f32
    %89 = vector.broadcast %cst_30 : f32 to vector<128x8xf32>
    %90 = arith.mulf %88, %89 : vector<128x8xf32>
    %91 = vector.shape_cast %90 : vector<128x8xf32> to vector<8x16x8xf32>
    %92 = vector.extract_strided_slice %5 {offsets = [0, 56], sizes = [128, 8], strides = [1, 1]} : vector<128x96xf32> to vector<128x8xf32>
    %93 = vector.shape_cast %92 : vector<128x8xf32> to vector<8x16x8xf32>
    %94 = vector.extract_strided_slice %5 {offsets = [0, 88], sizes = [128, 8], strides = [1, 1]} : vector<128x96xf32> to vector<128x8xf32>
    %95 = vector.shape_cast %94 : vector<128x8xf32> to vector<8x16x8xf32>
    "tpu.trace_start"() <{level = 10 : i32, message = "bnd,bmd->bnm"}> : () -> ()
    %cst_31 = arith.constant dense<0.000000e+00> : vector<8x16x16xf32>
    %96 = tpu.matmul %91, %93, %cst_31 {dimension_numbers = #tpu.dot_dimension_numbers<[2], [2], [1], [1], [0, 0, 0, 1, 1, 1], [0], [0]>} : vector<8x16x8xf32>, vector<8x16x8xf32>, vector<8x16x16xf32> -> vector<8x16x16xf32>
    "tpu.trace_stop"() : () -> ()
    %c3 = arith.constant 3 : index
    %c0_32 = arith.constant 0 : index
    %c0_33 = arith.constant 0 : index
    %97 = vector.load %arg4[%c3, %c0_32, %c0_33] : memref<4x16x16xf32, #tpu.memory_space<vmem>>, vector<1x16x16xf32>
    %98 = vector.shape_cast %97 : vector<1x16x16xf32> to vector<16x16xf32>
    %99 = vector.shape_cast %98 : vector<16x16xf32> to vector<1x16x16xf32>
    %100 = vector.broadcast %99 : vector<1x16x16xf32> to vector<8x16x16xf32>
    %101 = arith.addf %96, %100 : vector<8x16x16xf32>
    %102 = arith.addf %101, %6 : vector<8x16x16xf32>
    %cst_34 = arith.constant dense<0xFF800000> : vector<8x16xf32>
    %103 = vector.multi_reduction <maximumf>, %102, %cst_34 [2] : vector<8x16x16xf32> to vector<8x16xf32>
    %104 = vector.shape_cast %103 : vector<8x16xf32> to vector<8x16x1xf32>
    %105 = vector.broadcast %104 : vector<8x16x1xf32> to vector<8x16x16xf32>
    %106 = arith.subf %102, %105 : vector<8x16x16xf32>
    %107 = math.exp %106 : vector<8x16x16xf32>
    %cst_35 = arith.constant dense<0.000000e+00> : vector<8x16xf32>
    %108 = vector.multi_reduction <add>, %107, %cst_35 [2] : vector<8x16x16xf32> to vector<8x16xf32>
    %109 = vector.shape_cast %108 : vector<8x16xf32> to vector<8x16x1xf32>
    %110 = tpu.reciprocal %109 {approx = true} : vector<8x16x1xf32> -> vector<8x16x1xf32>
    %111 = vector.broadcast %110 : vector<8x16x1xf32> to vector<8x16x16xf32>
    %112 = arith.mulf %107, %111 : vector<8x16x16xf32>
    "tpu.trace_start"() <{level = 10 : i32, message = "bnm,bmd->bnd"}> : () -> ()
    %cst_36 = arith.constant dense<0.000000e+00> : vector<8x16x8xf32>
    %113 = tpu.matmul %112, %95, %cst_36 {dimension_numbers = #tpu.dot_dimension_numbers<[2], [1], [1], [2], [0, 0, 0, 1, 1, 2], [0], [0]>} : vector<8x16x16xf32>, vector<8x16x8xf32>, vector<8x16x8xf32> -> vector<8x16x8xf32>
    "tpu.trace_stop"() : () -> ()
    %114 = vector.shape_cast %113 : vector<8x16x8xf32> to vector<128x8xf32>
    %115 = tpu.concatenate %33, %60, %87, %114 in 1 : vector<128x8xf32>, vector<128x8xf32>, vector<128x8xf32>, vector<128x8xf32> -> vector<128x32xf32>
    %c0_37 = arith.constant 0 : index
    %c0_38 = arith.constant 0 : index
    %116 = vector.load %arg6[%c0_37, %c0_38] : memref<32x32xf32, #tpu.memory_space<vmem>>, vector<32x32xf32>
    %cst_39 = arith.constant dense<0.000000e+00> : vector<128x32xf32>
    %117 = tpu.matmul %115, %116, %cst_39 {dimension_numbers = #tpu.dot_dimension_numbers<[1], [0], [0], [1], [0, 0, 1, 1], [], []>} : vector<128x32xf32>, vector<32x32xf32>, vector<128x32xf32> -> vector<128x32xf32>
    %c0_40 = arith.constant 0 : index
    %c0_41 = arith.constant 0 : index
    %118 = vector.load %arg7[%c0_40, %c0_41] : memref<1x32xf32, #tpu.memory_space<vmem>>, vector<1x32xf32>
    %119 = vector.broadcast %118 : vector<1x32xf32> to vector<128x32xf32>
    %120 = arith.addf %117, %119 : vector<128x32xf32>
    %c0_42 = arith.constant 0 : index
    %c0_43 = arith.constant 0 : index
    %121 = vector.load %arg8[%c0_42, %c0_43] : memref<128x32xf32, #tpu.memory_space<vmem>>, vector<128x32xf32>
    tpu.vector_store %arg8[%c0_42, %c0_43], %120 {strides = array<i32>} : memref<128x32xf32, #tpu.memory_space<vmem>>, vector<128x32xf32>,
    return
  }
  func.func @transform_0(%arg0: i32) -> (i32, i32) {
    %c0_i32 = arith.constant 0 : i32
    %c0_i32_0 = arith.constant 0 : i32
    return %arg0, %c0_i32 : i32, i32
  }
  func.func @transform_1(%arg0: i32) -> (i32, i32) {
    %c0_i32 = arith.constant 0 : i32
    %c0_i32_0 = arith.constant 0 : i32
    %c0_i32_1 = arith.constant 0 : i32
    return %c0_i32, %c0_i32_0 : i32, i32
  }
  func.func @transform_2(%arg0: i32) -> (i32, i32) {
    %c0_i32 = arith.constant 0 : i32
    %c0_i32_0 = arith.constant 0 : i32
    %c0_i32_1 = arith.constant 0 : i32
    return %c0_i32, %c0_i32_0 : i32, i32
  }
  func.func @transform_3(%arg0: i32) -> (i32, i32, i32) {
    %c0_i32 = arith.constant 0 : i32
    %c0_i32_0 = arith.constant 0 : i32
    %c0_i32_1 = arith.constant 0 : i32
    %c0_i32_2 = arith.constant 0 : i32
    return %c0_i32, %c0_i32_0, %c0_i32_1 : i32, i32, i32
  }
  func.func @transform_4(%arg0: i32) -> (i32, i32, i32) {
    %c0_i32 = arith.constant 0 : i32
    %c0_i32_0 = arith.constant 0 : i32
    %c0_i32_1 = arith.constant 0 : i32
    %c0_i32_2 = arith.constant 0 : i32
    return %c0_i32, %c0_i32_0, %c0_i32_1 : i32, i32, i32
  }
  func.func @transform_5(%arg0: i32) -> (i32, i32) {
    %c0_i32 = arith.constant 0 : i32
    %c0_i32_0 = arith.constant 0 : i32
    %c0_i32_1 = arith.constant 0 : i32
    return %c0_i32, %c0_i32_0 : i32, i32
  }
  func.func @transform_6(%arg0: i32) -> (i32, i32) {
    %c0_i32 = arith.constant 0 : i32
    %c0_i32_0 = arith.constant 0 : i32
    %c0_i32_1 = arith.constant 0 : i32
    return %c0_i32, %c0_i32_0 : i32, i32
  }
  func.func @transform_7(%arg0: i32) -> (i32, i32) {
    %c0_i32 = arith.constant 0 : i32
    %c0_i32_0 = arith.constant 0 : i32
    return %arg0, %c0_i32 : i32, i32
  }
}

</mosaic_0001>

<llo_original>
// kernel: tpu_custom_call.1
$region0: #{tpu_custom_call.1}
  #allocation0 [shape = 'u32[]', space=smem, size = 0x4, offset = 0x4, fixed_abs, tag = 'smem constant byte address 0x4 - core index']
  #allocation1 [shape = 'u32[72,128]{1,0:T(1,128)}', space=vmem, size = 0x9000, scoped, tag = 'internal scratch']
  %s0 = inlined_call_operand.vmem [shape: f32[128,32], index: 0, kind: input, shape index: {}]
  %s1 = inlined_call_operand.vmem [shape: f32[32,96], index: 1, kind: input, shape index: {}]
  %s2 = inlined_call_operand.vmem [shape: f32[1,96], index: 2, kind: input, shape index: {}]
  %s3 = inlined_call_operand.hbm [shape: f32[4,16,16], index: 3, kind: input, shape index: {}]
  %s4 = inlined_call_operand.vmem [shape: f32[8,16,16], index: 4, kind: input, shape index: {}]
  %s5 = inlined_call_operand.hbm [shape: f32[32,32], index: 5, kind: input, shape index: {}]
  %s6 = inlined_call_operand.vmem [shape: f32[1,32], index: 6, kind: input, shape index: {}]
  %s7 = inlined_call_operand.vmem [shape: f32[128,32], index: 7, kind: output, shape index: {}]
  %s8 = sld [smem:[#allocation0]]
  $region46: #{tpu_custom_call.1} parent=0
    _
  %s10 = ssub.s32 1, %s8
  %s11 = scalar_select 0, %s10, %s8
  $region1: #{tpu_custom_call.1} parent=0
    #allocation2 [shape = 'u8[32768]{0}', space=vmem, size = 0x8000, scoped, tag = 'input window, operand 3, single buffered']
    #allocation3 [shape = 's32[1]{0}', space=sflag, size = 0x4, scoped, tag = 'scoped memory for tpu_custom_call.1']
    #allocation4 [shape = 'u8[16384]{0}', space=vmem, size = 0x4000, scoped, tag = 'input window, operand 5, single buffered']
    #allocation5 [shape = 's32[1]{0}', space=sflag, size = 0x4, scoped, tag = 'scoped memory for tpu_custom_call.1']
    %12 = vsyncpa [#allocation3], 0
    %13 = vsyncpa [#allocation5], 0
    // Predicated region
    $region2: #{tpu_custom_call.1} parent=1 // pred_check
      _
    $region3: #{tpu_custom_call.1} parent=1 // pred_check_branch
      %15 = sbr.rel (0) target = $region5
    $region4: #{tpu_custom_call.1} parent=1 // pred_region
      _
    $region5: #{tpu_custom_call.1} parent=1 // pred_fallthru
      _
    // Predicated region
    $region6: #{tpu_custom_call.1} parent=1 // pred_check
      _
    $region7: #{tpu_custom_call.1} parent=1 // pred_check_branch
      %17 = sbr.rel (0) target = $region9
    $region8: #{tpu_custom_call.1} parent=1 // pred_region
      _
    $region9: #{tpu_custom_call.1} parent=1 // pred_fallthru
      _
    // Predicated region
    $region10: #{tpu_custom_call.1} parent=1 // pred_check
      _
    $region11: #{tpu_custom_call.1} parent=1 // pred_check_branch
      %19 = sbr.rel (0) target = $region13
    $region12: #{tpu_custom_call.1} parent=1 // pred_region
      _
    $region13: #{tpu_custom_call.1} parent=1 // pred_fallthru
      _
    // Predicated region
    $region14: #{tpu_custom_call.1} parent=1 // pred_check
      _
    $region15: #{tpu_custom_call.1} parent=1 // pred_check_branch
      %21 = sbr.rel (0) target = $region17
    $region16: #{tpu_custom_call.1} parent=1 // pred_region
      %23 = vsyncadd [#allocation3], 0
      %s24 = sshll.u32 %s3, 4
      %s25 = int_to_ptr.hbm [resolvable:$true] %s24
      %s26 = sshll.u32 [#allocation2], 4
      %s27 = int_to_ptr.vmem [resolvable:$true] %s26
      %32 = dma.hbm_to_vmem [thread:$0]  %s25, 1024, %s27, [#allocation3], 128, 128, 8
    $region17: #{tpu_custom_call.1} parent=1 // pred_fallthru
      _
    // Predicated region
    $region18: #{tpu_custom_call.1} parent=1 // pred_check
      _
    $region19: #{tpu_custom_call.1} parent=1 // pred_check_branch
      %34 = sbr.rel (0) target = $region21
    $region20: #{tpu_custom_call.1} parent=1 // pred_region
      _
    $region21: #{tpu_custom_call.1} parent=1 // pred_fallthru
      _
    // Predicated region
    $region22: #{tpu_custom_call.1} parent=1 // pred_check
      _
    $region23: #{tpu_custom_call.1} parent=1 // pred_check_branch
      %36 = sbr.rel (0) target = $region25
    $region24: #{tpu_custom_call.1} parent=1 // pred_region
      %38 = vsyncadd [#allocation5], 0
      %s39 = sshll.u32 %s5, 4
      %s40 = int_to_ptr.hbm [resolvable:$true] %s39
      %s41 = sshll.u32 [#allocation4], 4
      %s42 = int_to_ptr.vmem [resolvable:$true] %s41
      %47 = dma.hbm_to_vmem [thread:$0]  %s40, 512, %s42, [#allocation5], 128, 128, 8
    $region25: #{tpu_custom_call.1} parent=1 // pred_fallthru
      _
    // Predicated region
    $region26: #{tpu_custom_call.1} parent=1 // pred_check
      _
    $region27: #{tpu_custom_call.1} parent=1 // pred_check_branch
      %49 = sbr.rel (0) target = $region29
    $region28: #{tpu_custom_call.1} parent=1 // pred_region
      _
    $region29: #{tpu_custom_call.1} parent=1 // pred_fallthru
      _
    // Predicated region
    $region30: #{tpu_custom_call.1} parent=1 // pred_check
      _
    $region31: #{tpu_custom_call.1} parent=1 // pred_check_branch
      %51 = sbr.rel (0) target = $region33
    $region32: #{tpu_custom_call.1} parent=1 // pred_region
      %53 = dma.done [#allocation3], 1024
    $region33: #{tpu_custom_call.1} parent=1 // pred_fallthru
      _
    // Predicated region
    $region34: #{tpu_custom_call.1} parent=1 // pred_check
      _
    $region35: #{tpu_custom_call.1} parent=1 // pred_check_branch
      %55 = sbr.rel (0) target = $region37
    $region36: #{tpu_custom_call.1} parent=1 // pred_region
      %57 = dma.done [#allocation5], 512
    $region37: #{tpu_custom_call.1} parent=1 // pred_fallthru
      _
    %v58 = vld [vmem:[%s0] sm:$0xff]
    %v59 = vld [vmem:[%s0 + $0x8] sm:$0xff]
    %v60 = vld [vmem:[%s0 + $0x10] sm:$0xff]
    %v61 = vld [vmem:[%s0 + $0x18] sm:$0xff]
    %v62 = vld [vmem:[%s0 + $0x20] sm:$0xff]
    %v63 = vld [vmem:[%s0 + $0x28] sm:$0xff]
    %v64 = vld [vmem:[%s0 + $0x30] sm:$0xff]
    %v65 = vld [vmem:[%s0 + $0x38] sm:$0xff]
    %v66 = vld [vmem:[%s0 + $0x40] sm:$0xff]
    %v67 = vld [vmem:[%s0 + $0x48] sm:$0xff]
    %v68 = vld [vmem:[%s0 + $0x50] sm:$0xff]
    %v69 = vld [vmem:[%s0 + $0x58] sm:$0xff]
    %v70 = vld [vmem:[%s0 + $0x60] sm:$0xff]
    %v71 = vld [vmem:[%s0 + $0x68] sm:$0xff]
    %v72 = vld [vmem:[%s0 + $0x70] sm:$0xff]
    %v73 = vld [vmem:[%s0 + $0x78] sm:$0xff]
    %v74 = vld [vmem:[%s1] sm:$0xff]
    %v75 = vld [vmem:[%s1 + $0x8] sm:$0xff]
    %v76 = vld [vmem:[%s1 + $0x10] sm:$0xff]
    %v77 = vld [vmem:[%s1 + $0x18] sm:$0xff]
    %v78 = vld [vmem:[%s2] sm:$0x1]
    %v80 = vperm.slane %v78, 0
    %vm82 = vcmask 261120
    %v84 = vsel %vm82, %v58, 0
    %v87 = vsel %vm82, %v59, 0
    %v90 = vsel %vm82, %v60, 0
    %v93 = vsel %vm82, %v61, 0
    %v96 = vsel %vm82, %v62, 0
    %v99 = vsel %vm82, %v63, 0
    %v102 = vsel %vm82, %v64, 0
    %v105 = vsel %vm82, %v65, 0
    %v108 = vsel %vm82, %v66, 0
    %v111 = vsel %vm82, %v67, 0
    %v114 = vsel %vm82, %v68, 0
    %v117 = vsel %vm82, %v69, 0
    %v120 = vsel %vm82, %v70, 0
    %v123 = vsel %vm82, %v71, 0
    %v126 = vsel %vm82, %v72, 0
    %v129 = vsel %vm82, %v73, 0
    %131 = vmatpush.msra.mxu0 0.0
    %132 = vmatpush.msra.mxu0 0.0
    %133 = vmatpush.msra.mxu0 0.0
    %134 = vmatpush.msra.mxu0 0.0
    %135 = vmatpush.msra.mxu0 0.0
    %136 = vmatpush.msra.mxu0 0.0
    %137 = vmatpush.msra.mxu0 0.0
    %138 = vmatpush.msra.mxu0 0.0
    %139 = vmatpush.msra.mxu0 0.0
    %140 = vmatpush.msra.mxu0 0.0
    %141 = vmatpush.msra.mxu0 0.0
    %142 = vmatpush.msra.mxu0 0.0
    %143 = vmatpush.msra.mxu0 %v77
    %144 = vmatpush.msra.mxu0 %v76
    %145 = vmatpush.msra.mxu0 %v75
    %146 = vmatpush.msra.mxu0 %v74
    %147 = vmatmul.f32.gmra.mxu0 %v84
    %v148 = vpop.f32.mrf.mxu0
    %v149 = vadd.f32 %v80, %v148
    %150 = vmatmul.f32.gmra.mxu0 %v87
    %v151 = vpop.f32.mrf.mxu0
    %v152 = vadd.f32 %v80, %v151
    %153 = vmatmul.f32.gmra.mxu0 %v90
    %v154 = vpop.f32.mrf.mxu0
    %v155 = vadd.f32 %v80, %v154
    %156 = vmatmul.f32.gmra.mxu0 %v93
    %v157 = vpop.f32.mrf.mxu0
    %v158 = vadd.f32 %v80, %v157
    %159 = vmatmul.f32.gmra.mxu0 %v96
    %v160 = vpop.f32.mrf.mxu0
    %v161 = vadd.f32 %v80, %v160
    %162 = vmatmul.f32.gmra.mxu0 %v99
    %v163 = vpop.f32.mrf.mxu0
    %v164 = vadd.f32 %v80, %v163
    %165 = vmatmul.f32.gmra.mxu0 %v102
    %v166 = vpop.f32.mrf.mxu0
    %v167 = vadd.f32 %v80, %v166
    %168 = vmatmul.f32.gmra.mxu0 %v105
    %v169 = vpop.f32.mrf.mxu0
    %v170 = vadd.f32 %v80, %v169
    %171 = vmatmul.f32.gmra.mxu0 %v108
    %v172 = vpop.f32.mrf.mxu0
    %v173 = vadd.f32 %v80, %v172
    %174 = vmatmul.f32.gmra.mxu0 %v111
    %v175 = vpop.f32.mrf.mxu0
    %v176 = vadd.f32 %v80, %v175
    %177 = vmatmul.f32.gmra.mxu0 %v114
    %v178 = vpop.f32.mrf.mxu0
    %v179 = vadd.f32 %v80, %v178
    %180 = vmatmul.f32.gmra.mxu0 %v117
    %v181 = vpop.f32.mrf.mxu0
    %v182 = vadd.f32 %v80, %v181
    %183 = vmatmul.f32.gmra.mxu0 %v120
    %v184 = vpop.f32.mrf.mxu0
    %v185 = vadd.f32 %v80, %v184
    %186 = vmatmul.f32.gmra.mxu0 %v123
    %v187 = vpop.f32.mrf.mxu0
    %v188 = vadd.f32 %v80, %v187
    %189 = vmatmul.f32.gmra.mxu0 %v126
    %v190 = vpop.f32.mrf.mxu0
    %v191 = vadd.f32 %v80, %v190
    %192 = vmatmul.f32.gmra.mxu0 %v129
    %v193 = vpop.f32.mrf.mxu0
    %v194 = vadd.f32 %v80, %v193
    %195 = vdwg.mxu0
    %v196 = vld [vmem:[%s4] sm:$0xff]
    %v197 = vld [vmem:[%s4 + $0x8] sm:$0xff]
    %v198 = vld [vmem:[%s4 + $0x10] sm:$0xff]
    %v199 = vld [vmem:[%s4 + $0x18] sm:$0xff]
    %v200 = vld [vmem:[%s4 + $0x20] sm:$0xff]
    %v201 = vld [vmem:[%s4 + $0x28] sm:$0xff]
    %v202 = vld [vmem:[%s4 + $0x30] sm:$0xff]
    %v203 = vld [vmem:[%s4 + $0x38] sm:$0xff]
    %v204 = vld [vmem:[%s4 + $0x40] sm:$0xff]
    %v205 = vld [vmem:[%s4 + $0x48] sm:$0xff]
    %v206 = vld [vmem:[%s4 + $0x50] sm:$0xff]
    %v207 = vld [vmem:[%s4 + $0x58] sm:$0xff]
    %v208 = vld [vmem:[%s4 + $0x60] sm:$0xff]
    %v209 = vld [vmem:[%s4 + $0x68] sm:$0xff]
    %v210 = vld [vmem:[%s4 + $0x70] sm:$0xff]
    %v211 = vld [vmem:[%s4 + $0x78] sm:$0xff]
    %v212 = vmul.f32 %v149, 0.35355338
    %v213 = vmul.f32 %v152, 0.35355338
    %v214 = vmul.f32 %v155, 0.35355338
    %v215 = vmul.f32 %v158, 0.35355338
    %v216 = vmul.f32 %v161, 0.35355338
    %v217 = vmul.f32 %v164, 0.35355338
    %v218 = vmul.f32 %v167, 0.35355338
    %v219 = vmul.f32 %v170, 0.35355338
    %v220 = vmul.f32 %v173, 0.35355338
    %v221 = vmul.f32 %v176, 0.35355338
    %v222 = vmul.f32 %v179, 0.35355338
    %v223 = vmul.f32 %v182, 0.35355338
    %v224 = vmul.f32 %v185, 0.35355338
    %v225 = vmul.f32 %v188, 0.35355338
    %v226 = vmul.f32 %v191, 0.35355338
    %v227 = vmul.f32 %v194, 0.35355338
    %v228 = vld [vmem:[#allocation2] sm:$0xff]
    %v229 = vld [vmem:[#allocation2 + $0x8] sm:$0xff]
    %232 = vrot.lane.b32.xlu0 %v149, 96
    %v233 = vpop.permute.xlu0 %232
    %234 = vrot.lane.b32.xlu0 %v152, 96
    %v235 = vpop.permute.xlu0 %234
    %vm236 = vcmask 64512
    %v238 = vsel %vm236, %v212, 0
    %v241 = vsel %vm236, %v213, 0
    %v243 = vsel %vm236, %v233, 0
    %v245 = vsel %vm236, %v235, 0
    %247 = vmatpush.xpose.msra.mxu0 0.0
    %248 = vmatpush.xpose.msra.mxu0 0.0
    %249 = vmatpush.xpose.msra.mxu0 0.0
    %250 = vmatpush.xpose.msra.mxu0 0.0
    %251 = vmatpush.xpose.msra.mxu0 0.0
    %252 = vmatpush.xpose.msra.mxu0 0.0
    %253 = vmatpush.xpose.msra.mxu0 0.0
    %254 = vmatpush.xpose.msra.mxu0 0.0
    %255 = vmatpush.xpose.msra.mxu0 0.0
    %256 = vmatpush.xpose.msra.mxu0 0.0
    %257 = vmatpush.xpose.msra.mxu0 0.0
    %258 = vmatpush.xpose.msra.mxu0 0.0
    %259 = vmatpush.xpose.msra.mxu0 0.0
    %260 = vmatpush.xpose.msra.mxu0 0.0
    %261 = vmatpush.xpose.msra.mxu0 %v245
    %262 = vmatpush.xpose.msra.mxu0 %v243
    %263 = vmatmul.f32.gmra.mxu0 %v238
    %v264 = vpop.f32.mrf.mxu0
    %v265 = vadd.f32 %v228, %v264
    %266 = vmatmul.f32.gmra.mxu0 %v241
    %v267 = vpop.f32.mrf.mxu0
    %v268 = vadd.f32 %v229, %v267
    %269 = vdwg.mxu0
    %272 = vrot.lane.b32.xlu0 %v155, 96
    %v273 = vpop.permute.xlu0 %272
    %274 = vrot.lane.b32.xlu0 %v158, 96
    %v275 = vpop.permute.xlu0 %274
    %v277 = vsel %vm236, %v214, 0
    %v280 = vsel %vm236, %v215, 0
    %v282 = vsel %vm236, %v273, 0
    %v284 = vsel %vm236, %v275, 0
    %286 = vmatpush.xpose.msra.mxu0 0.0
    %287 = vmatpush.xpose.msra.mxu0 0.0
    %288 = vmatpush.xpose.msra.mxu0 0.0
    %289 = vmatpush.xpose.msra.mxu0 0.0
    %290 = vmatpush.xpose.msra.mxu0 0.0
    %291 = vmatpush.xpose.msra.mxu0 0.0
    %292 = vmatpush.xpose.msra.mxu0 0.0
    %293 = vmatpush.xpose.msra.mxu0 0.0
    %294 = vmatpush.xpose.msra.mxu0 0.0
    %295 = vmatpush.xpose.msra.mxu0 0.0
    %296 = vmatpush.xpose.msra.mxu0 0.0
    %297 = vmatpush.xpose.msra.mxu0 0.0
    %298 = vmatpush.xpose.msra.mxu0 0.0
    %299 = vmatpush.xpose.msra.mxu0 0.0
    %300 = vmatpush.xpose.msra.mxu0 %v284
    %301 = vmatpush.xpose.msra.mxu0 %v282
    %302 = vmatmul.f32.gmra.mxu0 %v277
    %v303 = vpop.f32.mrf.mxu0
    %v304 = vadd.f32 %v228, %v303
    %305 = vmatmul.f32.gmra.mxu0 %v280
    %v306 = vpop.f32.mrf.mxu0
    %v307 = vadd.f32 %v229, %v306
    %308 = vdwg.mxu0
    %311 = vrot.lane.b32.xlu0 %v161, 96
    %v312 = vpop.permute.xlu0 %311
    %313 = vrot.lane.b32.xlu0 %v164, 96
    %v314 = vpop.permute.xlu0 %313
    %v316 = vsel %vm236, %v216, 0
    %v319 = vsel %vm236, %v217, 0
    %v321 = vsel %vm236, %v312, 0
    %v323 = vsel %vm236, %v314, 0
    %325 = vmatpush.xpose.msra.mxu0 0.0
    %326 = vmatpush.xpose.msra.mxu0 0.0
    %327 = vmatpush.xpose.msra.mxu0 0.0
    %328 = vmatpush.xpose.msra.mxu0 0.0
    %329 = vmatpush.xpose.msra.mxu0 0.0
    %330 = vmatpush.xpose.msra.mxu0 0.0
    %331 = vmatpush.xpose.msra.mxu0 0.0
    %332 = vmatpush.xpose.msra.mxu0 0.0
    %333 = vmatpush.xpose.msra.mxu0 0.0
    %334 = vmatpush.xpose.msra.mxu0 0.0
    %335 = vmatpush.xpose.msra.mxu0 0.0
    %336 = vmatpush.xpose.msra.mxu0 0.0
    %337 = vmatpush.xpose.msra.mxu0 0.0
    %338 = vmatpush.xpose.msra.mxu0 0.0
    %339 = vmatpush.xpose.msra.mxu0 %v323
    %340 = vmatpush.xpose.msra.mxu0 %v321
    %341 = vmatmul.f32.gmra.mxu0 %v316
    %v342 = vpop.f32.mrf.mxu0
    %v343 = vadd.f32 %v228, %v342
    %344 = vmatmul.f32.gmra.mxu0 %v319
    %v345 = vpop.f32.mrf.mxu0
    %v346 = vadd.f32 %v229, %v345
    %347 = vdwg.mxu0
    %350 = vrot.lane.b32.xlu0 %v167, 96
    %v351 = vpop.permute.xlu0 %350
    %352 = vrot.lane.b32.xlu0 %v170, 96
    %v353 = vpop.permute.xlu0 %352
    %v355 = vsel %vm236, %v218, 0
    %v358 = vsel %vm236, %v219, 0
    %v360 = vsel %vm236, %v351, 0
    %v362 = vsel %vm236, %v353, 0
    %364 = vmatpush.xpose.msra.mxu0 0.0
    %365 = vmatpush.xpose.msra.mxu0 0.0
    %366 = vmatpush.xpose.msra.mxu0 0.0
    %367 = vmatpush.xpose.msra.mxu0 0.0
    %368 = vmatpush.xpose.msra.mxu0 0.0
    %369 = vmatpush.xpose.msra.mxu0 0.0
    %370 = vmatpush.xpose.msra.mxu0 0.0
    %371 = vmatpush.xpose.msra.mxu0 0.0
    %372 = vmatpush.xpose.msra.mxu0 0.0
    %373 = vmatpush.xpose.msra.mxu0 0.0
    %374 = vmatpush.xpose.msra.mxu0 0.0
    %375 = vmatpush.xpose.msra.mxu0 0.0
    %376 = vmatpush.xpose.msra.mxu0 0.0
    %377 = vmatpush.xpose.msra.mxu0 0.0
    %378 = vmatpush.xpose.msra.mxu0 %v362
    %379 = vmatpush.xpose.msra.mxu0 %v360
    %380 = vmatmul.f32.gmra.mxu0 %v355
    %v381 = vpop.f32.mrf.mxu0
    %v382 = vadd.f32 %v228, %v381
    %383 = vmatmul.f32.gmra.mxu0 %v358
    %v384 = vpop.f32.mrf.mxu0
    %v385 = vadd.f32 %v229, %v384
    %386 = vdwg.mxu0
    %389 = vrot.lane.b32.xlu0 %v173, 96
    %v390 = vpop.permute.xlu0 %389
    %391 = vrot.lane.b32.xlu0 %v176, 96
    %v392 = vpop.permute.xlu0 %391
    %v394 = vsel %vm236, %v220, 0
    %v397 = vsel %vm236, %v221, 0
    %v399 = vsel %vm236, %v390, 0
    %v401 = vsel %vm236, %v392, 0
    %403 = vmatpush.xpose.msra.mxu0 0.0
    %404 = vmatpush.xpose.msra.mxu0 0.0
    %405 = vmatpush.xpose.msra.mxu0 0.0
    %406 = vmatpush.xpose.msra.mxu0 0.0
    %407 = vmatpush.xpose.msra.mxu0 0.0
    %408 = vmatpush.xpose.msra.mxu0 0.0
    %409 = vmatpush.xpose.msra.mxu0 0.0
    %410 = vmatpush.xpose.msra.mxu0 0.0
    %411 = vmatpush.xpose.msra.mxu0 0.0
    %412 = vmatpush.xpose.msra.mxu0 0.0
    %413 = vmatpush.xpose.msra.mxu0 0.0
    %414 = vmatpush.xpose.msra.mxu0 0.0
    %415 = vmatpush.xpose.msra.mxu0 0.0
    %416 = vmatpush.xpose.msra.mxu0 0.0
    %417 = vmatpush.xpose.msra.mxu0 %v401
    %418 = vmatpush.xpose.msra.mxu0 %v399
    %419 = vmatmul.f32.gmra.mxu0 %v394
    %v420 = vpop.f32.mrf.mxu0
    %v421 = vadd.f32 %v228, %v420
    %422 = vmatmul.f32.gmra.mxu0 %v397
    %v423 = vpop.f32.mrf.mxu0
    %v424 = vadd.f32 %v229, %v423
    %425 = vdwg.mxu0
    %428 = vrot.lane.b32.xlu0 %v179, 96
    %v429 = vpop.permute.xlu0 %428
    %430 = vrot.lane.b32.xlu0 %v182, 96
    %v431 = vpop.permute.xlu0 %430
    %v433 = vsel %vm236, %v222, 0
    %v436 = vsel %vm236, %v223, 0
    %v438 = vsel %vm236, %v429, 0
    %v440 = vsel %vm236, %v431, 0
    %442 = vmatpush.xpose.msra.mxu0 0.0
    %443 = vmatpush.xpose.msra.mxu0 0.0
    %444 = vmatpush.xpose.msra.mxu0 0.0
    %445 = vmatpush.xpose.msra.mxu0 0.0
    %446 = vmatpush.xpose.msra.mxu0 0.0
    %447 = vmatpush.xpose.msra.mxu0 0.0
    %448 = vmatpush.xpose.msra.mxu0 0.0
    %449 = vmatpush.xpose.msra.mxu0 0.0
    %450 = vmatpush.xpose.msra.mxu0 0.0
    %451 = vmatpush.xpose.msra.mxu0 0.0
    %452 = vmatpush.xpose.msra.mxu0 0.0
    %453 = vmatpush.xpose.msra.mxu0 0.0
    %454 = vmatpush.xpose.msra.mxu0 0.0
    %455 = vmatpush.xpose.msra.mxu0 0.0
    %456 = vmatpush.xpose.msra.mxu0 %v440
    %457 = vmatpush.xpose.msra.mxu0 %v438
    %458 = vmatmul.f32.gmra.mxu0 %v433
    %v459 = vpop.f32.mrf.mxu0
    %v460 = vadd.f32 %v228, %v459
    %461 = vmatmul.f32.gmra.mxu0 %v436
    %v462 = vpop.f32.mrf.mxu0
    %v463 = vadd.f32 %v229, %v462
    %464 = vdwg.mxu0
    %467 = vrot.lane.b32.xlu0 %v185, 96
    %v468 = vpop.permute.xlu0 %467
    %469 = vrot.lane.b32.xlu0 %v188, 96
    %v470 = vpop.permute.xlu0 %469
    %v472 = vsel %vm236, %v224, 0
    %v475 = vsel %vm236, %v225, 0
    %v477 = vsel %vm236, %v468, 0
    %v479 = vsel %vm236, %v470, 0
    %481 = vmatpush.xpose.msra.mxu0 0.0
    %482 = vmatpush.xpose.msra.mxu0 0.0
    %483 = vmatpush.xpose.msra.mxu0 0.0
    %484 = vmatpush.xpose.msra.mxu0 0.0
    %485 = vmatpush.xpose.msra.mxu0 0.0
    %486 = vmatpush.xpose.msra.mxu0 0.0
    %487 = vmatpush.xpose.msra.mxu0 0.0
    %488 = vmatpush.xpose.msra.mxu0 0.0
    %489 = vmatpush.xpose.msra.mxu0 0.0
    %490 = vmatpush.xpose.msra.mxu0 0.0
    %491 = vmatpush.xpose.msra.mxu0 0.0
    %492 = vmatpush.xpose.msra.mxu0 0.0
    %493 = vmatpush.xpose.msra.mxu0 0.0
    %494 = vmatpush.xpose.msra.mxu0 0.0
    %495 = vmatpush.xpose.msra.mxu0 %v479
    %496 = vmatpush.xpose.msra.mxu0 %v477
    %497 = vmatmul.f32.gmra.mxu0 %v472
    %v498 = vpop.f32.mrf.mxu0
    %v499 = vadd.f32 %v228, %v498
    %500 = vmatmul.f32.gmra.mxu0 %v475
    %v501 = vpop.f32.mrf.mxu0
    %v502 = vadd.f32 %v229, %v501
    %503 = vdwg.mxu0
    %506 = vrot.lane.b32.xlu0 %v191, 96
    %v507 = vpop.permute.xlu0 %506
    %508 = vrot.lane.b32.xlu0 %v194, 96
    %v509 = vpop.permute.xlu0 %508
    %v511 = vsel %vm236, %v226, 0
    %v514 = vsel %vm236, %v227, 0
    %v516 = vsel %vm236, %v507, 0
    %v518 = vsel %vm236, %v509, 0
    %520 = vmatpush.xpose.msra.mxu0 0.0
    %521 = vmatpush.xpose.msra.mxu0 0.0
    %522 = vmatpush.xpose.msra.mxu0 0.0
    %523 = vmatpush.xpose.msra.mxu0 0.0
    %524 = vmatpush.xpose.msra.mxu0 0.0
    %525 = vmatpush.xpose.msra.mxu0 0.0
    %526 = vmatpush.xpose.msra.mxu0 0.0
    %527 = vmatpush.xpose.msra.mxu0 0.0
    %528 = vmatpush.xpose.msra.mxu0 0.0
    %529 = vmatpush.xpose.msra.mxu0 0.0
    %530 = vmatpush.xpose.msra.mxu0 0.0
    %531 = vmatpush.xpose.msra.mxu0 0.0
    %532 = vmatpush.xpose.msra.mxu0 0.0
    %533 = vmatpush.xpose.msra.mxu0 0.0
    %534 = vmatpush.xpose.msra.mxu0 %v518
    %535 = vmatpush.xpose.msra.mxu0 %v516
    %536 = vmatmul.f32.gmra.mxu0 %v511
    %v537 = vpop.f32.mrf.mxu0
    %v538 = vadd.f32 %v228, %v537
    %539 = vmatmul.f32.gmra.mxu0 %v514
    %v540 = vpop.f32.mrf.mxu0
    %v541 = vadd.f32 %v229, %v540
    %542 = vdwg.mxu0
    %v543 = vadd.f32 %v265, %v196
    %v544 = vadd.f32 %v268, %v197
    %v545 = vadd.f32 %v304, %v198
    %v546 = vadd.f32 %v307, %v199
    %v547 = vadd.f32 %v343, %v200
    %v548 = vadd.f32 %v346, %v201
    %v549 = vadd.f32 %v382, %v202
    %v550 = vadd.f32 %v385, %v203
    %v551 = vadd.f32 %v421, %v204
    %v552 = vadd.f32 %v424, %v205
    %v553 = vadd.f32 %v460, %v206
    %v554 = vadd.f32 %v463, %v207
    %v555 = vadd.f32 %v499, %v208
    %v556 = vadd.f32 %v502, %v209
    %v557 = vadd.f32 %v538, %v210
    %v558 = vadd.f32 %v541, %v211
    %vm559 = vcmask 130048
    %v560 = vsel %vm559, %v543, -inf
    %561 = vmax.xlane.f32.xlu0 %v560
    %v562 = vpop.xlane.xlu0 %561
    %v563 = vsel %vm559, %v544, -inf
    %564 = vmax.xlane.f32.xlu0 %v563
    %v565 = vpop.xlane.xlu0 %564
    %v566 = vsel %vm559, %v545, -inf
    %567 = vmax.xlane.f32.xlu0 %v566
    %v568 = vpop.xlane.xlu0 %567
    %v569 = vsel %vm559, %v546, -inf
    %570 = vmax.xlane.f32.xlu0 %v569
    %v571 = vpop.xlane.xlu0 %570
    %v572 = vsel %vm559, %v547, -inf
    %573 = vmax.xlane.f32.xlu0 %v572
    %v574 = vpop.xlane.xlu0 %573
    %v575 = vsel %vm559, %v548, -inf
    %576 = vmax.xlane.f32.xlu0 %v575
    %v577 = vpop.xlane.xlu0 %576
    %v578 = vsel %vm559, %v549, -inf
    %579 = vmax.xlane.f32.xlu0 %v578
    %v580 = vpop.xlane.xlu0 %579
    %v581 = vsel %vm559, %v550, -inf
    %582 = vmax.xlane.f32.xlu0 %v581
    %v583 = vpop.xlane.xlu0 %582
    %v584 = vsel %vm559, %v551, -inf
    %585 = vmax.xlane.f32.xlu0 %v584
    %v586 = vpop.xlane.xlu0 %585
    %v587 = vsel %vm559, %v552, -inf
    %588 = vmax.xlane.f32.xlu0 %v587
    %v589 = vpop.xlane.xlu0 %588
    %v590 = vsel %vm559, %v553, -inf
    %591 = vmax.xlane.f32.xlu0 %v590
    %v592 = vpop.xlane.xlu0 %591
    %v593 = vsel %vm559, %v554, -inf
    %594 = vmax.xlane.f32.xlu0 %v593
    %v595 = vpop.xlane.xlu0 %594
    %v596 = vsel %vm559, %v555, -inf
    %597 = vmax.xlane.f32.xlu0 %v596
    %v598 = vpop.xlane.xlu0 %597
    %v599 = vsel %vm559, %v556, -inf
    %600 = vmax.xlane.f32.xlu0 %v599
    %v601 = vpop.xlane.xlu0 %600
    %v602 = vsel %vm559, %v557, -inf
    %603 = vmax.xlane.f32.xlu0 %v602
    %v604 = vpop.xlane.xlu0 %603
    %v605 = vsel %vm559, %v558, -inf
    %606 = vmax.xlane.f32.xlu0 %v605
    %v607 = vpop.xlane.xlu0 %606
    %v608 = vsub.f32 %v543, %v562
    %v609 = vsub.f32 %v544, %v565
    %v610 = vsub.f32 %v545, %v568
    %v611 = vsub.f32 %v546, %v571
    %v612 = vsub.f32 %v547, %v574
    %v613 = vsub.f32 %v548, %v577
    %v614 = vsub.f32 %v549, %v580
    %v615 = vsub.f32 %v550, %v583
    %v616 = vsub.f32 %v551, %v586
    %v617 = vsub.f32 %v552, %v589
    %v618 = vsub.f32 %v553, %v592
    %v619 = vsub.f32 %v554, %v595
    %v620 = vsub.f32 %v555, %v598
    %v621 = vsub.f32 %v556, %v601
    %v622 = vsub.f32 %v557, %v604
    %v623 = vsub.f32 %v558, %v607
    %v624 = vmul.f32 %v608, 1.442695
    %v625 = vpow.pop %v624
    %v626 = vmul.f32 %v609, 1.442695
    %v627 = vpow.pop %v626
    %v628 = vmul.f32 %v610, 1.442695
    %v629 = vpow.pop %v628
    %v630 = vmul.f32 %v611, 1.442695
    %v631 = vpow.pop %v630
    %v632 = vmul.f32 %v612, 1.442695
    %v633 = vpow.pop %v632
    %v634 = vmul.f32 %v613, 1.442695
    %v635 = vpow.pop %v634
    %v636 = vmul.f32 %v614, 1.442695
    %v637 = vpow.pop %v636
    %v638 = vmul.f32 %v615, 1.442695
    %v639 = vpow.pop %v638
    %v640 = vmul.f32 %v616, 1.442695
    %v641 = vpow.pop %v640
    %v642 = vmul.f32 %v617, 1.442695
    %v643 = vpow.pop %v642
    %v644 = vmul.f32 %v618, 1.442695
    %v645 = vpow.pop %v644
    %v646 = vmul.f32 %v619, 1.442695
    %v647 = vpow.pop %v646
    %v648 = vmul.f32 %v620, 1.442695
    %v649 = vpow.pop %v648
    %v650 = vmul.f32 %v621, 1.442695
    %v651 = vpow.pop %v650
    %v652 = vmul.f32 %v622, 1.442695
    %v653 = vpow.pop %v652
    %v654 = vmul.f32 %v623, 1.442695
    %v655 = vpow.pop %v654
    %v656 = vsel %vm559, %v625, 0.0
    %657 = vadd.xlane.f32.xlu0 %v656
    %v658 = vpop.xlane.xlu0 %657
    %v659 = vsel %vm559, %v627, 0.0
    %660 = vadd.xlane.f32.xlu0 %v659
    %v661 = vpop.xlane.xlu0 %660
    %v662 = vsel %vm559, %v629, 0.0
    %663 = vadd.xlane.f32.xlu0 %v662
    %v664 = vpop.xlane.xlu0 %663
    %v665 = vsel %vm559, %v631, 0.0
    %666 = vadd.xlane.f32.xlu0 %v665
    %v667 = vpop.xlane.xlu0 %666
    %v668 = vsel %vm559, %v633, 0.0
    %669 = vadd.xlane.f32.xlu0 %v668
    %v670 = vpop.xlane.xlu0 %669
    %v671 = vsel %vm559, %v635, 0.0
    %672 = vadd.xlane.f32.xlu0 %v671
    %v673 = vpop.xlane.xlu0 %672
    %v674 = vsel %vm559, %v637, 0.0
    %675 = vadd.xlane.f32.xlu0 %v674
    %v676 = vpop.xlane.xlu0 %675
    %v677 = vsel %vm559, %v639, 0.0
    %678 = vadd.xlane.f32.xlu0 %v677
    %v679 = vpop.xlane.xlu0 %678
    %v680 = vsel %vm559, %v641, 0.0
    %681 = vadd.xlane.f32.xlu0 %v680
    %v682 = vpop.xlane.xlu0 %681
    %v683 = vsel %vm559, %v643, 0.0
    %684 = vadd.xlane.f32.xlu0 %v683
    %v685 = vpop.xlane.xlu0 %684
    %v686 = vsel %vm559, %v645, 0.0
    %687 = vadd.xlane.f32.xlu0 %v686
    %v688 = vpop.xlane.xlu0 %687
    %v689 = vsel %vm559, %v647, 0.0
    %690 = vadd.xlane.f32.xlu0 %v689
    %v691 = vpop.xlane.xlu0 %690
    %v692 = vsel %vm559, %v649, 0.0
    %693 = vadd.xlane.f32.xlu0 %v692
    %v694 = vpop.xlane.xlu0 %693
    %v695 = vsel %vm559, %v651, 0.0
    %696 = vadd.xlane.f32.xlu0 %v695
    %v697 = vpop.xlane.xlu0 %696
    %v698 = vsel %vm559, %v653, 0.0
    %699 = vadd.xlane.f32.xlu0 %v698
    %v700 = vpop.xlane.xlu0 %699
    %v701 = vsel %vm559, %v655, 0.0
    %702 = vadd.xlane.f32.xlu0 %v701
    %v703 = vpop.xlane.xlu0 %702
    %v704 = vrcp.pop %v658
    %v705 = vrcp.pop %v661
    %v706 = vrcp.pop %v664
    %v707 = vrcp.pop %v667
    %v708 = vrcp.pop %v670
    %v709 = vrcp.pop %v673
    %v710 = vrcp.pop %v676
    %v711 = vrcp.pop %v679
    %v712 = vrcp.pop %v682
    %v713 = vrcp.pop %v685
    %v714 = vrcp.pop %v688
    %v715 = vrcp.pop %v691
    %v716 = vrcp.pop %v694
    %v717 = vrcp.pop %v697
    %v718 = vrcp.pop %v700
    %v719 = vrcp.pop %v703
    %v720 = vmul.f32 %v625, %v704
    %v721 = vmul.f32 %v627, %v705
    %v722 = vmul.f32 %v629, %v706
    %v723 = vmul.f32 %v631, %v707
    %v724 = vmul.f32 %v633, %v708
    %v725 = vmul.f32 %v635, %v709
    %v726 = vmul.f32 %v637, %v710
    %v727 = vmul.f32 %v639, %v711
    %v728 = vmul.f32 %v641, %v712
    %v729 = vmul.f32 %v643, %v713
    %v730 = vmul.f32 %v645, %v714
    %v731 = vmul.f32 %v647, %v715
    %v732 = vmul.f32 %v649, %v716
    %v733 = vmul.f32 %v651, %v717
    %v734 = vmul.f32 %v653, %v718
    %v735 = vmul.f32 %v655, %v719
    %736 = vrot.lane.b32.xlu0 %v149, 64
    %v737 = vpop.permute.xlu0 %736
    %738 = vrot.lane.b32.xlu0 %v152, 64
    %v739 = vpop.permute.xlu0 %738
    %v743 = vsel %vm559, %v720, 0
    %v746 = vsel %vm559, %v721, 0
    %748 = vmatpush.msra.mxu0 0.0
    %749 = vmatpush.msra.mxu0 0.0
    %750 = vmatpush.msra.mxu0 0.0
    %751 = vmatpush.msra.mxu0 0.0
    %752 = vmatpush.msra.mxu0 0.0
    %753 = vmatpush.msra.mxu0 0.0
    %754 = vmatpush.msra.mxu0 0.0
    %755 = vmatpush.msra.mxu0 0.0
    %756 = vmatpush.msra.mxu0 0.0
    %757 = vmatpush.msra.mxu0 0.0
    %758 = vmatpush.msra.mxu0 0.0
    %759 = vmatpush.msra.mxu0 0.0
    %760 = vmatpush.msra.mxu0 0.0
    %761 = vmatpush.msra.mxu0 0.0
    %762 = vmatpush.msra.mxu0 %v739
    %763 = vmatpush.msra.mxu0 %v737
    %764 = vmatmul.f32.gmra.mxu0 %v743
    %v765 = vpop.f32.mrf.mxu0
    %v766 = vadd.f32 0.0, %v765
    %767 = vmatmul.f32.gmra.mxu0 %v746
    %v768 = vpop.f32.mrf.mxu0
    %v769 = vadd.f32 0.0, %v768
    %770 = vdwg.mxu0
    %771 = vrot.lane.b32.xlu0 %v155, 64
    %v772 = vpop.permute.xlu0 %771
    %773 = vrot.lane.b32.xlu0 %v158, 64
    %v774 = vpop.permute.xlu0 %773
    %v778 = vsel %vm559, %v722, 0
    %v781 = vsel %vm559, %v723, 0
    %783 = vmatpush.msra.mxu0 0.0
    %784 = vmatpush.msra.mxu0 0.0
    %785 = vmatpush.msra.mxu0 0.0
    %786 = vmatpush.msra.mxu0 0.0
    %787 = vmatpush.msra.mxu0 0.0
    %788 = vmatpush.msra.mxu0 0.0
    %789 = vmatpush.msra.mxu0 0.0
    %790 = vmatpush.msra.mxu0 0.0
    %791 = vmatpush.msra.mxu0 0.0
    %792 = vmatpush.msra.mxu0 0.0
    %793 = vmatpush.msra.mxu0 0.0
    %794 = vmatpush.msra.mxu0 0.0
    %795 = vmatpush.msra.mxu0 0.0
    %796 = vmatpush.msra.mxu0 0.0
    %797 = vmatpush.msra.mxu0 %v774
    %798 = vmatpush.msra.mxu0 %v772
    %799 = vmatmul.f32.gmra.mxu0 %v778
    %v800 = vpop.f32.mrf.mxu0
    %v801 = vadd.f32 0.0, %v800
    %802 = vmatmul.f32.gmra.mxu0 %v781
    %v803 = vpop.f32.mrf.mxu0
    %v804 = vadd.f32 0.0, %v803
    %805 = vdwg.mxu0
    %806 = vrot.lane.b32.xlu0 %v161, 64
    %v807 = vpop.permute.xlu0 %806
    %808 = vrot.lane.b32.xlu0 %v164, 64
    %v809 = vpop.permute.xlu0 %808
    %v813 = vsel %vm559, %v724, 0
    %v816 = vsel %vm559, %v725, 0
    %818 = vmatpush.msra.mxu0 0.0
    %819 = vmatpush.msra.mxu0 0.0
    %820 = vmatpush.msra.mxu0 0.0
    %821 = vmatpush.msra.mxu0 0.0
    %822 = vmatpush.msra.mxu0 0.0
    %823 = vmatpush.msra.mxu0 0.0
    %824 = vmatpush.msra.mxu0 0.0
    %825 = vmatpush.msra.mxu0 0.0
    %826 = vmatpush.msra.mxu0 0.0
    %827 = vmatpush.msra.mxu0 0.0
    %828 = vmatpush.msra.mxu0 0.0
    %829 = vmatpush.msra.mxu0 0.0
    %830 = vmatpush.msra.mxu0 0.0
    %831 = vmatpush.msra.mxu0 0.0
    %832 = vmatpush.msra.mxu0 %v809
    %833 = vmatpush.msra.mxu0 %v807
    %834 = vmatmul.f32.gmra.mxu0 %v813
    %v835 = vpop.f32.mrf.mxu0
    %v836 = vadd.f32 0.0, %v835
    %837 = vmatmul.f32.gmra.mxu0 %v816
    %v838 = vpop.f32.mrf.mxu0
    %v839 = vadd.f32 0.0, %v838
    %840 = vdwg.mxu0
    %841 = vrot.lane.b32.xlu0 %v167, 64
    %v842 = vpop.permute.xlu0 %841
    %843 = vrot.lane.b32.xlu0 %v170, 64
    %v844 = vpop.permute.xlu0 %843
    %v848 = vsel %vm559, %v726, 0
    %v851 = vsel %vm559, %v727, 0
    %853 = vmatpush.msra.mxu0 0.0
    %854 = vmatpush.msra.mxu0 0.0
    %855 = vmatpush.msra.mxu0 0.0
    %856 = vmatpush.msra.mxu0 0.0
    %857 = vmatpush.msra.mxu0 0.0
    %858 = vmatpush.msra.mxu0 0.0
    %859 = vmatpush.msra.mxu0 0.0
    %860 = vmatpush.msra.mxu0 0.0
    %861 = vmatpush.msra.mxu0 0.0
    %862 = vmatpush.msra.mxu0 0.0
    %863 = vmatpush.msra.mxu0 0.0
    %864 = vmatpush.msra.mxu0 0.0
    %865 = vmatpush.msra.mxu0 0.0
    %866 = vmatpush.msra.mxu0 0.0
    %867 = vmatpush.msra.mxu0 %v844
    %868 = vmatpush.msra.mxu0 %v842
    %869 = vmatmul.f32.gmra.mxu0 %v848
    %v870 = vpop.f32.mrf.mxu0
    %v871 = vadd.f32 0.0, %v870
    %872 = vmatmul.f32.gmra.mxu0 %v851
    %v873 = vpop.f32.mrf.mxu0
    %v874 = vadd.f32 0.0, %v873
    %875 = vdwg.mxu0
    %876 = vrot.lane.b32.xlu0 %v173, 64
    %v877 = vpop.permute.xlu0 %876
    %878 = vrot.lane.b32.xlu0 %v176, 64
    %v879 = vpop.permute.xlu0 %878
    %v883 = vsel %vm559, %v728, 0
    %v886 = vsel %vm559, %v729, 0
    %888 = vmatpush.msra.mxu0 0.0
    %889 = vmatpush.msra.mxu0 0.0
    %890 = vmatpush.msra.mxu0 0.0
    %891 = vmatpush.msra.mxu0 0.0
    %892 = vmatpush.msra.mxu0 0.0
    %893 = vmatpush.msra.mxu0 0.0
    %894 = vmatpush.msra.mxu0 0.0
    %895 = vmatpush.msra.mxu0 0.0
    %896 = vmatpush.msra.mxu0 0.0
    %897 = vmatpush.msra.mxu0 0.0
    %898 = vmatpush.msra.mxu0 0.0
    %899 = vmatpush.msra.mxu0 0.0
    %900 = vmatpush.msra.mxu0 0.0
    %901 = vmatpush.msra.mxu0 0.0
    %902 = vmatpush.msra.mxu0 %v879
    %903 = vmatpush.msra.mxu0 %v877
    %904 = vmatmul.f32.gmra.mxu0 %v883
    %v905 = vpop.f32.mrf.mxu0
    %v906 = vadd.f32 0.0, %v905
    %907 = vmatmul.f32.gmra.mxu0 %v886
    %v908 = vpop.f32.mrf.mxu0
    %v909 = vadd.f32 0.0, %v908
    %910 = vdwg.mxu0
    %911 = vrot.lane.b32.xlu0 %v179, 64
    %v912 = vpop.permute.xlu0 %911
    %913 = vrot.lane.b32.xlu0 %v182, 64
    %v914 = vpop.permute.xlu0 %913
    %v918 = vsel %vm559, %v730, 0
    %v921 = vsel %vm559, %v731, 0
    %923 = vmatpush.msra.mxu0 0.0
    %924 = vmatpush.msra.mxu0 0.0
    %925 = vmatpush.msra.mxu0 0.0
    %926 = vmatpush.msra.mxu0 0.0
    %927 = vmatpush.msra.mxu0 0.0
    %928 = vmatpush.msra.mxu0 0.0
    %929 = vmatpush.msra.mxu0 0.0
    %930 = vmatpush.msra.mxu0 0.0
    %931 = vmatpush.msra.mxu0 0.0
    %932 = vmatpush.msra.mxu0 0.0
    %933 = vmatpush.msra.mxu0 0.0
    %934 = vmatpush.msra.mxu0 0.0
    %935 = vmatpush.msra.mxu0 0.0
    %936 = vmatpush.msra.mxu0 0.0
    %937 = vmatpush.msra.mxu0 %v914
    %938 = vmatpush.msra.mxu0 %v912
    %939 = vmatmul.f32.gmra.mxu0 %v918
    %v940 = vpop.f32.mrf.mxu0
    %v941 = vadd.f32 0.0, %v940
    %942 = vmatmul.f32.gmra.mxu0 %v921
    %v943 = vpop.f32.mrf.mxu0
    %v944 = vadd.f32 0.0, %v943
    %945 = vdwg.mxu0
    %946 = vrot.lane.b32.xlu0 %v185, 64
    %v947 = vpop.permute.xlu0 %946
    %948 = vrot.lane.b32.xlu0 %v188, 64
    %v949 = vpop.permute.xlu0 %948
    %v953 = vsel %vm559, %v732, 0
    %v956 = vsel %vm559, %v733, 0
    %958 = vmatpush.msra.mxu0 0.0
    %959 = vmatpush.msra.mxu0 0.0
    %960 = vmatpush.msra.mxu0 0.0
    %961 = vmatpush.msra.mxu0 0.0
    %962 = vmatpush.msra.mxu0 0.0
    %963 = vmatpush.msra.mxu0 0.0
    %964 = vmatpush.msra.mxu0 0.0
    %965 = vmatpush.msra.mxu0 0.0
    %966 = vmatpush.msra.mxu0 0.0
    %967 = vmatpush.msra.mxu0 0.0
    %968 = vmatpush.msra.mxu0 0.0
    %969 = vmatpush.msra.mxu0 0.0
    %970 = vmatpush.msra.mxu0 0.0
    %971 = vmatpush.msra.mxu0 0.0
    %972 = vmatpush.msra.mxu0 %v949
    %973 = vmatpush.msra.mxu0 %v947
    %974 = vmatmul.f32.gmra.mxu0 %v953
    %v975 = vpop.f32.mrf.mxu0
    %v976 = vadd.f32 0.0, %v975
    %977 = vmatmul.f32.gmra.mxu0 %v956
    %v978 = vpop.f32.mrf.mxu0
    %v979 = vadd.f32 0.0, %v978
    %980 = vdwg.mxu0
    %981 = vrot.lane.b32.xlu0 %v191, 64
    %v982 = vpop.permute.xlu0 %981
    %983 = vrot.lane.b32.xlu0 %v194, 64
    %v984 = vpop.permute.xlu0 %983
    %v988 = vsel %vm559, %v734, 0
    %v991 = vsel %vm559, %v735, 0
    %993 = vmatpush.msra.mxu0 0.0
    %994 = vmatpush.msra.mxu0 0.0
    %995 = vmatpush.msra.mxu0 0.0
    %996 = vmatpush.msra.mxu0 0.0
    %997 = vmatpush.msra.mxu0 0.0
    %998 = vmatpush.msra.mxu0 0.0
    %999 = vmatpush.msra.mxu0 0.0
    %1000 = vmatpush.msra.mxu0 0.0
    %1001 = vmatpush.msra.mxu0 0.0
    %1002 = vmatpush.msra.mxu0 0.0
    %1003 = vmatpush.msra.mxu0 0.0
    %1004 = vmatpush.msra.mxu0 0.0
    %1005 = vmatpush.msra.mxu0 0.0
    %1006 = vmatpush.msra.mxu0 0.0
    %1007 = vmatpush.msra.mxu0 %v984
    %1008 = vmatpush.msra.mxu0 %v982
    %1009 = vmatmul.f32.gmra.mxu0 %v988
    %v1010 = vpop.f32.mrf.mxu0
    %v1011 = vadd.f32 0.0, %v1010
    %1012 = vmatmul.f32.gmra.mxu0 %v991
    %v1013 = vpop.f32.mrf.mxu0
    %v1014 = vadd.f32 0.0, %v1013
    %1015 = vdwg.mxu0
    %s1016 = scalar_lea.vmem [#allocation2], 16
    %v1017 = vld [vmem:[%s1016] sm:$0xff]
    %v1018 = vld [vmem:[%s1016 + $0x8] sm:$0xff]
    %1019 = vrot.lane.b32.xlu0 %v212, 120
    %v1020 = vpop.permute.xlu0 %1019
    %1021 = vrot.lane.b32.xlu0 %v213, 120
    %v1022 = vpop.permute.xlu0 %1021
    %1023 = vrot.lane.b32.xlu0 %v149, 88
    %v1024 = vpop.permute.xlu0 %1023
    %1025 = vrot.lane.b32.xlu0 %v152, 88
    %v1026 = vpop.permute.xlu0 %1025
    %v1027 = vsel %vm236, %v1020, 0
    %v1029 = vsel %vm236, %v1022, 0
    %v1031 = vsel %vm236, %v1024, 0
    %v1033 = vsel %vm236, %v1026, 0
    %1035 = vmatpush.xpose.msra.mxu0 0.0
    %1036 = vmatpush.xpose.msra.mxu0 0.0
    %1037 = vmatpush.xpose.msra.mxu0 0.0
    %1038 = vmatpush.xpose.msra.mxu0 0.0
    %1039 = vmatpush.xpose.msra.mxu0 0.0
    %1040 = vmatpush.xpose.msra.mxu0 0.0
    %1041 = vmatpush.xpose.msra.mxu0 0.0
    %1042 = vmatpush.xpose.msra.mxu0 0.0
    %1043 = vmatpush.xpose.msra.mxu0 0.0
    %1044 = vmatpush.xpose.msra.mxu0 0.0
    %1045 = vmatpush.xpose.msra.mxu0 0.0
    %1046 = vmatpush.xpose.msra.mxu0 0.0
    %1047 = vmatpush.xpose.msra.mxu0 0.0
    %1048 = vmatpush.xpose.msra.mxu0 0.0
    %1049 = vmatpush.xpose.msra.mxu0 %v1033
    %1050 = vmatpush.xpose.msra.mxu0 %v1031
    %1051 = vmatmul.f32.gmra.mxu0 %v1027
    %v1052 = vpop.f32.mrf.mxu0
    %v1053 = vadd.f32 %v1017, %v1052
    %1054 = vmatmul.f32.gmra.mxu0 %v1029
    %v1055 = vpop.f32.mrf.mxu0
    %v1056 = vadd.f32 %v1018, %v1055
    %1057 = vdwg.mxu0
    %1058 = vrot.lane.b32.xlu0 %v214, 120
    %v1059 = vpop.permute.xlu0 %1058
    %1060 = vrot.lane.b32.xlu0 %v215, 120
    %v1061 = vpop.permute.xlu0 %1060
    %1062 = vrot.lane.b32.xlu0 %v155, 88
    %v1063 = vpop.permute.xlu0 %1062
    %1064 = vrot.lane.b32.xlu0 %v158, 88
    %v1065 = vpop.permute.xlu0 %1064
    %v1066 = vsel %vm236, %v1059, 0
    %v1068 = vsel %vm236, %v1061, 0
    %v1070 = vsel %vm236, %v1063, 0
    %v1072 = vsel %vm236, %v1065, 0
    %1074 = vmatpush.xpose.msra.mxu0 0.0
    %1075 = vmatpush.xpose.msra.mxu0 0.0
    %1076 = vmatpush.xpose.msra.mxu0 0.0
    %1077 = vmatpush.xpose.msra.mxu0 0.0
    %1078 = vmatpush.xpose.msra.mxu0 0.0
    %1079 = vmatpush.xpose.msra.mxu0 0.0
    %1080 = vmatpush.xpose.msra.mxu0 0.0
    %1081 = vmatpush.xpose.msra.mxu0 0.0
    %1082 = vmatpush.xpose.msra.mxu0 0.0
    %1083 = vmatpush.xpose.msra.mxu0 0.0
    %1084 = vmatpush.xpose.msra.mxu0 0.0
    %1085 = vmatpush.xpose.msra.mxu0 0.0
    %1086 = vmatpush.xpose.msra.mxu0 0.0
    %1087 = vmatpush.xpose.msra.mxu0 0.0
    %1088 = vmatpush.xpose.msra.mxu0 %v1072
    %1089 = vmatpush.xpose.msra.mxu0 %v1070
    %1090 = vmatmul.f32.gmra.mxu0 %v1066
    %v1091 = vpop.f32.mrf.mxu0
    %v1092 = vadd.f32 %v1017, %v1091
    %1093 = vmatmul.f32.gmra.mxu0 %v1068
    %v1094 = vpop.f32.mrf.mxu0
    %v1095 = vadd.f32 %v1018, %v1094
    %1096 = vdwg.mxu0
    %1097 = vrot.lane.b32.xlu0 %v216, 120
    %v1098 = vpop.permute.xlu0 %1097
    %1099 = vrot.lane.b32.xlu0 %v217, 120
    %v1100 = vpop.permute.xlu0 %1099
    %1101 = vrot.lane.b32.xlu0 %v161, 88
    %v1102 = vpop.permute.xlu0 %1101
    %1103 = vrot.lane.b32.xlu0 %v164, 88
    %v1104 = vpop.permute.xlu0 %1103
    %v1105 = vsel %vm236, %v1098, 0
    %v1107 = vsel %vm236, %v1100, 0
    %v1109 = vsel %vm236, %v1102, 0
    %v1111 = vsel %vm236, %v1104, 0
    %1113 = vmatpush.xpose.msra.mxu0 0.0
    %1114 = vmatpush.xpose.msra.mxu0 0.0
    %1115 = vmatpush.xpose.msra.mxu0 0.0
    %1116 = vmatpush.xpose.msra.mxu0 0.0
    %1117 = vmatpush.xpose.msra.mxu0 0.0
    %1118 = vmatpush.xpose.msra.mxu0 0.0
    %1119 = vmatpush.xpose.msra.mxu0 0.0
    %1120 = vmatpush.xpose.msra.mxu0 0.0
    %1121 = vmatpush.xpose.msra.mxu0 0.0
    %1122 = vmatpush.xpose.msra.mxu0 0.0
    %1123 = vmatpush.xpose.msra.mxu0 0.0
    %1124 = vmatpush.xpose.msra.mxu0 0.0
    %1125 = vmatpush.xpose.msra.mxu0 0.0
    %1126 = vmatpush.xpose.msra.mxu0 0.0
    %1127 = vmatpush.xpose.msra.mxu0 %v1111
    %1128 = vmatpush.xpose.msra.mxu0 %v1109
    %1129 = vmatmul.f32.gmra.mxu0 %v1105
    %v1130 = vpop.f32.mrf.mxu0
    %v1131 = vadd.f32 %v1017, %v1130
    %1132 = vmatmul.f32.gmra.mxu0 %v1107
    %v1133 = vpop.f32.mrf.mxu0
    %v1134 = vadd.f32 %v1018, %v1133
    %1135 = vdwg.mxu0
    %1136 = vrot.lane.b32.xlu0 %v218, 120
    %v1137 = vpop.permute.xlu0 %1136
    %1138 = vrot.lane.b32.xlu0 %v219, 120
    %v1139 = vpop.permute.xlu0 %1138
    %1140 = vrot.lane.b32.xlu0 %v167, 88
    %v1141 = vpop.permute.xlu0 %1140
    %1142 = vrot.lane.b32.xlu0 %v170, 88
    %v1143 = vpop.permute.xlu0 %1142
    %v1144 = vsel %vm236, %v1137, 0
    %v1146 = vsel %vm236, %v1139, 0
    %v1148 = vsel %vm236, %v1141, 0
    %v1150 = vsel %vm236, %v1143, 0
    %1152 = vmatpush.xpose.msra.mxu0 0.0
    %1153 = vmatpush.xpose.msra.mxu0 0.0
    %1154 = vmatpush.xpose.msra.mxu0 0.0
    %1155 = vmatpush.xpose.msra.mxu0 0.0
    %1156 = vmatpush.xpose.msra.mxu0 0.0
    %1157 = vmatpush.xpose.msra.mxu0 0.0
    %1158 = vmatpush.xpose.msra.mxu0 0.0
    %1159 = vmatpush.xpose.msra.mxu0 0.0
    %1160 = vmatpush.xpose.msra.mxu0 0.0
    %1161 = vmatpush.xpose.msra.mxu0 0.0
    %1162 = vmatpush.xpose.msra.mxu0 0.0
    %1163 = vmatpush.xpose.msra.mxu0 0.0
    %1164 = vmatpush.xpose.msra.mxu0 0.0
    %1165 = vmatpush.xpose.msra.mxu0 0.0
    %1166 = vmatpush.xpose.msra.mxu0 %v1150
    %1167 = vmatpush.xpose.msra.mxu0 %v1148
    %1168 = vmatmul.f32.gmra.mxu0 %v1144
    %v1169 = vpop.f32.mrf.mxu0
    %v1170 = vadd.f32 %v1017, %v1169
    %1171 = vmatmul.f32.gmra.mxu0 %v1146
    %v1172 = vpop.f32.mrf.mxu0
    %v1173 = vadd.f32 %v1018, %v1172
    %1174 = vdwg.mxu0
    %1175 = vrot.lane.b32.xlu0 %v220, 120
    %v1176 = vpop.permute.xlu0 %1175
    %1177 = vrot.lane.b32.xlu0 %v221, 120
    %v1178 = vpop.permute.xlu0 %1177
    %1179 = vrot.lane.b32.xlu0 %v173, 88
    %v1180 = vpop.permute.xlu0 %1179
    %1181 = vrot.lane.b32.xlu0 %v176, 88
    %v1182 = vpop.permute.xlu0 %1181
    %v1183 = vsel %vm236, %v1176, 0
    %v1185 = vsel %vm236, %v1178, 0
    %v1187 = vsel %vm236, %v1180, 0
    %v1189 = vsel %vm236, %v1182, 0
    %1191 = vmatpush.xpose.msra.mxu0 0.0
    %1192 = vmatpush.xpose.msra.mxu0 0.0
    %1193 = vmatpush.xpose.msra.mxu0 0.0
    %1194 = vmatpush.xpose.msra.mxu0 0.0
    %1195 = vmatpush.xpose.msra.mxu0 0.0
    %1196 = vmatpush.xpose.msra.mxu0 0.0
    %1197 = vmatpush.xpose.msra.mxu0 0.0
    %1198 = vmatpush.xpose.msra.mxu0 0.0
    %1199 = vmatpush.xpose.msra.mxu0 0.0
    %1200 = vmatpush.xpose.msra.mxu0 0.0
    %1201 = vmatpush.xpose.msra.mxu0 0.0
    %1202 = vmatpush.xpose.msra.mxu0 0.0
    %1203 = vmatpush.xpose.msra.mxu0 0.0
    %1204 = vmatpush.xpose.msra.mxu0 0.0
    %1205 = vmatpush.xpose.msra.mxu0 %v1189
    %1206 = vmatpush.xpose.msra.mxu0 %v1187
    %1207 = vmatmul.f32.gmra.mxu0 %v1183
    %v1208 = vpop.f32.mrf.mxu0
    %v1209 = vadd.f32 %v1017, %v1208
    %1210 = vmatmul.f32.gmra.mxu0 %v1185
    %v1211 = vpop.f32.mrf.mxu0
    %v1212 = vadd.f32 %v1018, %v1211
    %1213 = vdwg.mxu0
    %1214 = vrot.lane.b32.xlu0 %v222, 120
    %v1215 = vpop.permute.xlu0 %1214
    %1216 = vrot.lane.b32.xlu0 %v223, 120
    %v1217 = vpop.permute.xlu0 %1216
    %1218 = vrot.lane.b32.xlu0 %v179, 88
    %v1219 = vpop.permute.xlu0 %1218
    %1220 = vrot.lane.b32.xlu0 %v182, 88
    %v1221 = vpop.permute.xlu0 %1220
    %v1222 = vsel %vm236, %v1215, 0
    %v1224 = vsel %vm236, %v1217, 0
    %v1226 = vsel %vm236, %v1219, 0
    %v1228 = vsel %vm236, %v1221, 0
    %1230 = vmatpush.xpose.msra.mxu0 0.0
    %1231 = vmatpush.xpose.msra.mxu0 0.0
    %1232 = vmatpush.xpose.msra.mxu0 0.0
    %1233 = vmatpush.xpose.msra.mxu0 0.0
    %1234 = vmatpush.xpose.msra.mxu0 0.0
    %1235 = vmatpush.xpose.msra.mxu0 0.0
    %1236 = vmatpush.xpose.msra.mxu0 0.0
    %1237 = vmatpush.xpose.msra.mxu0 0.0
    %1238 = vmatpush.xpose.msra.mxu0 0.0
    %1239 = vmatpush.xpose.msra.mxu0 0.0
    %1240 = vmatpush.xpose.msra.mxu0 0.0
    %1241 = vmatpush.xpose.msra.mxu0 0.0
    %1242 = vmatpush.xpose.msra.mxu0 0.0
    %1243 = vmatpush.xpose.msra.mxu0 0.0
    %1244 = vmatpush.xpose.msra.mxu0 %v1228
    %1245 = vmatpush.xpose.msra.mxu0 %v1226
    %1246 = vmatmul.f32.gmra.mxu0 %v1222
    %v1247 = vpop.f32.mrf.mxu0
    %v1248 = vadd.f32 %v1017, %v1247
    %1249 = vmatmul.f32.gmra.mxu0 %v1224
    %v1250 = vpop.f32.mrf.mxu0
    %v1251 = vadd.f32 %v1018, %v1250
    %1252 = vdwg.mxu0
    %1253 = vrot.lane.b32.xlu0 %v224, 120
    %v1254 = vpop.permute.xlu0 %1253
    %1255 = vrot.lane.b32.xlu0 %v225, 120
    %v1256 = vpop.permute.xlu0 %1255
    %1257 = vrot.lane.b32.xlu0 %v185, 88
    %v1258 = vpop.permute.xlu0 %1257
    %1259 = vrot.lane.b32.xlu0 %v188, 88
    %v1260 = vpop.permute.xlu0 %1259
    %v1261 = vsel %vm236, %v1254, 0
    %v1263 = vsel %vm236, %v1256, 0
    %v1265 = vsel %vm236, %v1258, 0
    %v1267 = vsel %vm236, %v1260, 0
    %1269 = vmatpush.xpose.msra.mxu0 0.0
    %1270 = vmatpush.xpose.msra.mxu0 0.0
    %1271 = vmatpush.xpose.msra.mxu0 0.0
    %1272 = vmatpush.xpose.msra.mxu0 0.0
    %1273 = vmatpush.xpose.msra.mxu0 0.0
    %1274 = vmatpush.xpose.msra.mxu0 0.0
    %1275 = vmatpush.xpose.msra.mxu0 0.0
    %1276 = vmatpush.xpose.msra.mxu0 0.0
    %1277 = vmatpush.xpose.msra.mxu0 0.0
    %1278 = vmatpush.xpose.msra.mxu0 0.0
    %1279 = vmatpush.xpose.msra.mxu0 0.0
    %1280 = vmatpush.xpose.msra.mxu0 0.0
    %1281 = vmatpush.xpose.msra.mxu0 0.0
    %1282 = vmatpush.xpose.msra.mxu0 0.0
    %1283 = vmatpush.xpose.msra.mxu0 %v1267
    %1284 = vmatpush.xpose.msra.mxu0 %v1265
    %1285 = vmatmul.f32.gmra.mxu0 %v1261
    %v1286 = vpop.f32.mrf.mxu0
    %v1287 = vadd.f32 %v1017, %v1286
    %1288 = vmatmul.f32.gmra.mxu0 %v1263
    %v1289 = vpop.f32.mrf.mxu0
    %v1290 = vadd.f32 %v1018, %v1289
    %1291 = vdwg.mxu0
    %1292 = vrot.lane.b32.xlu0 %v226, 120
    %v1293 = vpop.permute.xlu0 %1292
    %1294 = vrot.lane.b32.xlu0 %v227, 120
    %v1295 = vpop.permute.xlu0 %1294
    %1296 = vrot.lane.b32.xlu0 %v191, 88
    %v1297 = vpop.permute.xlu0 %1296
    %1298 = vrot.lane.b32.xlu0 %v194, 88
    %v1299 = vpop.permute.xlu0 %1298
    %v1300 = vsel %vm236, %v1293, 0
    %v1302 = vsel %vm236, %v1295, 0
    %v1304 = vsel %vm236, %v1297, 0
    %v1306 = vsel %vm236, %v1299, 0
    %1308 = vmatpush.xpose.msra.mxu0 0.0
    %1309 = vmatpush.xpose.msra.mxu0 0.0
    %1310 = vmatpush.xpose.msra.mxu0 0.0
    %1311 = vmatpush.xpose.msra.mxu0 0.0
    %1312 = vmatpush.xpose.msra.mxu0 0.0
    %1313 = vmatpush.xpose.msra.mxu0 0.0
    %1314 = vmatpush.xpose.msra.mxu0 0.0
    %1315 = vmatpush.xpose.msra.mxu0 0.0
    %1316 = vmatpush.xpose.msra.mxu0 0.0
    %1317 = vmatpush.xpose.msra.mxu0 0.0
    %1318 = vmatpush.xpose.msra.mxu0 0.0
    %1319 = vmatpush.xpose.msra.mxu0 0.0
    %1320 = vmatpush.xpose.msra.mxu0 0.0
    %1321 = vmatpush.xpose.msra.mxu0 0.0
    %1322 = vmatpush.xpose.msra.mxu0 %v1306
    %1323 = vmatpush.xpose.msra.mxu0 %v1304
    %1324 = vmatmul.f32.gmra.mxu0 %v1300
    %v1325 = vpop.f32.mrf.mxu0
    %v1326 = vadd.f32 %v1017, %v1325
    %1327 = vmatmul.f32.gmra.mxu0 %v1302
    %v1328 = vpop.f32.mrf.mxu0
    %v1329 = vadd.f32 %v1018, %v1328
    %1330 = vdwg.mxu0
    %v1331 = vadd.f32 %v1053, %v196
    %v1332 = vadd.f32 %v1056, %v197
    %v1333 = vadd.f32 %v1092, %v198
    %v1334 = vadd.f32 %v1095, %v199
    %v1335 = vadd.f32 %v1131, %v200
    %v1336 = vadd.f32 %v1134, %v201
    %v1337 = vadd.f32 %v1170, %v202
    %v1338 = vadd.f32 %v1173, %v203
    %v1339 = vadd.f32 %v1209, %v204
    %v1340 = vadd.f32 %v1212, %v205
    %v1341 = vadd.f32 %v1248, %v206
    %v1342 = vadd.f32 %v1251, %v207
    %v1343 = vadd.f32 %v1287, %v208
    %v1344 = vadd.f32 %v1290, %v209
    %v1345 = vadd.f32 %v1326, %v210
    %v1346 = vadd.f32 %v1329, %v211
    %v1347 = vsel %vm559, %v1331, -inf
    %1348 = vmax.xlane.f32.xlu0 %v1347
    %v1349 = vpop.xlane.xlu0 %1348
    %v1350 = vsel %vm559, %v1332, -inf
    %1351 = vmax.xlane.f32.xlu0 %v1350
    %v1352 = vpop.xlane.xlu0 %1351
    %v1353 = vsel %vm559, %v1333, -inf
    %1354 = vmax.xlane.f32.xlu0 %v1353
    %v1355 = vpop.xlane.xlu0 %1354
    %v1356 = vsel %vm559, %v1334, -inf
    %1357 = vmax.xlane.f32.xlu0 %v1356
    %v1358 = vpop.xlane.xlu0 %1357
    %v1359 = vsel %vm559, %v1335, -inf
    %1360 = vmax.xlane.f32.xlu0 %v1359
    %v1361 = vpop.xlane.xlu0 %1360
    %v1362 = vsel %vm559, %v1336, -inf
    %1363 = vmax.xlane.f32.xlu0 %v1362
    %v1364 = vpop.xlane.xlu0 %1363
    %v1365 = vsel %vm559, %v1337, -inf
    %1366 = vmax.xlane.f32.xlu0 %v1365
    %v1367 = vpop.xlane.xlu0 %1366
    %v1368 = vsel %vm559, %v1338, -inf
    %1369 = vmax.xlane.f32.xlu0 %v1368
    %v1370 = vpop.xlane.xlu0 %1369
    %v1371 = vsel %vm559, %v1339, -inf
    %1372 = vmax.xlane.f32.xlu0 %v1371
    %v1373 = vpop.xlane.xlu0 %1372
    %v1374 = vsel %vm559, %v1340, -inf
    %1375 = vmax.xlane.f32.xlu0 %v1374
    %v1376 = vpop.xlane.xlu0 %1375
    %v1377 = vsel %vm559, %v1341, -inf
    %1378 = vmax.xlane.f32.xlu0 %v1377
    %v1379 = vpop.xlane.xlu0 %1378
    %v1380 = vsel %vm559, %v1342, -inf
    %1381 = vmax.xlane.f32.xlu0 %v1380
    %v1382 = vpop.xlane.xlu0 %1381
    %v1383 = vsel %vm559, %v1343, -inf
    %1384 = vmax.xlane.f32.xlu0 %v1383
    %v1385 = vpop.xlane.xlu0 %1384
    %v1386 = vsel %vm559, %v1344, -inf
    %1387 = vmax.xlane.f32.xlu0 %v1386
    %v1388 = vpop.xlane.xlu0 %1387
    %v1389 = vsel %vm559, %v1345, -inf
    %1390 = vmax.xlane.f32.xlu0 %v1389
    %v1391 = vpop.xlane.xlu0 %1390
    %v1392 = vsel %vm559, %v1346, -inf
    %1393 = vmax.xlane.f32.xlu0 %v1392
    %v1394 = vpop.xlane.xlu0 %1393
    %v1395 = vsub.f32 %v1331, %v1349
    %v1396 = vsub.f32 %v1332, %v1352
    %v1397 = vsub.f32 %v1333, %v1355
    %v1398 = vsub.f32 %v1334, %v1358
    %v1399 = vsub.f32 %v1335, %v1361
    %v1400 = vsub.f32 %v1336, %v1364
    %v1401 = vsub.f32 %v1337, %v1367
    %v1402 = vsub.f32 %v1338, %v1370
    %v1403 = vsub.f32 %v1339, %v1373
    %v1404 = vsub.f32 %v1340, %v1376
    %v1405 = vsub.f32 %v1341, %v1379
    %v1406 = vsub.f32 %v1342, %v1382
    %v1407 = vsub.f32 %v1343, %v1385
    %v1408 = vsub.f32 %v1344, %v1388
    %v1409 = vsub.f32 %v1345, %v1391
    %v1410 = vsub.f32 %v1346, %v1394
    %v1411 = vmul.f32 %v1395, 1.442695
    %v1412 = vpow.pop %v1411
    %v1413 = vmul.f32 %v1396, 1.442695
    %v1414 = vpow.pop %v1413
    %v1415 = vmul.f32 %v1397, 1.442695
    %v1416 = vpow.pop %v1415
    %v1417 = vmul.f32 %v1398, 1.442695
    %v1418 = vpow.pop %v1417
    %v1419 = vmul.f32 %v1399, 1.442695
    %v1420 = vpow.pop %v1419
    %v1421 = vmul.f32 %v1400, 1.442695
    %v1422 = vpow.pop %v1421
    %v1423 = vmul.f32 %v1401, 1.442695
    %v1424 = vpow.pop %v1423
    %v1425 = vmul.f32 %v1402, 1.442695
    %v1426 = vpow.pop %v1425
    %v1427 = vmul.f32 %v1403, 1.442695
    %v1428 = vpow.pop %v1427
    %v1429 = vmul.f32 %v1404, 1.442695
    %v1430 = vpow.pop %v1429
    %v1431 = vmul.f32 %v1405, 1.442695
    %v1432 = vpow.pop %v1431
    %v1433 = vmul.f32 %v1406, 1.442695
    %v1434 = vpow.pop %v1433
    %v1435 = vmul.f32 %v1407, 1.442695
    %v1436 = vpow.pop %v1435
    %v1437 = vmul.f32 %v1408, 1.442695
    %v1438 = vpow.pop %v1437
    %v1439 = vmul.f32 %v1409, 1.442695
    %v1440 = vpow.pop %v1439
    %v1441 = vmul.f32 %v1410, 1.442695
    %v1442 = vpow.pop %v1441
    %v1443 = vsel %vm559, %v1412, 0.0
    %1444 = vadd.xlane.f32.xlu0 %v1443
    %v1445 = vpop.xlane.xlu0 %1444
    %v1446 = vsel %vm559, %v1414, 0.0
    %1447 = vadd.xlane.f32.xlu0 %v1446
    %v1448 = vpop.xlane.xlu0 %1447
    %v1449 = vsel %vm559, %v1416, 0.0
    %1450 = vadd.xlane.f32.xlu0 %v1449
    %v1451 = vpop.xlane.xlu0 %1450
    %v1452 = vsel %vm559, %v1418, 0.0
    %1453 = vadd.xlane.f32.xlu0 %v1452
    %v1454 = vpop.xlane.xlu0 %1453
    %v1455 = vsel %vm559, %v1420, 0.0
    %1456 = vadd.xlane.f32.xlu0 %v1455
    %v1457 = vpop.xlane.xlu0 %1456
    %v1458 = vsel %vm559, %v1422, 0.0
    %1459 = vadd.xlane.f32.xlu0 %v1458
    %v1460 = vpop.xlane.xlu0 %1459
    %v1461 = vsel %vm559, %v1424, 0.0
    %1462 = vadd.xlane.f32.xlu0 %v1461
    %v1463 = vpop.xlane.xlu0 %1462
    %v1464 = vsel %vm559, %v1426, 0.0
    %1465 = vadd.xlane.f32.xlu0 %v1464
    %v1466 = vpop.xlane.xlu0 %1465
    %v1467 = vsel %vm559, %v1428, 0.0
    %1468 = vadd.xlane.f32.xlu0 %v1467
    %v1469 = vpop.xlane.xlu0 %1468
    %v1470 = vsel %vm559, %v1430, 0.0
    %1471 = vadd.xlane.f32.xlu0 %v1470
    %v1472 = vpop.xlane.xlu0 %1471
    %v1473 = vsel %vm559, %v1432, 0.0
    %1474 = vadd.xlane.f32.xlu0 %v1473
    %v1475 = vpop.xlane.xlu0 %1474
    %v1476 = vsel %vm559, %v1434, 0.0
    %1477 = vadd.xlane.f32.xlu0 %v1476
    %v1478 = vpop.xlane.xlu0 %1477
    %v1479 = vsel %vm559, %v1436, 0.0
    %1480 = vadd.xlane.f32.xlu0 %v1479
    %v1481 = vpop.xlane.xlu0 %1480
    %v1482 = vsel %vm559, %v1438, 0.0
    %1483 = vadd.xlane.f32.xlu0 %v1482
    %v1484 = vpop.xlane.xlu0 %1483
    %v1485 = vsel %vm559, %v1440, 0.0
    %1486 = vadd.xlane.f32.xlu0 %v1485
    %v1487 = vpop.xlane.xlu0 %1486
    %v1488 = vsel %vm559, %v1442, 0.0
    %1489 = vadd.xlane.f32.xlu0 %v1488
    %v1490 = vpop.xlane.xlu0 %1489
    %v1491 = vrcp.pop %v1445
    %v1492 = vrcp.pop %v1448
    %v1493 = vrcp.pop %v1451
    %v1494 = vrcp.pop %v1454
    %v1495 = vrcp.pop %v1457
    %v1496 = vrcp.pop %v1460
    %v1497 = vrcp.pop %v1463
    %v1498 = vrcp.pop %v1466
    %v1499 = vrcp.pop %v1469
    %v1500 = vrcp.pop %v1472
    %v1501 = vrcp.pop %v1475
    %v1502 = vrcp.pop %v1478
    %v1503 = vrcp.pop %v1481
    %v1504 = vrcp.pop %v1484
    %v1505 = vrcp.pop %v1487
    %v1506 = vrcp.pop %v1490
    %v1507 = vmul.f32 %v1412, %v1491
    %v1508 = vmul.f32 %v1414, %v1492
    %v1509 = vmul.f32 %v1416, %v1493
    %v1510 = vmul.f32 %v1418, %v1494
    %v1511 = vmul.f32 %v1420, %v1495
    %v1512 = vmul.f32 %v1422, %v1496
    %v1513 = vmul.f32 %v1424, %v1497
    %v1514 = vmul.f32 %v1426, %v1498
    %v1515 = vmul.f32 %v1428, %v1499
    %v1516 = vmul.f32 %v1430, %v1500
    %v1517 = vmul.f32 %v1432, %v1501
    %v1518 = vmul.f32 %v1434, %v1502
    %v1519 = vmul.f32 %v1436, %v1503
    %v1520 = vmul.f32 %v1438, %v1504
    %v1521 = vmul.f32 %v1440, %v1505
    %v1522 = vmul.f32 %v1442, %v1506
    %1523 = vrot.lane.b32.xlu0 %v149, 56
    %v1524 = vpop.permute.xlu0 %1523
    %1525 = vrot.lane.b32.xlu0 %v152, 56
    %v1526 = vpop.permute.xlu0 %1525
    %v1530 = vsel %vm559, %v1507, 0
    %v1533 = vsel %vm559, %v1508, 0
    %1535 = vmatpush.msra.mxu0 0.0
    %1536 = vmatpush.msra.mxu0 0.0
    %1537 = vmatpush.msra.mxu0 0.0
    %1538 = vmatpush.msra.mxu0 0.0
    %1539 = vmatpush.msra.mxu0 0.0
    %1540 = vmatpush.msra.mxu0 0.0
    %1541 = vmatpush.msra.mxu0 0.0
    %1542 = vmatpush.msra.mxu0 0.0
    %1543 = vmatpush.msra.mxu0 0.0
    %1544 = vmatpush.msra.mxu0 0.0
    %1545 = vmatpush.msra.mxu0 0.0
    %1546 = vmatpush.msra.mxu0 0.0
    %1547 = vmatpush.msra.mxu0 0.0
    %1548 = vmatpush.msra.mxu0 0.0
    %1549 = vmatpush.msra.mxu0 %v1526
    %1550 = vmatpush.msra.mxu0 %v1524
    %1551 = vmatmul.f32.gmra.mxu0 %v1530
    %v1552 = vpop.f32.mrf.mxu0
    %v1553 = vadd.f32 0.0, %v1552
    %1554 = vmatmul.f32.gmra.mxu0 %v1533
    %v1555 = vpop.f32.mrf.mxu0
    %v1556 = vadd.f32 0.0, %v1555
    %1557 = vdwg.mxu0
    %1558 = vrot.lane.b32.xlu0 %v155, 56
    %v1559 = vpop.permute.xlu0 %1558
    %1560 = vrot.lane.b32.xlu0 %v158, 56
    %v1561 = vpop.permute.xlu0 %1560
    %v1565 = vsel %vm559, %v1509, 0
    %v1568 = vsel %vm559, %v1510, 0
    %1570 = vmatpush.msra.mxu0 0.0
    %1571 = vmatpush.msra.mxu0 0.0
    %1572 = vmatpush.msra.mxu0 0.0
    %1573 = vmatpush.msra.mxu0 0.0
    %1574 = vmatpush.msra.mxu0 0.0
    %1575 = vmatpush.msra.mxu0 0.0
    %1576 = vmatpush.msra.mxu0 0.0
    %1577 = vmatpush.msra.mxu0 0.0
    %1578 = vmatpush.msra.mxu0 0.0
    %1579 = vmatpush.msra.mxu0 0.0
    %1580 = vmatpush.msra.mxu0 0.0
    %1581 = vmatpush.msra.mxu0 0.0
    %1582 = vmatpush.msra.mxu0 0.0
    %1583 = vmatpush.msra.mxu0 0.0
    %1584 = vmatpush.msra.mxu0 %v1561
    %1585 = vmatpush.msra.mxu0 %v1559
    %1586 = vmatmul.f32.gmra.mxu0 %v1565
    %v1587 = vpop.f32.mrf.mxu0
    %v1588 = vadd.f32 0.0, %v1587
    %1589 = vmatmul.f32.gmra.mxu0 %v1568
    %v1590 = vpop.f32.mrf.mxu0
    %v1591 = vadd.f32 0.0, %v1590
    %1592 = vdwg.mxu0
    %1593 = vrot.lane.b32.xlu0 %v161, 56
    %v1594 = vpop.permute.xlu0 %1593
    %1595 = vrot.lane.b32.xlu0 %v164, 56
    %v1596 = vpop.permute.xlu0 %1595
    %v1600 = vsel %vm559, %v1511, 0
    %v1603 = vsel %vm559, %v1512, 0
    %1605 = vmatpush.msra.mxu0 0.0
    %1606 = vmatpush.msra.mxu0 0.0
    %1607 = vmatpush.msra.mxu0 0.0
    %1608 = vmatpush.msra.mxu0 0.0
    %1609 = vmatpush.msra.mxu0 0.0
    %1610 = vmatpush.msra.mxu0 0.0
    %1611 = vmatpush.msra.mxu0 0.0
    %1612 = vmatpush.msra.mxu0 0.0
    %1613 = vmatpush.msra.mxu0 0.0
    %1614 = vmatpush.msra.mxu0 0.0
    %1615 = vmatpush.msra.mxu0 0.0
    %1616 = vmatpush.msra.mxu0 0.0
    %1617 = vmatpush.msra.mxu0 0.0
    %1618 = vmatpush.msra.mxu0 0.0
    %1619 = vmatpush.msra.mxu0 %v1596
    %1620 = vmatpush.msra.mxu0 %v1594
    %1621 = vmatmul.f32.gmra.mxu0 %v1600
    %v1622 = vpop.f32.mrf.mxu0
    %v1623 = vadd.f32 0.0, %v1622
    %1624 = vmatmul.f32.gmra.mxu0 %v1603
    %v1625 = vpop.f32.mrf.mxu0
    %v1626 = vadd.f32 0.0, %v1625
    %1627 = vdwg.mxu0
    %1628 = vrot.lane.b32.xlu0 %v167, 56
    %v1629 = vpop.permute.xlu0 %1628
    %1630 = vrot.lane.b32.xlu0 %v170, 56
    %v1631 = vpop.permute.xlu0 %1630
    %v1635 = vsel %vm559, %v1513, 0
    %v1638 = vsel %vm559, %v1514, 0
    %1640 = vmatpush.msra.mxu0 0.0
    %1641 = vmatpush.msra.mxu0 0.0
    %1642 = vmatpush.msra.mxu0 0.0
    %1643 = vmatpush.msra.mxu0 0.0
    %1644 = vmatpush.msra.mxu0 0.0
    %1645 = vmatpush.msra.mxu0 0.0
    %1646 = vmatpush.msra.mxu0 0.0
    %1647 = vmatpush.msra.mxu0 0.0
    %1648 = vmatpush.msra.mxu0 0.0
    %1649 = vmatpush.msra.mxu0 0.0
    %1650 = vmatpush.msra.mxu0 0.0
    %1651 = vmatpush.msra.mxu0 0.0
    %1652 = vmatpush.msra.mxu0 0.0
    %1653 = vmatpush.msra.mxu0 0.0
    %1654 = vmatpush.msra.mxu0 %v1631
    %1655 = vmatpush.msra.mxu0 %v1629
    %1656 = vmatmul.f32.gmra.mxu0 %v1635
    %v1657 = vpop.f32.mrf.mxu0
    %v1658 = vadd.f32 0.0, %v1657
    %1659 = vmatmul.f32.gmra.mxu0 %v1638
    %v1660 = vpop.f32.mrf.mxu0
    %v1661 = vadd.f32 0.0, %v1660
    %1662 = vdwg.mxu0
    %1663 = vrot.lane.b32.xlu0 %v173, 56
    %v1664 = vpop.permute.xlu0 %1663
    %1665 = vrot.lane.b32.xlu0 %v176, 56
    %v1666 = vpop.permute.xlu0 %1665
    %v1670 = vsel %vm559, %v1515, 0
    %v1673 = vsel %vm559, %v1516, 0
    %1675 = vmatpush.msra.mxu0 0.0
    %1676 = vmatpush.msra.mxu0 0.0
    %1677 = vmatpush.msra.mxu0 0.0
    %1678 = vmatpush.msra.mxu0 0.0
    %1679 = vmatpush.msra.mxu0 0.0
    %1680 = vmatpush.msra.mxu0 0.0
    %1681 = vmatpush.msra.mxu0 0.0
    %1682 = vmatpush.msra.mxu0 0.0
    %1683 = vmatpush.msra.mxu0 0.0
    %1684 = vmatpush.msra.mxu0 0.0
    %1685 = vmatpush.msra.mxu0 0.0
    %1686 = vmatpush.msra.mxu0 0.0
    %1687 = vmatpush.msra.mxu0 0.0
    %1688 = vmatpush.msra.mxu0 0.0
    %1689 = vmatpush.msra.mxu0 %v1666
    %1690 = vmatpush.msra.mxu0 %v1664
    %1691 = vmatmul.f32.gmra.mxu0 %v1670
    %v1692 = vpop.f32.mrf.mxu0
    %v1693 = vadd.f32 0.0, %v1692
    %1694 = vmatmul.f32.gmra.mxu0 %v1673
    %v1695 = vpop.f32.mrf.mxu0
    %v1696 = vadd.f32 0.0, %v1695
    %1697 = vdwg.mxu0
    %1698 = vrot.lane.b32.xlu0 %v179, 56
    %v1699 = vpop.permute.xlu0 %1698
    %1700 = vrot.lane.b32.xlu0 %v182, 56
    %v1701 = vpop.permute.xlu0 %1700
    %v1705 = vsel %vm559, %v1517, 0
    %v1708 = vsel %vm559, %v1518, 0
    %1710 = vmatpush.msra.mxu0 0.0
    %1711 = vmatpush.msra.mxu0 0.0
    %1712 = vmatpush.msra.mxu0 0.0
    %1713 = vmatpush.msra.mxu0 0.0
    %1714 = vmatpush.msra.mxu0 0.0
    %1715 = vmatpush.msra.mxu0 0.0
    %1716 = vmatpush.msra.mxu0 0.0
    %1717 = vmatpush.msra.mxu0 0.0
    %1718 = vmatpush.msra.mxu0 0.0
    %1719 = vmatpush.msra.mxu0 0.0
    %1720 = vmatpush.msra.mxu0 0.0
    %1721 = vmatpush.msra.mxu0 0.0
    %1722 = vmatpush.msra.mxu0 0.0
    %1723 = vmatpush.msra.mxu0 0.0
    %1724 = vmatpush.msra.mxu0 %v1701
    %1725 = vmatpush.msra.mxu0 %v1699
    %1726 = vmatmul.f32.gmra.mxu0 %v1705
    %v1727 = vpop.f32.mrf.mxu0
    %v1728 = vadd.f32 0.0, %v1727
    %1729 = vmatmul.f32.gmra.mxu0 %v1708
    %v1730 = vpop.f32.mrf.mxu0
    %v1731 = vadd.f32 0.0, %v1730
    %1732 = vdwg.mxu0
    %1733 = vrot.lane.b32.xlu0 %v185, 56
    %v1734 = vpop.permute.xlu0 %1733
    %1735 = vrot.lane.b32.xlu0 %v188, 56
    %v1736 = vpop.permute.xlu0 %1735
    %v1740 = vsel %vm559, %v1519, 0
    %v1743 = vsel %vm559, %v1520, 0
    %1745 = vmatpush.msra.mxu0 0.0
    %1746 = vmatpush.msra.mxu0 0.0
    %1747 = vmatpush.msra.mxu0 0.0
    %1748 = vmatpush.msra.mxu0 0.0
    %1749 = vmatpush.msra.mxu0 0.0
    %1750 = vmatpush.msra.mxu0 0.0
    %1751 = vmatpush.msra.mxu0 0.0
    %1752 = vmatpush.msra.mxu0 0.0
    %1753 = vmatpush.msra.mxu0 0.0
    %1754 = vmatpush.msra.mxu0 0.0
    %1755 = vmatpush.msra.mxu0 0.0
    %1756 = vmatpush.msra.mxu0 0.0
    %1757 = vmatpush.msra.mxu0 0.0
    %1758 = vmatpush.msra.mxu0 0.0
    %1759 = vmatpush.msra.mxu0 %v1736
    %1760 = vmatpush.msra.mxu0 %v1734
    %1761 = vmatmul.f32.gmra.mxu0 %v1740
    %v1762 = vpop.f32.mrf.mxu0
    %v1763 = vadd.f32 0.0, %v1762
    %1764 = vmatmul.f32.gmra.mxu0 %v1743
    %v1765 = vpop.f32.mrf.mxu0
    %v1766 = vadd.f32 0.0, %v1765
    %1767 = vdwg.mxu0
    %1768 = vrot.lane.b32.xlu0 %v191, 56
    %v1769 = vpop.permute.xlu0 %1768
    %1770 = vrot.lane.b32.xlu0 %v194, 56
    %v1771 = vpop.permute.xlu0 %1770
    %v1775 = vsel %vm559, %v1521, 0
    %v1778 = vsel %vm559, %v1522, 0
    %1780 = vmatpush.msra.mxu0 0.0
    %1781 = vmatpush.msra.mxu0 0.0
    %1782 = vmatpush.msra.mxu0 0.0
    %1783 = vmatpush.msra.mxu0 0.0
    %1784 = vmatpush.msra.mxu0 0.0
    %1785 = vmatpush.msra.mxu0 0.0
    %1786 = vmatpush.msra.mxu0 0.0
    %1787 = vmatpush.msra.mxu0 0.0
    %1788 = vmatpush.msra.mxu0 0.0
    %1789 = vmatpush.msra.mxu0 0.0
    %1790 = vmatpush.msra.mxu0 0.0
    %1791 = vmatpush.msra.mxu0 0.0
    %1792 = vmatpush.msra.mxu0 0.0
    %1793 = vmatpush.msra.mxu0 0.0
    %1794 = vmatpush.msra.mxu0 %v1771
    %1795 = vmatpush.msra.mxu0 %v1769
    %1796 = vmatmul.f32.gmra.mxu0 %v1775
    %v1797 = vpop.f32.mrf.mxu0
    %v1798 = vadd.f32 0.0, %v1797
    %1799 = vmatmul.f32.gmra.mxu0 %v1778
    %v1800 = vpop.f32.mrf.mxu0
    %v1801 = vadd.f32 0.0, %v1800
    %1802 = vdwg.mxu0
    %s1803 = scalar_lea.vmem [#allocation2], 32
    %v1804 = vld [vmem:[%s1803] sm:$0xff]
    %v1805 = vld [vmem:[%s1803 + $0x8] sm:$0xff]
    %1806 = vrot.lane.b32.xlu0 %v212, 112
    %v1807 = vpop.permute.xlu0 %1806
    %1808 = vrot.lane.b32.xlu0 %v213, 112
    %v1809 = vpop.permute.xlu0 %1808
    %1810 = vrot.lane.b32.xlu0 %v149, 80
    %v1811 = vpop.permute.xlu0 %1810
    %1812 = vrot.lane.b32.xlu0 %v152, 80
    %v1813 = vpop.permute.xlu0 %1812
    %v1814 = vsel %vm236, %v1807, 0
    %v1816 = vsel %vm236, %v1809, 0
    %v1818 = vsel %vm236, %v1811, 0
    %v1820 = vsel %vm236, %v1813, 0
    %1822 = vmatpush.xpose.msra.mxu0 0.0
    %1823 = vmatpush.xpose.msra.mxu0 0.0
    %1824 = vmatpush.xpose.msra.mxu0 0.0
    %1825 = vmatpush.xpose.msra.mxu0 0.0
    %1826 = vmatpush.xpose.msra.mxu0 0.0
    %1827 = vmatpush.xpose.msra.mxu0 0.0
    %1828 = vmatpush.xpose.msra.mxu0 0.0
    %1829 = vmatpush.xpose.msra.mxu0 0.0
    %1830 = vmatpush.xpose.msra.mxu0 0.0
    %1831 = vmatpush.xpose.msra.mxu0 0.0
    %1832 = vmatpush.xpose.msra.mxu0 0.0
    %1833 = vmatpush.xpose.msra.mxu0 0.0
    %1834 = vmatpush.xpose.msra.mxu0 0.0
    %1835 = vmatpush.xpose.msra.mxu0 0.0
    %1836 = vmatpush.xpose.msra.mxu0 %v1820
    %1837 = vmatpush.xpose.msra.mxu0 %v1818
    %1838 = vmatmul.f32.gmra.mxu0 %v1814
    %v1839 = vpop.f32.mrf.mxu0
    %v1840 = vadd.f32 %v1804, %v1839
    %1841 = vmatmul.f32.gmra.mxu0 %v1816
    %v1842 = vpop.f32.mrf.mxu0
    %v1843 = vadd.f32 %v1805, %v1842
    %1844 = vdwg.mxu0
    %1845 = vrot.lane.b32.xlu0 %v214, 112
    %v1846 = vpop.permute.xlu0 %1845
    %1847 = vrot.lane.b32.xlu0 %v215, 112
    %v1848 = vpop.permute.xlu0 %1847
    %1849 = vrot.lane.b32.xlu0 %v155, 80
    %v1850 = vpop.permute.xlu0 %1849
    %1851 = vrot.lane.b32.xlu0 %v158, 80
    %v1852 = vpop.permute.xlu0 %1851
    %v1853 = vsel %vm236, %v1846, 0
    %v1855 = vsel %vm236, %v1848, 0
    %v1857 = vsel %vm236, %v1850, 0
    %v1859 = vsel %vm236, %v1852, 0
    %1861 = vmatpush.xpose.msra.mxu0 0.0
    %1862 = vmatpush.xpose.msra.mxu0 0.0
    %1863 = vmatpush.xpose.msra.mxu0 0.0
    %1864 = vmatpush.xpose.msra.mxu0 0.0
    %1865 = vmatpush.xpose.msra.mxu0 0.0
    %1866 = vmatpush.xpose.msra.mxu0 0.0
    %1867 = vmatpush.xpose.msra.mxu0 0.0
    %1868 = vmatpush.xpose.msra.mxu0 0.0
    %1869 = vmatpush.xpose.msra.mxu0 0.0
    %1870 = vmatpush.xpose.msra.mxu0 0.0
    %1871 = vmatpush.xpose.msra.mxu0 0.0
    %1872 = vmatpush.xpose.msra.mxu0 0.0
    %1873 = vmatpush.xpose.msra.mxu0 0.0
    %1874 = vmatpush.xpose.msra.mxu0 0.0
    %1875 = vmatpush.xpose.msra.mxu0 %v1859
    %1876 = vmatpush.xpose.msra.mxu0 %v1857
    %1877 = vmatmul.f32.gmra.mxu0 %v1853
    %v1878 = vpop.f32.mrf.mxu0
    %v1879 = vadd.f32 %v1804, %v1878
    %1880 = vmatmul.f32.gmra.mxu0 %v1855
    %v1881 = vpop.f32.mrf.mxu0
    %v1882 = vadd.f32 %v1805, %v1881
    %1883 = vdwg.mxu0
    %1884 = vrot.lane.b32.xlu0 %v216, 112
    %v1885 = vpop.permute.xlu0 %1884
    %1886 = vrot.lane.b32.xlu0 %v217, 112
    %v1887 = vpop.permute.xlu0 %1886
    %1888 = vrot.lane.b32.xlu0 %v161, 80
    %v1889 = vpop.permute.xlu0 %1888
    %1890 = vrot.lane.b32.xlu0 %v164, 80
    %v1891 = vpop.permute.xlu0 %1890
    %v1892 = vsel %vm236, %v1885, 0
    %v1894 = vsel %vm236, %v1887, 0
    %v1896 = vsel %vm236, %v1889, 0
    %v1898 = vsel %vm236, %v1891, 0
    %1900 = vmatpush.xpose.msra.mxu0 0.0
    %1901 = vmatpush.xpose.msra.mxu0 0.0
    %1902 = vmatpush.xpose.msra.mxu0 0.0
    %1903 = vmatpush.xpose.msra.mxu0 0.0
    %1904 = vmatpush.xpose.msra.mxu0 0.0
    %1905 = vmatpush.xpose.msra.mxu0 0.0
    %1906 = vmatpush.xpose.msra.mxu0 0.0
    %1907 = vmatpush.xpose.msra.mxu0 0.0
    %1908 = vmatpush.xpose.msra.mxu0 0.0
    %1909 = vmatpush.xpose.msra.mxu0 0.0
    %1910 = vmatpush.xpose.msra.mxu0 0.0
    %1911 = vmatpush.xpose.msra.mxu0 0.0
    %1912 = vmatpush.xpose.msra.mxu0 0.0
    %1913 = vmatpush.xpose.msra.mxu0 0.0
    %1914 = vmatpush.xpose.msra.mxu0 %v1898
    %1915 = vmatpush.xpose.msra.mxu0 %v1896
    %1916 = vmatmul.f32.gmra.mxu0 %v1892
    %v1917 = vpop.f32.mrf.mxu0
    %v1918 = vadd.f32 %v1804, %v1917
    %1919 = vmatmul.f32.gmra.mxu0 %v1894
    %v1920 = vpop.f32.mrf.mxu0
    %v1921 = vadd.f32 %v1805, %v1920
    %1922 = vdwg.mxu0
    %1923 = vrot.lane.b32.xlu0 %v218, 112
    %v1924 = vpop.permute.xlu0 %1923
    %1925 = vrot.lane.b32.xlu0 %v219, 112
    %v1926 = vpop.permute.xlu0 %1925
    %1927 = vrot.lane.b32.xlu0 %v167, 80
    %v1928 = vpop.permute.xlu0 %1927
    %1929 = vrot.lane.b32.xlu0 %v170, 80
    %v1930 = vpop.permute.xlu0 %1929
    %v1931 = vsel %vm236, %v1924, 0
    %v1933 = vsel %vm236, %v1926, 0
    %v1935 = vsel %vm236, %v1928, 0
    %v1937 = vsel %vm236, %v1930, 0
    %1939 = vmatpush.xpose.msra.mxu0 0.0
    %1940 = vmatpush.xpose.msra.mxu0 0.0
    %1941 = vmatpush.xpose.msra.mxu0 0.0
    %1942 = vmatpush.xpose.msra.mxu0 0.0
    %1943 = vmatpush.xpose.msra.mxu0 0.0
    %1944 = vmatpush.xpose.msra.mxu0 0.0
    %1945 = vmatpush.xpose.msra.mxu0 0.0
    %1946 = vmatpush.xpose.msra.mxu0 0.0
    %1947 = vmatpush.xpose.msra.mxu0 0.0
    %1948 = vmatpush.xpose.msra.mxu0 0.0
    %1949 = vmatpush.xpose.msra.mxu0 0.0
    %1950 = vmatpush.xpose.msra.mxu0 0.0
    %1951 = vmatpush.xpose.msra.mxu0 0.0
    %1952 = vmatpush.xpose.msra.mxu0 0.0
    %1953 = vmatpush.xpose.msra.mxu0 %v1937
    %1954 = vmatpush.xpose.msra.mxu0 %v1935
    %1955 = vmatmul.f32.gmra.mxu0 %v1931
    %v1956 = vpop.f32.mrf.mxu0
    %v1957 = vadd.f32 %v1804, %v1956
    %1958 = vmatmul.f32.gmra.mxu0 %v1933
    %v1959 = vpop.f32.mrf.mxu0
    %v1960 = vadd.f32 %v1805, %v1959
    %1961 = vdwg.mxu0
    %1962 = vrot.lane.b32.xlu0 %v220, 112
    %v1963 = vpop.permute.xlu0 %1962
    %1964 = vrot.lane.b32.xlu0 %v221, 112
    %v1965 = vpop.permute.xlu0 %1964
    %1966 = vrot.lane.b32.xlu0 %v173, 80
    %v1967 = vpop.permute.xlu0 %1966
    %1968 = vrot.lane.b32.xlu0 %v176, 80
    %v1969 = vpop.permute.xlu0 %1968
    %v1970 = vsel %vm236, %v1963, 0
    %v1972 = vsel %vm236, %v1965, 0
    %v1974 = vsel %vm236, %v1967, 0
    %v1976 = vsel %vm236, %v1969, 0
    %1978 = vmatpush.xpose.msra.mxu0 0.0
    %1979 = vmatpush.xpose.msra.mxu0 0.0
    %1980 = vmatpush.xpose.msra.mxu0 0.0
    %1981 = vmatpush.xpose.msra.mxu0 0.0
    %1982 = vmatpush.xpose.msra.mxu0 0.0
    %1983 = vmatpush.xpose.msra.mxu0 0.0
    %1984 = vmatpush.xpose.msra.mxu0 0.0
    %1985 = vmatpush.xpose.msra.mxu0 0.0
    %1986 = vmatpush.xpose.msra.mxu0 0.0
    %1987 = vmatpush.xpose.msra.mxu0 0.0
    %1988 = vmatpush.xpose.msra.mxu0 0.0
    %1989 = vmatpush.xpose.msra.mxu0 0.0
    %1990 = vmatpush.xpose.msra.mxu0 0.0
    %1991 = vmatpush.xpose.msra.mxu0 0.0
    %1992 = vmatpush.xpose.msra.mxu0 %v1976
    %1993 = vmatpush.xpose.msra.mxu0 %v1974
    %1994 = vmatmul.f32.gmra.mxu0 %v1970
    %v1995 = vpop.f32.mrf.mxu0
    %v1996 = vadd.f32 %v1804, %v1995
    %1997 = vmatmul.f32.gmra.mxu0 %v1972
    %v1998 = vpop.f32.mrf.mxu0
    %v1999 = vadd.f32 %v1805, %v1998
    %2000 = vdwg.mxu0
    %2001 = vrot.lane.b32.xlu0 %v222, 112
    %v2002 = vpop.permute.xlu0 %2001
    %2003 = vrot.lane.b32.xlu0 %v223, 112
    %v2004 = vpop.permute.xlu0 %2003
    %2005 = vrot.lane.b32.xlu0 %v179, 80
    %v2006 = vpop.permute.xlu0 %2005
    %2007 = vrot.lane.b32.xlu0 %v182, 80
    %v2008 = vpop.permute.xlu0 %2007
    %v2009 = vsel %vm236, %v2002, 0
    %v2011 = vsel %vm236, %v2004, 0
    %v2013 = vsel %vm236, %v2006, 0
    %v2015 = vsel %vm236, %v2008, 0
    %2017 = vmatpush.xpose.msra.mxu0 0.0
    %2018 = vmatpush.xpose.msra.mxu0 0.0
    %2019 = vmatpush.xpose.msra.mxu0 0.0
    %2020 = vmatpush.xpose.msra.mxu0 0.0
    %2021 = vmatpush.xpose.msra.mxu0 0.0
    %2022 = vmatpush.xpose.msra.mxu0 0.0
    %2023 = vmatpush.xpose.msra.mxu0 0.0
    %2024 = vmatpush.xpose.msra.mxu0 0.0
    %2025 = vmatpush.xpose.msra.mxu0 0.0
    %2026 = vmatpush.xpose.msra.mxu0 0.0
    %2027 = vmatpush.xpose.msra.mxu0 0.0
    %2028 = vmatpush.xpose.msra.mxu0 0.0
    %2029 = vmatpush.xpose.msra.mxu0 0.0
    %2030 = vmatpush.xpose.msra.mxu0 0.0
    %2031 = vmatpush.xpose.msra.mxu0 %v2015
    %2032 = vmatpush.xpose.msra.mxu0 %v2013
    %2033 = vmatmul.f32.gmra.mxu0 %v2009
    %v2034 = vpop.f32.mrf.mxu0
    %v2035 = vadd.f32 %v1804, %v2034
    %2036 = vmatmul.f32.gmra.mxu0 %v2011
    %v2037 = vpop.f32.mrf.mxu0
    %v2038 = vadd.f32 %v1805, %v2037
    %2039 = vdwg.mxu0
    %2040 = vrot.lane.b32.xlu0 %v224, 112
    %v2041 = vpop.permute.xlu0 %2040
    %2042 = vrot.lane.b32.xlu0 %v225, 112
    %v2043 = vpop.permute.xlu0 %2042
    %2044 = vrot.lane.b32.xlu0 %v185, 80
    %v2045 = vpop.permute.xlu0 %2044
    %2046 = vrot.lane.b32.xlu0 %v188, 80
    %v2047 = vpop.permute.xlu0 %2046
    %v2048 = vsel %vm236, %v2041, 0
    %v2050 = vsel %vm236, %v2043, 0
    %v2052 = vsel %vm236, %v2045, 0
    %v2054 = vsel %vm236, %v2047, 0
    %2056 = vmatpush.xpose.msra.mxu0 0.0
    %2057 = vmatpush.xpose.msra.mxu0 0.0
    %2058 = vmatpush.xpose.msra.mxu0 0.0
    %2059 = vmatpush.xpose.msra.mxu0 0.0
    %2060 = vmatpush.xpose.msra.mxu0 0.0
    %2061 = vmatpush.xpose.msra.mxu0 0.0
    %2062 = vmatpush.xpose.msra.mxu0 0.0
    %2063 = vmatpush.xpose.msra.mxu0 0.0
    %2064 = vmatpush.xpose.msra.mxu0 0.0
    %2065 = vmatpush.xpose.msra.mxu0 0.0
    %2066 = vmatpush.xpose.msra.mxu0 0.0
    %2067 = vmatpush.xpose.msra.mxu0 0.0
    %2068 = vmatpush.xpose.msra.mxu0 0.0
    %2069 = vmatpush.xpose.msra.mxu0 0.0
    %2070 = vmatpush.xpose.msra.mxu0 %v2054
    %2071 = vmatpush.xpose.msra.mxu0 %v2052
    %2072 = vmatmul.f32.gmra.mxu0 %v2048
    %v2073 = vpop.f32.mrf.mxu0
    %v2074 = vadd.f32 %v1804, %v2073
    %2075 = vmatmul.f32.gmra.mxu0 %v2050
    %v2076 = vpop.f32.mrf.mxu0
    %v2077 = vadd.f32 %v1805, %v2076
    %2078 = vdwg.mxu0
    %2079 = vrot.lane.b32.xlu0 %v226, 112
    %v2080 = vpop.permute.xlu0 %2079
    %2081 = vrot.lane.b32.xlu0 %v227, 112
    %v2082 = vpop.permute.xlu0 %2081
    %2083 = vrot.lane.b32.xlu0 %v191, 80
    %v2084 = vpop.permute.xlu0 %2083
    %2085 = vrot.lane.b32.xlu0 %v194, 80
    %v2086 = vpop.permute.xlu0 %2085
    %v2087 = vsel %vm236, %v2080, 0
    %v2089 = vsel %vm236, %v2082, 0
    %v2091 = vsel %vm236, %v2084, 0
    %v2093 = vsel %vm236, %v2086, 0
    %2095 = vmatpush.xpose.msra.mxu0 0.0
    %2096 = vmatpush.xpose.msra.mxu0 0.0
    %2097 = vmatpush.xpose.msra.mxu0 0.0
    %2098 = vmatpush.xpose.msra.mxu0 0.0
    %2099 = vmatpush.xpose.msra.mxu0 0.0
    %2100 = vmatpush.xpose.msra.mxu0 0.0
    %2101 = vmatpush.xpose.msra.mxu0 0.0
    %2102 = vmatpush.xpose.msra.mxu0 0.0
    %2103 = vmatpush.xpose.msra.mxu0 0.0
    %2104 = vmatpush.xpose.msra.mxu0 0.0
    %2105 = vmatpush.xpose.msra.mxu0 0.0
    %2106 = vmatpush.xpose.msra.mxu0 0.0
    %2107 = vmatpush.xpose.msra.mxu0 0.0
    %2108 = vmatpush.xpose.msra.mxu0 0.0
    %2109 = vmatpush.xpose.msra.mxu0 %v2093
    %2110 = vmatpush.xpose.msra.mxu0 %v2091
    %2111 = vmatmul.f32.gmra.mxu0 %v2087
    %v2112 = vpop.f32.mrf.mxu0
    %v2113 = vadd.f32 %v1804, %v2112
    %2114 = vmatmul.f32.gmra.mxu0 %v2089
    %v2115 = vpop.f32.mrf.mxu0
    %v2116 = vadd.f32 %v1805, %v2115
    %2117 = vdwg.mxu0
    %v2118 = vadd.f32 %v1840, %v196
    %v2119 = vadd.f32 %v1843, %v197
    %v2120 = vadd.f32 %v1879, %v198
    %v2121 = vadd.f32 %v1882, %v199
    %v2122 = vadd.f32 %v1918, %v200
    %v2123 = vadd.f32 %v1921, %v201
    %v2124 = vadd.f32 %v1957, %v202
    %v2125 = vadd.f32 %v1960, %v203
    %v2126 = vadd.f32 %v1996, %v204
    %v2127 = vadd.f32 %v1999, %v205
    %v2128 = vadd.f32 %v2035, %v206
    %v2129 = vadd.f32 %v2038, %v207
    %v2130 = vadd.f32 %v2074, %v208
    %v2131 = vadd.f32 %v2077, %v209
    %v2132 = vadd.f32 %v2113, %v210
    %v2133 = vadd.f32 %v2116, %v211
    %v2134 = vsel %vm559, %v2118, -inf
    %2135 = vmax.xlane.f32.xlu0 %v2134
    %v2136 = vpop.xlane.xlu0 %2135
    %v2137 = vsel %vm559, %v2119, -inf
    %2138 = vmax.xlane.f32.xlu0 %v2137
    %v2139 = vpop.xlane.xlu0 %2138
    %v2140 = vsel %vm559, %v2120, -inf
    %2141 = vmax.xlane.f32.xlu0 %v2140
    %v2142 = vpop.xlane.xlu0 %2141
    %v2143 = vsel %vm559, %v2121, -inf
    %2144 = vmax.xlane.f32.xlu0 %v2143
    %v2145 = vpop.xlane.xlu0 %2144
    %v2146 = vsel %vm559, %v2122, -inf
    %2147 = vmax.xlane.f32.xlu0 %v2146
    %v2148 = vpop.xlane.xlu0 %2147
    %v2149 = vsel %vm559, %v2123, -inf
    %2150 = vmax.xlane.f32.xlu0 %v2149
    %v2151 = vpop.xlane.xlu0 %2150
    %v2152 = vsel %vm559, %v2124, -inf
    %2153 = vmax.xlane.f32.xlu0 %v2152
    %v2154 = vpop.xlane.xlu0 %2153
    %v2155 = vsel %vm559, %v2125, -inf
    %2156 = vmax.xlane.f32.xlu0 %v2155
    %v2157 = vpop.xlane.xlu0 %2156
    %v2158 = vsel %vm559, %v2126, -inf
    %2159 = vmax.xlane.f32.xlu0 %v2158
    %v2160 = vpop.xlane.xlu0 %2159
    %v2161 = vsel %vm559, %v2127, -inf
    %2162 = vmax.xlane.f32.xlu0 %v2161
    %v2163 = vpop.xlane.xlu0 %2162
    %v2164 = vsel %vm559, %v2128, -inf
    %2165 = vmax.xlane.f32.xlu0 %v2164
    %v2166 = vpop.xlane.xlu0 %2165
    %v2167 = vsel %vm559, %v2129, -inf
    %2168 = vmax.xlane.f32.xlu0 %v2167
    %v2169 = vpop.xlane.xlu0 %2168
    %v2170 = vsel %vm559, %v2130, -inf
    %2171 = vmax.xlane.f32.xlu0 %v2170
    %v2172 = vpop.xlane.xlu0 %2171
    %v2173 = vsel %vm559, %v2131, -inf
    %2174 = vmax.xlane.f32.xlu0 %v2173
    %v2175 = vpop.xlane.xlu0 %2174
    %v2176 = vsel %vm559, %v2132, -inf
    %2177 = vmax.xlane.f32.xlu0 %v2176
    %v2178 = vpop.xlane.xlu0 %2177
    %v2179 = vsel %vm559, %v2133, -inf
    %2180 = vmax.xlane.f32.xlu0 %v2179
    %v2181 = vpop.xlane.xlu0 %2180
    %v2182 = vsub.f32 %v2118, %v2136
    %v2183 = vsub.f32 %v2119, %v2139
    %v2184 = vsub.f32 %v2120, %v2142
    %v2185 = vsub.f32 %v2121, %v2145
    %v2186 = vsub.f32 %v2122, %v2148
    %v2187 = vsub.f32 %v2123, %v2151
    %v2188 = vsub.f32 %v2124, %v2154
    %v2189 = vsub.f32 %v2125, %v2157
    %v2190 = vsub.f32 %v2126, %v2160
    %v2191 = vsub.f32 %v2127, %v2163
    %v2192 = vsub.f32 %v2128, %v2166
    %v2193 = vsub.f32 %v2129, %v2169
    %v2194 = vsub.f32 %v2130, %v2172
    %v2195 = vsub.f32 %v2131, %v2175
    %v2196 = vsub.f32 %v2132, %v2178
    %v2197 = vsub.f32 %v2133, %v2181
    %v2198 = vmul.f32 %v2182, 1.442695
    %v2199 = vpow.pop %v2198
    %v2200 = vmul.f32 %v2183, 1.442695
    %v2201 = vpow.pop %v2200
    %v2202 = vmul.f32 %v2184, 1.442695
    %v2203 = vpow.pop %v2202
    %v2204 = vmul.f32 %v2185, 1.442695
    %v2205 = vpow.pop %v2204
    %v2206 = vmul.f32 %v2186, 1.442695
    %v2207 = vpow.pop %v2206
    %v2208 = vmul.f32 %v2187, 1.442695
    %v2209 = vpow.pop %v2208
    %v2210 = vmul.f32 %v2188, 1.442695
    %v2211 = vpow.pop %v2210
    %v2212 = vmul.f32 %v2189, 1.442695
    %v2213 = vpow.pop %v2212
    %v2214 = vmul.f32 %v2190, 1.442695
    %v2215 = vpow.pop %v2214
    %v2216 = vmul.f32 %v2191, 1.442695
    %v2217 = vpow.pop %v2216
    %v2218 = vmul.f32 %v2192, 1.442695
    %v2219 = vpow.pop %v2218
    %v2220 = vmul.f32 %v2193, 1.442695
    %v2221 = vpow.pop %v2220
    %v2222 = vmul.f32 %v2194, 1.442695
    %v2223 = vpow.pop %v2222
    %v2224 = vmul.f32 %v2195, 1.442695
    %v2225 = vpow.pop %v2224
    %v2226 = vmul.f32 %v2196, 1.442695
    %v2227 = vpow.pop %v2226
    %v2228 = vmul.f32 %v2197, 1.442695
    %v2229 = vpow.pop %v2228
    %v2230 = vsel %vm559, %v2199, 0.0
    %2231 = vadd.xlane.f32.xlu0 %v2230
    %v2232 = vpop.xlane.xlu0 %2231
    %v2233 = vsel %vm559, %v2201, 0.0
    %2234 = vadd.xlane.f32.xlu0 %v2233
    %v2235 = vpop.xlane.xlu0 %2234
    %v2236 = vsel %vm559, %v2203, 0.0
    %2237 = vadd.xlane.f32.xlu0 %v2236
    %v2238 = vpop.xlane.xlu0 %2237
    %v2239 = vsel %vm559, %v2205, 0.0
    %2240 = vadd.xlane.f32.xlu0 %v2239
    %v2241 = vpop.xlane.xlu0 %2240
    %v2242 = vsel %vm559, %v2207, 0.0
    %2243 = vadd.xlane.f32.xlu0 %v2242
    %v2244 = vpop.xlane.xlu0 %2243
    %v2245 = vsel %vm559, %v2209, 0.0
    %2246 = vadd.xlane.f32.xlu0 %v2245
    %v2247 = vpop.xlane.xlu0 %2246
    %v2248 = vsel %vm559, %v2211, 0.0
    %2249 = vadd.xlane.f32.xlu0 %v2248
    %v2250 = vpop.xlane.xlu0 %2249
    %v2251 = vsel %vm559, %v2213, 0.0
    %2252 = vadd.xlane.f32.xlu0 %v2251
    %v2253 = vpop.xlane.xlu0 %2252
    %v2254 = vsel %vm559, %v2215, 0.0
    %2255 = vadd.xlane.f32.xlu0 %v2254
    %v2256 = vpop.xlane.xlu0 %2255
    %v2257 = vsel %vm559, %v2217, 0.0
    %2258 = vadd.xlane.f32.xlu0 %v2257
    %v2259 = vpop.xlane.xlu0 %2258
    %v2260 = vsel %vm559, %v2219, 0.0
    %2261 = vadd.xlane.f32.xlu0 %v2260
    %v2262 = vpop.xlane.xlu0 %2261
    %v2263 = vsel %vm559, %v2221, 0.0
    %2264 = vadd.xlane.f32.xlu0 %v2263
    %v2265 = vpop.xlane.xlu0 %2264
    %v2266 = vsel %vm559, %v2223, 0.0
    %2267 = vadd.xlane.f32.xlu0 %v2266
    %v2268 = vpop.xlane.xlu0 %2267
    %v2269 = vsel %vm559, %v2225, 0.0
    %2270 = vadd.xlane.f32.xlu0 %v2269
    %v2271 = vpop.xlane.xlu0 %2270
    %v2272 = vsel %vm559, %v2227, 0.0
    %2273 = vadd.xlane.f32.xlu0 %v2272
    %v2274 = vpop.xlane.xlu0 %2273
    %v2275 = vsel %vm559, %v2229, 0.0
    %2276 = vadd.xlane.f32.xlu0 %v2275
    %v2277 = vpop.xlane.xlu0 %2276
    %v2278 = vrcp.pop %v2232
    %v2279 = vrcp.pop %v2235
    %v2280 = vrcp.pop %v2238
    %v2281 = vrcp.pop %v2241
    %v2282 = vrcp.pop %v2244
    %v2283 = vrcp.pop %v2247
    %v2284 = vrcp.pop %v2250
    %v2285 = vrcp.pop %v2253
    %v2286 = vrcp.pop %v2256
    %v2287 = vrcp.pop %v2259
    %v2288 = vrcp.pop %v2262
    %v2289 = vrcp.pop %v2265
    %v2290 = vrcp.pop %v2268
    %v2291 = vrcp.pop %v2271
    %v2292 = vrcp.pop %v2274
    %v2293 = vrcp.pop %v2277
    %v2294 = vmul.f32 %v2199, %v2278
    %v2295 = vmul.f32 %v2201, %v2279
    %v2296 = vmul.f32 %v2203, %v2280
    %v2297 = vmul.f32 %v2205, %v2281
    %v2298 = vmul.f32 %v2207, %v2282
    %v2299 = vmul.f32 %v2209, %v2283
    %v2300 = vmul.f32 %v2211, %v2284
    %v2301 = vmul.f32 %v2213, %v2285
    %v2302 = vmul.f32 %v2215, %v2286
    %v2303 = vmul.f32 %v2217, %v2287
    %v2304 = vmul.f32 %v2219, %v2288
    %v2305 = vmul.f32 %v2221, %v2289
    %v2306 = vmul.f32 %v2223, %v2290
    %v2307 = vmul.f32 %v2225, %v2291
    %v2308 = vmul.f32 %v2227, %v2292
    %v2309 = vmul.f32 %v2229, %v2293
    %2310 = vrot.lane.b32.xlu0 %v149, 48
    %v2311 = vpop.permute.xlu0 %2310
    %2312 = vrot.lane.b32.xlu0 %v152, 48
    %v2313 = vpop.permute.xlu0 %2312
    %v2317 = vsel %vm559, %v2294, 0
    %v2320 = vsel %vm559, %v2295, 0
    %2322 = vmatpush.msra.mxu0 0.0
    %2323 = vmatpush.msra.mxu0 0.0
    %2324 = vmatpush.msra.mxu0 0.0
    %2325 = vmatpush.msra.mxu0 0.0
    %2326 = vmatpush.msra.mxu0 0.0
    %2327 = vmatpush.msra.mxu0 0.0
    %2328 = vmatpush.msra.mxu0 0.0
    %2329 = vmatpush.msra.mxu0 0.0
    %2330 = vmatpush.msra.mxu0 0.0
    %2331 = vmatpush.msra.mxu0 0.0
    %2332 = vmatpush.msra.mxu0 0.0
    %2333 = vmatpush.msra.mxu0 0.0
    %2334 = vmatpush.msra.mxu0 0.0
    %2335 = vmatpush.msra.mxu0 0.0
    %2336 = vmatpush.msra.mxu0 %v2313
    %2337 = vmatpush.msra.mxu0 %v2311
    %2338 = vmatmul.f32.gmra.mxu0 %v2317
    %v2339 = vpop.f32.mrf.mxu0
    %v2340 = vadd.f32 0.0, %v2339
    %2341 = vmatmul.f32.gmra.mxu0 %v2320
    %v2342 = vpop.f32.mrf.mxu0
    %v2343 = vadd.f32 0.0, %v2342
    %2344 = vdwg.mxu0
    %2345 = vrot.lane.b32.xlu0 %v155, 48
    %v2346 = vpop.permute.xlu0 %2345
    %2347 = vrot.lane.b32.xlu0 %v158, 48
    %v2348 = vpop.permute.xlu0 %2347
    %v2352 = vsel %vm559, %v2296, 0
    %v2355 = vsel %vm559, %v2297, 0
    %2357 = vmatpush.msra.mxu0 0.0
    %2358 = vmatpush.msra.mxu0 0.0
    %2359 = vmatpush.msra.mxu0 0.0
    %2360 = vmatpush.msra.mxu0 0.0
    %2361 = vmatpush.msra.mxu0 0.0
    %2362 = vmatpush.msra.mxu0 0.0
    %2363 = vmatpush.msra.mxu0 0.0
    %2364 = vmatpush.msra.mxu0 0.0
    %2365 = vmatpush.msra.mxu0 0.0
    %2366 = vmatpush.msra.mxu0 0.0
    %2367 = vmatpush.msra.mxu0 0.0
    %2368 = vmatpush.msra.mxu0 0.0
    %2369 = vmatpush.msra.mxu0 0.0
    %2370 = vmatpush.msra.mxu0 0.0
    %2371 = vmatpush.msra.mxu0 %v2348
    %2372 = vmatpush.msra.mxu0 %v2346
    %2373 = vmatmul.f32.gmra.mxu0 %v2352
    %v2374 = vpop.f32.mrf.mxu0
    %v2375 = vadd.f32 0.0, %v2374
    %2376 = vmatmul.f32.gmra.mxu0 %v2355
    %v2377 = vpop.f32.mrf.mxu0
    %v2378 = vadd.f32 0.0, %v2377
    %2379 = vdwg.mxu0
    %2380 = vrot.lane.b32.xlu0 %v161, 48
    %v2381 = vpop.permute.xlu0 %2380
    %2382 = vrot.lane.b32.xlu0 %v164, 48
    %v2383 = vpop.permute.xlu0 %2382
    %v2387 = vsel %vm559, %v2298, 0
    %v2390 = vsel %vm559, %v2299, 0
    %2392 = vmatpush.msra.mxu0 0.0
    %2393 = vmatpush.msra.mxu0 0.0
    %2394 = vmatpush.msra.mxu0 0.0
    %2395 = vmatpush.msra.mxu0 0.0
    %2396 = vmatpush.msra.mxu0 0.0
    %2397 = vmatpush.msra.mxu0 0.0
    %2398 = vmatpush.msra.mxu0 0.0
    %2399 = vmatpush.msra.mxu0 0.0
    %2400 = vmatpush.msra.mxu0 0.0
    %2401 = vmatpush.msra.mxu0 0.0
    %2402 = vmatpush.msra.mxu0 0.0
    %2403 = vmatpush.msra.mxu0 0.0
    %2404 = vmatpush.msra.mxu0 0.0
    %2405 = vmatpush.msra.mxu0 0.0
    %2406 = vmatpush.msra.mxu0 %v2383
    %2407 = vmatpush.msra.mxu0 %v2381
    %2408 = vmatmul.f32.gmra.mxu0 %v2387
    %v2409 = vpop.f32.mrf.mxu0
    %v2410 = vadd.f32 0.0, %v2409
    %2411 = vmatmul.f32.gmra.mxu0 %v2390
    %v2412 = vpop.f32.mrf.mxu0
    %v2413 = vadd.f32 0.0, %v2412
    %2414 = vdwg.mxu0
    %2415 = vrot.lane.b32.xlu0 %v167, 48
    %v2416 = vpop.permute.xlu0 %2415
    %2417 = vrot.lane.b32.xlu0 %v170, 48
    %v2418 = vpop.permute.xlu0 %2417
    %v2422 = vsel %vm559, %v2300, 0
    %v2425 = vsel %vm559, %v2301, 0
    %2427 = vmatpush.msra.mxu0 0.0
    %2428 = vmatpush.msra.mxu0 0.0
    %2429 = vmatpush.msra.mxu0 0.0
    %2430 = vmatpush.msra.mxu0 0.0
    %2431 = vmatpush.msra.mxu0 0.0
    %2432 = vmatpush.msra.mxu0 0.0
    %2433 = vmatpush.msra.mxu0 0.0
    %2434 = vmatpush.msra.mxu0 0.0
    %2435 = vmatpush.msra.mxu0 0.0
    %2436 = vmatpush.msra.mxu0 0.0
    %2437 = vmatpush.msra.mxu0 0.0
    %2438 = vmatpush.msra.mxu0 0.0
    %2439 = vmatpush.msra.mxu0 0.0
    %2440 = vmatpush.msra.mxu0 0.0
    %2441 = vmatpush.msra.mxu0 %v2418
    %2442 = vmatpush.msra.mxu0 %v2416
    %2443 = vmatmul.f32.gmra.mxu0 %v2422
    %v2444 = vpop.f32.mrf.mxu0
    %v2445 = vadd.f32 0.0, %v2444
    %2446 = vmatmul.f32.gmra.mxu0 %v2425
    %v2447 = vpop.f32.mrf.mxu0
    %v2448 = vadd.f32 0.0, %v2447
    %2449 = vdwg.mxu0
    %2450 = vrot.lane.b32.xlu0 %v173, 48
    %v2451 = vpop.permute.xlu0 %2450
    %2452 = vrot.lane.b32.xlu0 %v176, 48
    %v2453 = vpop.permute.xlu0 %2452
    %v2457 = vsel %vm559, %v2302, 0
    %v2460 = vsel %vm559, %v2303, 0
    %2462 = vmatpush.msra.mxu0 0.0
    %2463 = vmatpush.msra.mxu0 0.0
    %2464 = vmatpush.msra.mxu0 0.0
    %2465 = vmatpush.msra.mxu0 0.0
    %2466 = vmatpush.msra.mxu0 0.0
    %2467 = vmatpush.msra.mxu0 0.0
    %2468 = vmatpush.msra.mxu0 0.0
    %2469 = vmatpush.msra.mxu0 0.0
    %2470 = vmatpush.msra.mxu0 0.0
    %2471 = vmatpush.msra.mxu0 0.0
    %2472 = vmatpush.msra.mxu0 0.0
    %2473 = vmatpush.msra.mxu0 0.0
    %2474 = vmatpush.msra.mxu0 0.0
    %2475 = vmatpush.msra.mxu0 0.0
    %2476 = vmatpush.msra.mxu0 %v2453
    %2477 = vmatpush.msra.mxu0 %v2451
    %2478 = vmatmul.f32.gmra.mxu0 %v2457
    %v2479 = vpop.f32.mrf.mxu0
    %v2480 = vadd.f32 0.0, %v2479
    %2481 = vmatmul.f32.gmra.mxu0 %v2460
    %v2482 = vpop.f32.mrf.mxu0
    %v2483 = vadd.f32 0.0, %v2482
    %2484 = vdwg.mxu0
    %2485 = vrot.lane.b32.xlu0 %v179, 48
    %v2486 = vpop.permute.xlu0 %2485
    %2487 = vrot.lane.b32.xlu0 %v182, 48
    %v2488 = vpop.permute.xlu0 %2487
    %v2492 = vsel %vm559, %v2304, 0
    %v2495 = vsel %vm559, %v2305, 0
    %2497 = vmatpush.msra.mxu0 0.0
    %2498 = vmatpush.msra.mxu0 0.0
    %2499 = vmatpush.msra.mxu0 0.0
    %2500 = vmatpush.msra.mxu0 0.0
    %2501 = vmatpush.msra.mxu0 0.0
    %2502 = vmatpush.msra.mxu0 0.0
    %2503 = vmatpush.msra.mxu0 0.0
    %2504 = vmatpush.msra.mxu0 0.0
    %2505 = vmatpush.msra.mxu0 0.0
    %2506 = vmatpush.msra.mxu0 0.0
    %2507 = vmatpush.msra.mxu0 0.0
    %2508 = vmatpush.msra.mxu0 0.0
    %2509 = vmatpush.msra.mxu0 0.0
    %2510 = vmatpush.msra.mxu0 0.0
    %2511 = vmatpush.msra.mxu0 %v2488
    %2512 = vmatpush.msra.mxu0 %v2486
    %2513 = vmatmul.f32.gmra.mxu0 %v2492
    %v2514 = vpop.f32.mrf.mxu0
    %v2515 = vadd.f32 0.0, %v2514
    %2516 = vmatmul.f32.gmra.mxu0 %v2495
    %v2517 = vpop.f32.mrf.mxu0
    %v2518 = vadd.f32 0.0, %v2517
    %2519 = vdwg.mxu0
    %2520 = vrot.lane.b32.xlu0 %v185, 48
    %v2521 = vpop.permute.xlu0 %2520
    %2522 = vrot.lane.b32.xlu0 %v188, 48
    %v2523 = vpop.permute.xlu0 %2522
    %v2527 = vsel %vm559, %v2306, 0
    %v2530 = vsel %vm559, %v2307, 0
    %2532 = vmatpush.msra.mxu0 0.0
    %2533 = vmatpush.msra.mxu0 0.0
    %2534 = vmatpush.msra.mxu0 0.0
    %2535 = vmatpush.msra.mxu0 0.0
    %2536 = vmatpush.msra.mxu0 0.0
    %2537 = vmatpush.msra.mxu0 0.0
    %2538 = vmatpush.msra.mxu0 0.0
    %2539 = vmatpush.msra.mxu0 0.0
    %2540 = vmatpush.msra.mxu0 0.0
    %2541 = vmatpush.msra.mxu0 0.0
    %2542 = vmatpush.msra.mxu0 0.0
    %2543 = vmatpush.msra.mxu0 0.0
    %2544 = vmatpush.msra.mxu0 0.0
    %2545 = vmatpush.msra.mxu0 0.0
    %2546 = vmatpush.msra.mxu0 %v2523
    %2547 = vmatpush.msra.mxu0 %v2521
    %2548 = vmatmul.f32.gmra.mxu0 %v2527
    %v2549 = vpop.f32.mrf.mxu0
    %v2550 = vadd.f32 0.0, %v2549
    %2551 = vmatmul.f32.gmra.mxu0 %v2530
    %v2552 = vpop.f32.mrf.mxu0
    %v2553 = vadd.f32 0.0, %v2552
    %2554 = vdwg.mxu0
    %2555 = vrot.lane.b32.xlu0 %v191, 48
    %v2556 = vpop.permute.xlu0 %2555
    %2557 = vrot.lane.b32.xlu0 %v194, 48
    %v2558 = vpop.permute.xlu0 %2557
    %v2562 = vsel %vm559, %v2308, 0
    %v2565 = vsel %vm559, %v2309, 0
    %2567 = vmatpush.msra.mxu0 0.0
    %2568 = vmatpush.msra.mxu0 0.0
    %2569 = vmatpush.msra.mxu0 0.0
    %2570 = vmatpush.msra.mxu0 0.0
    %2571 = vmatpush.msra.mxu0 0.0
    %2572 = vmatpush.msra.mxu0 0.0
    %2573 = vmatpush.msra.mxu0 0.0
    %2574 = vmatpush.msra.mxu0 0.0
    %2575 = vmatpush.msra.mxu0 0.0
    %2576 = vmatpush.msra.mxu0 0.0
    %2577 = vmatpush.msra.mxu0 0.0
    %2578 = vmatpush.msra.mxu0 0.0
    %2579 = vmatpush.msra.mxu0 0.0
    %2580 = vmatpush.msra.mxu0 0.0
    %2581 = vmatpush.msra.mxu0 %v2558
    %2582 = vmatpush.msra.mxu0 %v2556
    %2583 = vmatmul.f32.gmra.mxu0 %v2562
    %v2584 = vpop.f32.mrf.mxu0
    %v2585 = vadd.f32 0.0, %v2584
    %2586 = vmatmul.f32.gmra.mxu0 %v2565
    %v2587 = vpop.f32.mrf.mxu0
    %v2588 = vadd.f32 0.0, %v2587
    %2589 = vdwg.mxu0
    %s2590 = scalar_lea.vmem [#allocation2], 48
    %v2591 = vld [vmem:[%s2590] sm:$0xff]
    %v2592 = vld [vmem:[%s2590 + $0x8] sm:$0xff]
    %2593 = vrot.lane.b32.xlu0 %v212, 104
    %v2594 = vpop.permute.xlu0 %2593
    %2595 = vrot.lane.b32.xlu0 %v213, 104
    %v2596 = vpop.permute.xlu0 %2595
    %2597 = vrot.lane.b32.xlu0 %v149, 72
    %v2598 = vpop.permute.xlu0 %2597
    %2599 = vrot.lane.b32.xlu0 %v152, 72
    %v2600 = vpop.permute.xlu0 %2599
    %v2601 = vsel %vm236, %v2594, 0
    %v2603 = vsel %vm236, %v2596, 0
    %v2605 = vsel %vm236, %v2598, 0
    %v2607 = vsel %vm236, %v2600, 0
    %2609 = vmatpush.xpose.msra.mxu0 0.0
    %2610 = vmatpush.xpose.msra.mxu0 0.0
    %2611 = vmatpush.xpose.msra.mxu0 0.0
    %2612 = vmatpush.xpose.msra.mxu0 0.0
    %2613 = vmatpush.xpose.msra.mxu0 0.0
    %2614 = vmatpush.xpose.msra.mxu0 0.0
    %2615 = vmatpush.xpose.msra.mxu0 0.0
    %2616 = vmatpush.xpose.msra.mxu0 0.0
    %2617 = vmatpush.xpose.msra.mxu0 0.0
    %2618 = vmatpush.xpose.msra.mxu0 0.0
    %2619 = vmatpush.xpose.msra.mxu0 0.0
    %2620 = vmatpush.xpose.msra.mxu0 0.0
    %2621 = vmatpush.xpose.msra.mxu0 0.0
    %2622 = vmatpush.xpose.msra.mxu0 0.0
    %2623 = vmatpush.xpose.msra.mxu0 %v2607
    %2624 = vmatpush.xpose.msra.mxu0 %v2605
    %2625 = vmatmul.f32.gmra.mxu0 %v2601
    %v2626 = vpop.f32.mrf.mxu0
    %v2627 = vadd.f32 %v2591, %v2626
    %2628 = vmatmul.f32.gmra.mxu0 %v2603
    %v2629 = vpop.f32.mrf.mxu0
    %v2630 = vadd.f32 %v2592, %v2629
    %2631 = vdwg.mxu0
    %2632 = vrot.lane.b32.xlu0 %v214, 104
    %v2633 = vpop.permute.xlu0 %2632
    %2634 = vrot.lane.b32.xlu0 %v215, 104
    %v2635 = vpop.permute.xlu0 %2634
    %2636 = vrot.lane.b32.xlu0 %v155, 72
    %v2637 = vpop.permute.xlu0 %2636
    %2638 = vrot.lane.b32.xlu0 %v158, 72
    %v2639 = vpop.permute.xlu0 %2638
    %v2640 = vsel %vm236, %v2633, 0
    %v2642 = vsel %vm236, %v2635, 0
    %v2644 = vsel %vm236, %v2637, 0
    %v2646 = vsel %vm236, %v2639, 0
    %2648 = vmatpush.xpose.msra.mxu0 0.0
    %2649 = vmatpush.xpose.msra.mxu0 0.0
    %2650 = vmatpush.xpose.msra.mxu0 0.0
    %2651 = vmatpush.xpose.msra.mxu0 0.0
    %2652 = vmatpush.xpose.msra.mxu0 0.0
    %2653 = vmatpush.xpose.msra.mxu0 0.0
    %2654 = vmatpush.xpose.msra.mxu0 0.0
    %2655 = vmatpush.xpose.msra.mxu0 0.0
    %2656 = vmatpush.xpose.msra.mxu0 0.0
    %2657 = vmatpush.xpose.msra.mxu0 0.0
    %2658 = vmatpush.xpose.msra.mxu0 0.0
    %2659 = vmatpush.xpose.msra.mxu0 0.0
    %2660 = vmatpush.xpose.msra.mxu0 0.0
    %2661 = vmatpush.xpose.msra.mxu0 0.0
    %2662 = vmatpush.xpose.msra.mxu0 %v2646
    %2663 = vmatpush.xpose.msra.mxu0 %v2644
    %2664 = vmatmul.f32.gmra.mxu0 %v2640
    %v2665 = vpop.f32.mrf.mxu0
    %v2666 = vadd.f32 %v2591, %v2665
    %2667 = vmatmul.f32.gmra.mxu0 %v2642
    %v2668 = vpop.f32.mrf.mxu0
    %v2669 = vadd.f32 %v2592, %v2668
    %2670 = vdwg.mxu0
    %2671 = vrot.lane.b32.xlu0 %v216, 104
    %v2672 = vpop.permute.xlu0 %2671
    %2673 = vrot.lane.b32.xlu0 %v217, 104
    %v2674 = vpop.permute.xlu0 %2673
    %2675 = vrot.lane.b32.xlu0 %v161, 72
    %v2676 = vpop.permute.xlu0 %2675
    %2677 = vrot.lane.b32.xlu0 %v164, 72
    %v2678 = vpop.permute.xlu0 %2677
    %v2679 = vsel %vm236, %v2672, 0
    %v2681 = vsel %vm236, %v2674, 0
    %v2683 = vsel %vm236, %v2676, 0
    %v2685 = vsel %vm236, %v2678, 0
    %2687 = vmatpush.xpose.msra.mxu0 0.0
    %2688 = vmatpush.xpose.msra.mxu0 0.0
    %2689 = vmatpush.xpose.msra.mxu0 0.0
    %2690 = vmatpush.xpose.msra.mxu0 0.0
    %2691 = vmatpush.xpose.msra.mxu0 0.0
    %2692 = vmatpush.xpose.msra.mxu0 0.0
    %2693 = vmatpush.xpose.msra.mxu0 0.0
    %2694 = vmatpush.xpose.msra.mxu0 0.0
    %2695 = vmatpush.xpose.msra.mxu0 0.0
    %2696 = vmatpush.xpose.msra.mxu0 0.0
    %2697 = vmatpush.xpose.msra.mxu0 0.0
    %2698 = vmatpush.xpose.msra.mxu0 0.0
    %2699 = vmatpush.xpose.msra.mxu0 0.0
    %2700 = vmatpush.xpose.msra.mxu0 0.0
    %2701 = vmatpush.xpose.msra.mxu0 %v2685
    %2702 = vmatpush.xpose.msra.mxu0 %v2683
    %2703 = vmatmul.f32.gmra.mxu0 %v2679
    %v2704 = vpop.f32.mrf.mxu0
    %v2705 = vadd.f32 %v2591, %v2704
    %2706 = vmatmul.f32.gmra.mxu0 %v2681
    %v2707 = vpop.f32.mrf.mxu0
    %v2708 = vadd.f32 %v2592, %v2707
    %2709 = vdwg.mxu0
    %2710 = vrot.lane.b32.xlu0 %v218, 104
    %v2711 = vpop.permute.xlu0 %2710
    %2712 = vrot.lane.b32.xlu0 %v219, 104
    %v2713 = vpop.permute.xlu0 %2712
    %2714 = vrot.lane.b32.xlu0 %v167, 72
    %v2715 = vpop.permute.xlu0 %2714
    %2716 = vrot.lane.b32.xlu0 %v170, 72
    %v2717 = vpop.permute.xlu0 %2716
    %v2718 = vsel %vm236, %v2711, 0
    %v2720 = vsel %vm236, %v2713, 0
    %v2722 = vsel %vm236, %v2715, 0
    %v2724 = vsel %vm236, %v2717, 0
    %2726 = vmatpush.xpose.msra.mxu0 0.0
    %2727 = vmatpush.xpose.msra.mxu0 0.0
    %2728 = vmatpush.xpose.msra.mxu0 0.0
    %2729 = vmatpush.xpose.msra.mxu0 0.0
    %2730 = vmatpush.xpose.msra.mxu0 0.0
    %2731 = vmatpush.xpose.msra.mxu0 0.0
    %2732 = vmatpush.xpose.msra.mxu0 0.0
    %2733 = vmatpush.xpose.msra.mxu0 0.0
    %2734 = vmatpush.xpose.msra.mxu0 0.0
    %2735 = vmatpush.xpose.msra.mxu0 0.0
    %2736 = vmatpush.xpose.msra.mxu0 0.0
    %2737 = vmatpush.xpose.msra.mxu0 0.0
    %2738 = vmatpush.xpose.msra.mxu0 0.0
    %2739 = vmatpush.xpose.msra.mxu0 0.0
    %2740 = vmatpush.xpose.msra.mxu0 %v2724
    %2741 = vmatpush.xpose.msra.mxu0 %v2722
    %2742 = vmatmul.f32.gmra.mxu0 %v2718
    %v2743 = vpop.f32.mrf.mxu0
    %v2744 = vadd.f32 %v2591, %v2743
    %2745 = vmatmul.f32.gmra.mxu0 %v2720
    %v2746 = vpop.f32.mrf.mxu0
    %v2747 = vadd.f32 %v2592, %v2746
    %2748 = vdwg.mxu0
    %2749 = vrot.lane.b32.xlu0 %v220, 104
    %v2750 = vpop.permute.xlu0 %2749
    %2751 = vrot.lane.b32.xlu0 %v221, 104
    %v2752 = vpop.permute.xlu0 %2751
    %2753 = vrot.lane.b32.xlu0 %v173, 72
    %v2754 = vpop.permute.xlu0 %2753
    %2755 = vrot.lane.b32.xlu0 %v176, 72
    %v2756 = vpop.permute.xlu0 %2755
    %v2757 = vsel %vm236, %v2750, 0
    %v2759 = vsel %vm236, %v2752, 0
    %v2761 = vsel %vm236, %v2754, 0
    %v2763 = vsel %vm236, %v2756, 0
    %2765 = vmatpush.xpose.msra.mxu0 0.0
    %2766 = vmatpush.xpose.msra.mxu0 0.0
    %2767 = vmatpush.xpose.msra.mxu0 0.0
    %2768 = vmatpush.xpose.msra.mxu0 0.0
    %2769 = vmatpush.xpose.msra.mxu0 0.0
    %2770 = vmatpush.xpose.msra.mxu0 0.0
    %2771 = vmatpush.xpose.msra.mxu0 0.0
    %2772 = vmatpush.xpose.msra.mxu0 0.0
    %2773 = vmatpush.xpose.msra.mxu0 0.0
    %2774 = vmatpush.xpose.msra.mxu0 0.0
    %2775 = vmatpush.xpose.msra.mxu0 0.0
    %2776 = vmatpush.xpose.msra.mxu0 0.0
    %2777 = vmatpush.xpose.msra.mxu0 0.0
    %2778 = vmatpush.xpose.msra.mxu0 0.0
    %2779 = vmatpush.xpose.msra.mxu0 %v2763
    %2780 = vmatpush.xpose.msra.mxu0 %v2761
    %2781 = vmatmul.f32.gmra.mxu0 %v2757
    %v2782 = vpop.f32.mrf.mxu0
    %v2783 = vadd.f32 %v2591, %v2782
    %2784 = vmatmul.f32.gmra.mxu0 %v2759
    %v2785 = vpop.f32.mrf.mxu0
    %v2786 = vadd.f32 %v2592, %v2785
    %2787 = vdwg.mxu0
    %2788 = vrot.lane.b32.xlu0 %v222, 104
    %v2789 = vpop.permute.xlu0 %2788
    %2790 = vrot.lane.b32.xlu0 %v223, 104
    %v2791 = vpop.permute.xlu0 %2790
    %2792 = vrot.lane.b32.xlu0 %v179, 72
    %v2793 = vpop.permute.xlu0 %2792
    %2794 = vrot.lane.b32.xlu0 %v182, 72
    %v2795 = vpop.permute.xlu0 %2794
    %v2796 = vsel %vm236, %v2789, 0
    %v2798 = vsel %vm236, %v2791, 0
    %v2800 = vsel %vm236, %v2793, 0
    %v2802 = vsel %vm236, %v2795, 0
    %2804 = vmatpush.xpose.msra.mxu0 0.0
    %2805 = vmatpush.xpose.msra.mxu0 0.0
    %2806 = vmatpush.xpose.msra.mxu0 0.0
    %2807 = vmatpush.xpose.msra.mxu0 0.0
    %2808 = vmatpush.xpose.msra.mxu0 0.0
    %2809 = vmatpush.xpose.msra.mxu0 0.0
    %2810 = vmatpush.xpose.msra.mxu0 0.0
    %2811 = vmatpush.xpose.msra.mxu0 0.0
    %2812 = vmatpush.xpose.msra.mxu0 0.0
    %2813 = vmatpush.xpose.msra.mxu0 0.0
    %2814 = vmatpush.xpose.msra.mxu0 0.0
    %2815 = vmatpush.xpose.msra.mxu0 0.0
    %2816 = vmatpush.xpose.msra.mxu0 0.0
    %2817 = vmatpush.xpose.msra.mxu0 0.0
    %2818 = vmatpush.xpose.msra.mxu0 %v2802
    %2819 = vmatpush.xpose.msra.mxu0 %v2800
    %2820 = vmatmul.f32.gmra.mxu0 %v2796
    %v2821 = vpop.f32.mrf.mxu0
    %v2822 = vadd.f32 %v2591, %v2821
    %2823 = vmatmul.f32.gmra.mxu0 %v2798
    %v2824 = vpop.f32.mrf.mxu0
    %v2825 = vadd.f32 %v2592, %v2824
    %2826 = vdwg.mxu0
    %2827 = vrot.lane.b32.xlu0 %v224, 104
    %v2828 = vpop.permute.xlu0 %2827
    %2829 = vrot.lane.b32.xlu0 %v225, 104
    %v2830 = vpop.permute.xlu0 %2829
    %2831 = vrot.lane.b32.xlu0 %v185, 72
    %v2832 = vpop.permute.xlu0 %2831
    %2833 = vrot.lane.b32.xlu0 %v188, 72
    %v2834 = vpop.permute.xlu0 %2833
    %v2835 = vsel %vm236, %v2828, 0
    %v2837 = vsel %vm236, %v2830, 0
    %v2839 = vsel %vm236, %v2832, 0
    %v2841 = vsel %vm236, %v2834, 0
    %2843 = vmatpush.xpose.msra.mxu0 0.0
    %2844 = vmatpush.xpose.msra.mxu0 0.0
    %2845 = vmatpush.xpose.msra.mxu0 0.0
    %2846 = vmatpush.xpose.msra.mxu0 0.0
    %2847 = vmatpush.xpose.msra.mxu0 0.0
    %2848 = vmatpush.xpose.msra.mxu0 0.0
    %2849 = vmatpush.xpose.msra.mxu0 0.0
    %2850 = vmatpush.xpose.msra.mxu0 0.0
    %2851 = vmatpush.xpose.msra.mxu0 0.0
    %2852 = vmatpush.xpose.msra.mxu0 0.0
    %2853 = vmatpush.xpose.msra.mxu0 0.0
    %2854 = vmatpush.xpose.msra.mxu0 0.0
    %2855 = vmatpush.xpose.msra.mxu0 0.0
    %2856 = vmatpush.xpose.msra.mxu0 0.0
    %2857 = vmatpush.xpose.msra.mxu0 %v2841
    %2858 = vmatpush.xpose.msra.mxu0 %v2839
    %2859 = vmatmul.f32.gmra.mxu0 %v2835
    %v2860 = vpop.f32.mrf.mxu0
    %v2861 = vadd.f32 %v2591, %v2860
    %2862 = vmatmul.f32.gmra.mxu0 %v2837
    %v2863 = vpop.f32.mrf.mxu0
    %v2864 = vadd.f32 %v2592, %v2863
    %2865 = vdwg.mxu0
    %2866 = vrot.lane.b32.xlu0 %v226, 104
    %v2867 = vpop.permute.xlu0 %2866
    %2868 = vrot.lane.b32.xlu0 %v227, 104
    %v2869 = vpop.permute.xlu0 %2868
    %2870 = vrot.lane.b32.xlu0 %v191, 72
    %v2871 = vpop.permute.xlu0 %2870
    %2872 = vrot.lane.b32.xlu0 %v194, 72
    %v2873 = vpop.permute.xlu0 %2872
    %v2874 = vsel %vm236, %v2867, 0
    %v2876 = vsel %vm236, %v2869, 0
    %v2878 = vsel %vm236, %v2871, 0
    %v2880 = vsel %vm236, %v2873, 0
    %2882 = vmatpush.xpose.msra.mxu0 0.0
    %2883 = vmatpush.xpose.msra.mxu0 0.0
    %2884 = vmatpush.xpose.msra.mxu0 0.0
    %2885 = vmatpush.xpose.msra.mxu0 0.0
    %2886 = vmatpush.xpose.msra.mxu0 0.0
    %2887 = vmatpush.xpose.msra.mxu0 0.0
    %2888 = vmatpush.xpose.msra.mxu0 0.0
    %2889 = vmatpush.xpose.msra.mxu0 0.0
    %2890 = vmatpush.xpose.msra.mxu0 0.0
    %2891 = vmatpush.xpose.msra.mxu0 0.0
    %2892 = vmatpush.xpose.msra.mxu0 0.0
    %2893 = vmatpush.xpose.msra.mxu0 0.0
    %2894 = vmatpush.xpose.msra.mxu0 0.0
    %2895 = vmatpush.xpose.msra.mxu0 0.0
    %2896 = vmatpush.xpose.msra.mxu0 %v2880
    %2897 = vmatpush.xpose.msra.mxu0 %v2878
    %2898 = vmatmul.f32.gmra.mxu0 %v2874
    %v2899 = vpop.f32.mrf.mxu0
    %v2900 = vadd.f32 %v2591, %v2899
    %2901 = vmatmul.f32.gmra.mxu0 %v2876
    %v2902 = vpop.f32.mrf.mxu0
    %v2903 = vadd.f32 %v2592, %v2902
    %2904 = vdwg.mxu0
    %v2905 = vadd.f32 %v2627, %v196
    %v2906 = vadd.f32 %v2630, %v197
    %v2907 = vadd.f32 %v2666, %v198
    %v2908 = vadd.f32 %v2669, %v199
    %v2909 = vadd.f32 %v2705, %v200
    %v2910 = vadd.f32 %v2708, %v201
    %v2911 = vadd.f32 %v2744, %v202
    %v2912 = vadd.f32 %v2747, %v203
    %v2913 = vadd.f32 %v2783, %v204
    %v2914 = vadd.f32 %v2786, %v205
    %v2915 = vadd.f32 %v2822, %v206
    %v2916 = vadd.f32 %v2825, %v207
    %v2917 = vadd.f32 %v2861, %v208
    %v2918 = vadd.f32 %v2864, %v209
    %v2919 = vadd.f32 %v2900, %v210
    %v2920 = vadd.f32 %v2903, %v211
    %v2921 = vsel %vm559, %v2905, -inf
    %2922 = vmax.xlane.f32.xlu0 %v2921
    %v2923 = vpop.xlane.xlu0 %2922
    %v2924 = vsel %vm559, %v2906, -inf
    %2925 = vmax.xlane.f32.xlu0 %v2924
    %v2926 = vpop.xlane.xlu0 %2925
    %v2927 = vsel %vm559, %v2907, -inf
    %2928 = vmax.xlane.f32.xlu0 %v2927
    %v2929 = vpop.xlane.xlu0 %2928
    %v2930 = vsel %vm559, %v2908, -inf
    %2931 = vmax.xlane.f32.xlu0 %v2930
    %v2932 = vpop.xlane.xlu0 %2931
    %v2933 = vsel %vm559, %v2909, -inf
    %2934 = vmax.xlane.f32.xlu0 %v2933
    %v2935 = vpop.xlane.xlu0 %2934
    %v2936 = vsel %vm559, %v2910, -inf
    %2937 = vmax.xlane.f32.xlu0 %v2936
    %v2938 = vpop.xlane.xlu0 %2937
    %v2939 = vsel %vm559, %v2911, -inf
    %2940 = vmax.xlane.f32.xlu0 %v2939
    %v2941 = vpop.xlane.xlu0 %2940
    %v2942 = vsel %vm559, %v2912, -inf
    %2943 = vmax.xlane.f32.xlu0 %v2942
    %v2944 = vpop.xlane.xlu0 %2943
    %v2945 = vsel %vm559, %v2913, -inf
    %2946 = vmax.xlane.f32.xlu0 %v2945
    %v2947 = vpop.xlane.xlu0 %2946
    %v2948 = vsel %vm559, %v2914, -inf
    %2949 = vmax.xlane.f32.xlu0 %v2948
    %v2950 = vpop.xlane.xlu0 %2949
    %v2951 = vsel %vm559, %v2915, -inf
    %2952 = vmax.xlane.f32.xlu0 %v2951
    %v2953 = vpop.xlane.xlu0 %2952
    %v2954 = vsel %vm559, %v2916, -inf
    %2955 = vmax.xlane.f32.xlu0 %v2954
    %v2956 = vpop.xlane.xlu0 %2955
    %v2957 = vsel %vm559, %v2917, -inf
    %2958 = vmax.xlane.f32.xlu0 %v2957
    %v2959 = vpop.xlane.xlu0 %2958
    %v2960 = vsel %vm559, %v2918, -inf
    %2961 = vmax.xlane.f32.xlu0 %v2960
    %v2962 = vpop.xlane.xlu0 %2961
    %v2963 = vsel %vm559, %v2919, -inf
    %2964 = vmax.xlane.f32.xlu0 %v2963
    %v2965 = vpop.xlane.xlu0 %2964
    %v2966 = vsel %vm559, %v2920, -inf
    %2967 = vmax.xlane.f32.xlu0 %v2966
    %v2968 = vpop.xlane.xlu0 %2967
    %v2969 = vsub.f32 %v2905, %v2923
    %v2970 = vsub.f32 %v2906, %v2926
    %v2971 = vsub.f32 %v2907, %v2929
    %v2972 = vsub.f32 %v2908, %v2932
    %v2973 = vsub.f32 %v2909, %v2935
    %v2974 = vsub.f32 %v2910, %v2938
    %v2975 = vsub.f32 %v2911, %v2941
    %v2976 = vsub.f32 %v2912, %v2944
    %v2977 = vsub.f32 %v2913, %v2947
    %v2978 = vsub.f32 %v2914, %v2950
    %v2979 = vsub.f32 %v2915, %v2953
    %v2980 = vsub.f32 %v2916, %v2956
    %v2981 = vsub.f32 %v2917, %v2959
    %v2982 = vsub.f32 %v2918, %v2962
    %v2983 = vsub.f32 %v2919, %v2965
    %v2984 = vsub.f32 %v2920, %v2968
    %v2985 = vmul.f32 %v2969, 1.442695
    %v2986 = vpow.pop %v2985
    %v2987 = vmul.f32 %v2970, 1.442695
    %v2988 = vpow.pop %v2987
    %v2989 = vmul.f32 %v2971, 1.442695
    %v2990 = vpow.pop %v2989
    %v2991 = vmul.f32 %v2972, 1.442695
    %v2992 = vpow.pop %v2991
    %v2993 = vmul.f32 %v2973, 1.442695
    %v2994 = vpow.pop %v2993
    %v2995 = vmul.f32 %v2974, 1.442695
    %v2996 = vpow.pop %v2995
    %v2997 = vmul.f32 %v2975, 1.442695
    %v2998 = vpow.pop %v2997
    %v2999 = vmul.f32 %v2976, 1.442695
    %v3000 = vpow.pop %v2999
    %v3001 = vmul.f32 %v2977, 1.442695
    %v3002 = vpow.pop %v3001
    %v3003 = vmul.f32 %v2978, 1.442695
    %v3004 = vpow.pop %v3003
    %v3005 = vmul.f32 %v2979, 1.442695
    %v3006 = vpow.pop %v3005
    %v3007 = vmul.f32 %v2980, 1.442695
    %v3008 = vpow.pop %v3007
    %v3009 = vmul.f32 %v2981, 1.442695
    %v3010 = vpow.pop %v3009
    %v3011 = vmul.f32 %v2982, 1.442695
    %v3012 = vpow.pop %v3011
    %v3013 = vmul.f32 %v2983, 1.442695
    %v3014 = vpow.pop %v3013
    %v3015 = vmul.f32 %v2984, 1.442695
    %v3016 = vpow.pop %v3015
    %v3017 = vsel %vm559, %v2986, 0.0
    %3018 = vadd.xlane.f32.xlu0 %v3017
    %v3019 = vpop.xlane.xlu0 %3018
    %v3020 = vsel %vm559, %v2988, 0.0
    %3021 = vadd.xlane.f32.xlu0 %v3020
    %v3022 = vpop.xlane.xlu0 %3021
    %v3023 = vsel %vm559, %v2990, 0.0
    %3024 = vadd.xlane.f32.xlu0 %v3023
    %v3025 = vpop.xlane.xlu0 %3024
    %v3026 = vsel %vm559, %v2992, 0.0
    %3027 = vadd.xlane.f32.xlu0 %v3026
    %v3028 = vpop.xlane.xlu0 %3027
    %v3029 = vsel %vm559, %v2994, 0.0
    %3030 = vadd.xlane.f32.xlu0 %v3029
    %v3031 = vpop.xlane.xlu0 %3030
    %v3032 = vsel %vm559, %v2996, 0.0
    %3033 = vadd.xlane.f32.xlu0 %v3032
    %v3034 = vpop.xlane.xlu0 %3033
    %v3035 = vsel %vm559, %v2998, 0.0
    %3036 = vadd.xlane.f32.xlu0 %v3035
    %v3037 = vpop.xlane.xlu0 %3036
    %v3038 = vsel %vm559, %v3000, 0.0
    %3039 = vadd.xlane.f32.xlu0 %v3038
    %v3040 = vpop.xlane.xlu0 %3039
    %v3041 = vsel %vm559, %v3002, 0.0
    %3042 = vadd.xlane.f32.xlu0 %v3041
    %v3043 = vpop.xlane.xlu0 %3042
    %v3044 = vsel %vm559, %v3004, 0.0
    %3045 = vadd.xlane.f32.xlu0 %v3044
    %v3046 = vpop.xlane.xlu0 %3045
    %v3047 = vsel %vm559, %v3006, 0.0
    %3048 = vadd.xlane.f32.xlu0 %v3047
    %v3049 = vpop.xlane.xlu0 %3048
    %v3050 = vsel %vm559, %v3008, 0.0
    %3051 = vadd.xlane.f32.xlu0 %v3050
    %v3052 = vpop.xlane.xlu0 %3051
    %v3053 = vsel %vm559, %v3010, 0.0
    %3054 = vadd.xlane.f32.xlu0 %v3053
    %v3055 = vpop.xlane.xlu0 %3054
    %v3056 = vsel %vm559, %v3012, 0.0
    %3057 = vadd.xlane.f32.xlu0 %v3056
    %v3058 = vpop.xlane.xlu0 %3057
    %v3059 = vsel %vm559, %v3014, 0.0
    %3060 = vadd.xlane.f32.xlu0 %v3059
    %v3061 = vpop.xlane.xlu0 %3060
    %v3062 = vsel %vm559, %v3016, 0.0
    %3063 = vadd.xlane.f32.xlu0 %v3062
    %v3064 = vpop.xlane.xlu0 %3063
    %v3065 = vrcp.pop %v3019
    %v3066 = vrcp.pop %v3022
    %v3067 = vrcp.pop %v3025
    %v3068 = vrcp.pop %v3028
    %v3069 = vrcp.pop %v3031
    %v3070 = vrcp.pop %v3034
    %v3071 = vrcp.pop %v3037
    %v3072 = vrcp.pop %v3040
    %v3073 = vrcp.pop %v3043
    %v3074 = vrcp.pop %v3046
    %v3075 = vrcp.pop %v3049
    %v3076 = vrcp.pop %v3052
    %v3077 = vrcp.pop %v3055
    %v3078 = vrcp.pop %v3058
    %v3079 = vrcp.pop %v3061
    %v3080 = vrcp.pop %v3064
    %v3081 = vmul.f32 %v2986, %v3065
    %v3082 = vmul.f32 %v2988, %v3066
    %v3083 = vmul.f32 %v2990, %v3067
    %v3084 = vmul.f32 %v2992, %v3068
    %v3085 = vmul.f32 %v2994, %v3069
    %v3086 = vmul.f32 %v2996, %v3070
    %v3087 = vmul.f32 %v2998, %v3071
    %v3088 = vmul.f32 %v3000, %v3072
    %v3089 = vmul.f32 %v3002, %v3073
    %v3090 = vmul.f32 %v3004, %v3074
    %v3091 = vmul.f32 %v3006, %v3075
    %v3092 = vmul.f32 %v3008, %v3076
    %v3093 = vmul.f32 %v3010, %v3077
    %v3094 = vmul.f32 %v3012, %v3078
    %v3095 = vmul.f32 %v3014, %v3079
    %v3096 = vmul.f32 %v3016, %v3080
    %3097 = vrot.lane.b32.xlu0 %v149, 40
    %v3098 = vpop.permute.xlu0 %3097
    %3099 = vrot.lane.b32.xlu0 %v152, 40
    %v3100 = vpop.permute.xlu0 %3099
    %v3104 = vsel %vm559, %v3081, 0
    %v3107 = vsel %vm559, %v3082, 0
    %3109 = vmatpush.msra.mxu0 0.0
    %3110 = vmatpush.msra.mxu0 0.0
    %3111 = vmatpush.msra.mxu0 0.0
    %3112 = vmatpush.msra.mxu0 0.0
    %3113 = vmatpush.msra.mxu0 0.0
    %3114 = vmatpush.msra.mxu0 0.0
    %3115 = vmatpush.msra.mxu0 0.0
    %3116 = vmatpush.msra.mxu0 0.0
    %3117 = vmatpush.msra.mxu0 0.0
    %3118 = vmatpush.msra.mxu0 0.0
    %3119 = vmatpush.msra.mxu0 0.0
    %3120 = vmatpush.msra.mxu0 0.0
    %3121 = vmatpush.msra.mxu0 0.0
    %3122 = vmatpush.msra.mxu0 0.0
    %3123 = vmatpush.msra.mxu0 %v3100
    %3124 = vmatpush.msra.mxu0 %v3098
    %3125 = vmatmul.f32.gmra.mxu0 %v3104
    %v3126 = vpop.f32.mrf.mxu0
    %v3127 = vadd.f32 0.0, %v3126
    %3128 = vmatmul.f32.gmra.mxu0 %v3107
    %v3129 = vpop.f32.mrf.mxu0
    %v3130 = vadd.f32 0.0, %v3129
    %3131 = vdwg.mxu0
    %3132 = vrot.lane.b32.xlu0 %v155, 40
    %v3133 = vpop.permute.xlu0 %3132
    %3134 = vrot.lane.b32.xlu0 %v158, 40
    %v3135 = vpop.permute.xlu0 %3134
    %v3139 = vsel %vm559, %v3083, 0
    %v3142 = vsel %vm559, %v3084, 0
    %3144 = vmatpush.msra.mxu0 0.0
    %3145 = vmatpush.msra.mxu0 0.0
    %3146 = vmatpush.msra.mxu0 0.0
    %3147 = vmatpush.msra.mxu0 0.0
    %3148 = vmatpush.msra.mxu0 0.0
    %3149 = vmatpush.msra.mxu0 0.0
    %3150 = vmatpush.msra.mxu0 0.0
    %3151 = vmatpush.msra.mxu0 0.0
    %3152 = vmatpush.msra.mxu0 0.0
    %3153 = vmatpush.msra.mxu0 0.0
    %3154 = vmatpush.msra.mxu0 0.0
    %3155 = vmatpush.msra.mxu0 0.0
    %3156 = vmatpush.msra.mxu0 0.0
    %3157 = vmatpush.msra.mxu0 0.0
    %3158 = vmatpush.msra.mxu0 %v3135
    %3159 = vmatpush.msra.mxu0 %v3133
    %3160 = vmatmul.f32.gmra.mxu0 %v3139
    %v3161 = vpop.f32.mrf.mxu0
    %v3162 = vadd.f32 0.0, %v3161
    %3163 = vmatmul.f32.gmra.mxu0 %v3142
    %v3164 = vpop.f32.mrf.mxu0
    %v3165 = vadd.f32 0.0, %v3164
    %3166 = vdwg.mxu0
    %3167 = vrot.lane.b32.xlu0 %v161, 40
    %v3168 = vpop.permute.xlu0 %3167
    %3169 = vrot.lane.b32.xlu0 %v164, 40
    %v3170 = vpop.permute.xlu0 %3169
    %v3174 = vsel %vm559, %v3085, 0
    %v3177 = vsel %vm559, %v3086, 0
    %3179 = vmatpush.msra.mxu0 0.0
    %3180 = vmatpush.msra.mxu0 0.0
    %3181 = vmatpush.msra.mxu0 0.0
    %3182 = vmatpush.msra.mxu0 0.0
    %3183 = vmatpush.msra.mxu0 0.0
    %3184 = vmatpush.msra.mxu0 0.0
    %3185 = vmatpush.msra.mxu0 0.0
    %3186 = vmatpush.msra.mxu0 0.0
    %3187 = vmatpush.msra.mxu0 0.0
    %3188 = vmatpush.msra.mxu0 0.0
    %3189 = vmatpush.msra.mxu0 0.0
    %3190 = vmatpush.msra.mxu0 0.0
    %3191 = vmatpush.msra.mxu0 0.0
    %3192 = vmatpush.msra.mxu0 0.0
    %3193 = vmatpush.msra.mxu0 %v3170
    %3194 = vmatpush.msra.mxu0 %v3168
    %3195 = vmatmul.f32.gmra.mxu0 %v3174
    %v3196 = vpop.f32.mrf.mxu0
    %v3197 = vadd.f32 0.0, %v3196
    %3198 = vmatmul.f32.gmra.mxu0 %v3177
    %v3199 = vpop.f32.mrf.mxu0
    %v3200 = vadd.f32 0.0, %v3199
    %3201 = vdwg.mxu0
    %3202 = vrot.lane.b32.xlu0 %v167, 40
    %v3203 = vpop.permute.xlu0 %3202
    %3204 = vrot.lane.b32.xlu0 %v170, 40
    %v3205 = vpop.permute.xlu0 %3204
    %v3209 = vsel %vm559, %v3087, 0
    %v3212 = vsel %vm559, %v3088, 0
    %3214 = vmatpush.msra.mxu0 0.0
    %3215 = vmatpush.msra.mxu0 0.0
    %3216 = vmatpush.msra.mxu0 0.0
    %3217 = vmatpush.msra.mxu0 0.0
    %3218 = vmatpush.msra.mxu0 0.0
    %3219 = vmatpush.msra.mxu0 0.0
    %3220 = vmatpush.msra.mxu0 0.0
    %3221 = vmatpush.msra.mxu0 0.0
    %3222 = vmatpush.msra.mxu0 0.0
    %3223 = vmatpush.msra.mxu0 0.0
    %3224 = vmatpush.msra.mxu0 0.0
    %3225 = vmatpush.msra.mxu0 0.0
    %3226 = vmatpush.msra.mxu0 0.0
    %3227 = vmatpush.msra.mxu0 0.0
    %3228 = vmatpush.msra.mxu0 %v3205
    %3229 = vmatpush.msra.mxu0 %v3203
    %3230 = vmatmul.f32.gmra.mxu0 %v3209
    %v3231 = vpop.f32.mrf.mxu0
    %v3232 = vadd.f32 0.0, %v3231
    %3233 = vmatmul.f32.gmra.mxu0 %v3212
    %v3234 = vpop.f32.mrf.mxu0
    %v3235 = vadd.f32 0.0, %v3234
    %3236 = vdwg.mxu0
    %3237 = vrot.lane.b32.xlu0 %v173, 40
    %v3238 = vpop.permute.xlu0 %3237
    %3239 = vrot.lane.b32.xlu0 %v176, 40
    %v3240 = vpop.permute.xlu0 %3239
    %v3244 = vsel %vm559, %v3089, 0
    %v3247 = vsel %vm559, %v3090, 0
    %3249 = vmatpush.msra.mxu0 0.0
    %3250 = vmatpush.msra.mxu0 0.0
    %3251 = vmatpush.msra.mxu0 0.0
    %3252 = vmatpush.msra.mxu0 0.0
    %3253 = vmatpush.msra.mxu0 0.0
    %3254 = vmatpush.msra.mxu0 0.0
    %3255 = vmatpush.msra.mxu0 0.0
    %3256 = vmatpush.msra.mxu0 0.0
    %3257 = vmatpush.msra.mxu0 0.0
    %3258 = vmatpush.msra.mxu0 0.0
    %3259 = vmatpush.msra.mxu0 0.0
    %3260 = vmatpush.msra.mxu0 0.0
    %3261 = vmatpush.msra.mxu0 0.0
    %3262 = vmatpush.msra.mxu0 0.0
    %3263 = vmatpush.msra.mxu0 %v3240
    %3264 = vmatpush.msra.mxu0 %v3238
    %3265 = vmatmul.f32.gmra.mxu0 %v3244
    %v3266 = vpop.f32.mrf.mxu0
    %v3267 = vadd.f32 0.0, %v3266
    %3268 = vmatmul.f32.gmra.mxu0 %v3247
    %v3269 = vpop.f32.mrf.mxu0
    %v3270 = vadd.f32 0.0, %v3269
    %3271 = vdwg.mxu0
    %3272 = vrot.lane.b32.xlu0 %v179, 40
    %v3273 = vpop.permute.xlu0 %3272
    %3274 = vrot.lane.b32.xlu0 %v182, 40
    %v3275 = vpop.permute.xlu0 %3274
    %v3279 = vsel %vm559, %v3091, 0
    %v3282 = vsel %vm559, %v3092, 0
    %3284 = vmatpush.msra.mxu0 0.0
    %3285 = vmatpush.msra.mxu0 0.0
    %3286 = vmatpush.msra.mxu0 0.0
    %3287 = vmatpush.msra.mxu0 0.0
    %3288 = vmatpush.msra.mxu0 0.0
    %3289 = vmatpush.msra.mxu0 0.0
    %3290 = vmatpush.msra.mxu0 0.0
    %3291 = vmatpush.msra.mxu0 0.0
    %3292 = vmatpush.msra.mxu0 0.0
    %3293 = vmatpush.msra.mxu0 0.0
    %3294 = vmatpush.msra.mxu0 0.0
    %3295 = vmatpush.msra.mxu0 0.0
    %3296 = vmatpush.msra.mxu0 0.0
    %3297 = vmatpush.msra.mxu0 0.0
    %3298 = vmatpush.msra.mxu0 %v3275
    %3299 = vmatpush.msra.mxu0 %v3273
    %3300 = vmatmul.f32.gmra.mxu0 %v3279
    %v3301 = vpop.f32.mrf.mxu0
    %v3302 = vadd.f32 0.0, %v3301
    %3303 = vmatmul.f32.gmra.mxu0 %v3282
    %v3304 = vpop.f32.mrf.mxu0
    %v3305 = vadd.f32 0.0, %v3304
    %3306 = vdwg.mxu0
    %3307 = vrot.lane.b32.xlu0 %v185, 40
    %v3308 = vpop.permute.xlu0 %3307
    %3309 = vrot.lane.b32.xlu0 %v188, 40
    %v3310 = vpop.permute.xlu0 %3309
    %v3314 = vsel %vm559, %v3093, 0
    %v3317 = vsel %vm559, %v3094, 0
    %3319 = vmatpush.msra.mxu0 0.0
    %3320 = vmatpush.msra.mxu0 0.0
    %3321 = vmatpush.msra.mxu0 0.0
    %3322 = vmatpush.msra.mxu0 0.0
    %3323 = vmatpush.msra.mxu0 0.0
    %3324 = vmatpush.msra.mxu0 0.0
    %3325 = vmatpush.msra.mxu0 0.0
    %3326 = vmatpush.msra.mxu0 0.0
    %3327 = vmatpush.msra.mxu0 0.0
    %3328 = vmatpush.msra.mxu0 0.0
    %3329 = vmatpush.msra.mxu0 0.0
    %3330 = vmatpush.msra.mxu0 0.0
    %3331 = vmatpush.msra.mxu0 0.0
    %3332 = vmatpush.msra.mxu0 0.0
    %3333 = vmatpush.msra.mxu0 %v3310
    %3334 = vmatpush.msra.mxu0 %v3308
    %3335 = vmatmul.f32.gmra.mxu0 %v3314
    %v3336 = vpop.f32.mrf.mxu0
    %v3337 = vadd.f32 0.0, %v3336
    %3338 = vmatmul.f32.gmra.mxu0 %v3317
    %v3339 = vpop.f32.mrf.mxu0
    %v3340 = vadd.f32 0.0, %v3339
    %3341 = vdwg.mxu0
    %3342 = vrot.lane.b32.xlu0 %v191, 40
    %v3343 = vpop.permute.xlu0 %3342
    %3344 = vrot.lane.b32.xlu0 %v194, 40
    %v3345 = vpop.permute.xlu0 %3344
    %v3349 = vsel %vm559, %v3095, 0
    %v3352 = vsel %vm559, %v3096, 0
    %3354 = vmatpush.msra.mxu0 0.0
    %3355 = vmatpush.msra.mxu0 0.0
    %3356 = vmatpush.msra.mxu0 0.0
    %3357 = vmatpush.msra.mxu0 0.0
    %3358 = vmatpush.msra.mxu0 0.0
    %3359 = vmatpush.msra.mxu0 0.0
    %3360 = vmatpush.msra.mxu0 0.0
    %3361 = vmatpush.msra.mxu0 0.0
    %3362 = vmatpush.msra.mxu0 0.0
    %3363 = vmatpush.msra.mxu0 0.0
    %3364 = vmatpush.msra.mxu0 0.0
    %3365 = vmatpush.msra.mxu0 0.0
    %3366 = vmatpush.msra.mxu0 0.0
    %3367 = vmatpush.msra.mxu0 0.0
    %3368 = vmatpush.msra.mxu0 %v3345
    %3369 = vmatpush.msra.mxu0 %v3343
    %3370 = vmatmul.f32.gmra.mxu0 %v3349
    %v3371 = vpop.f32.mrf.mxu0
    %v3372 = vadd.f32 0.0, %v3371
    %3373 = vmatmul.f32.gmra.mxu0 %v3352
    %v3374 = vpop.f32.mrf.mxu0
    %v3375 = vadd.f32 0.0, %v3374
    %3376 = vdwg.mxu0
    %3393 = vrot.lane.b32.xlu0 %v1553, 8
    %v3394 = vpop.permute.xlu0 %3393
    %3395 = vrot.lane.b32.xlu0 %v1556, 8
    %v3396 = vpop.permute.xlu0 %3395
    %3397 = vrot.lane.b32.xlu0 %v1588, 8
    %v3398 = vpop.permute.xlu0 %3397
    %3399 = vrot.lane.b32.xlu0 %v1591, 8
    %v3400 = vpop.permute.xlu0 %3399
    %3401 = vrot.lane.b32.xlu0 %v1623, 8
    %v3402 = vpop.permute.xlu0 %3401
    %3403 = vrot.lane.b32.xlu0 %v1626, 8
    %v3404 = vpop.permute.xlu0 %3403
    %3405 = vrot.lane.b32.xlu0 %v1658, 8
    %v3406 = vpop.permute.xlu0 %3405
    %3407 = vrot.lane.b32.xlu0 %v1661, 8
    %v3408 = vpop.permute.xlu0 %3407
    %3409 = vrot.lane.b32.xlu0 %v1693, 8
    %v3410 = vpop.permute.xlu0 %3409
    %3411 = vrot.lane.b32.xlu0 %v1696, 8
    %v3412 = vpop.permute.xlu0 %3411
    %3413 = vrot.lane.b32.xlu0 %v1728, 8
    %v3414 = vpop.permute.xlu0 %3413
    %3415 = vrot.lane.b32.xlu0 %v1731, 8
    %v3416 = vpop.permute.xlu0 %3415
    %3417 = vrot.lane.b32.xlu0 %v1763, 8
    %v3418 = vpop.permute.xlu0 %3417
    %3419 = vrot.lane.b32.xlu0 %v1766, 8
    %v3420 = vpop.permute.xlu0 %3419
    %3421 = vrot.lane.b32.xlu0 %v1798, 8
    %v3422 = vpop.permute.xlu0 %3421
    %3423 = vrot.lane.b32.xlu0 %v1801, 8
    %v3424 = vpop.permute.xlu0 %3423
    %3457 = vrot.lane.b32.xlu0 %v2340, 16
    %v3458 = vpop.permute.xlu0 %3457
    %3459 = vrot.lane.b32.xlu0 %v2343, 16
    %v3460 = vpop.permute.xlu0 %3459
    %3461 = vrot.lane.b32.xlu0 %v2375, 16
    %v3462 = vpop.permute.xlu0 %3461
    %3463 = vrot.lane.b32.xlu0 %v2378, 16
    %v3464 = vpop.permute.xlu0 %3463
    %3465 = vrot.lane.b32.xlu0 %v2410, 16
    %v3466 = vpop.permute.xlu0 %3465
    %3467 = vrot.lane.b32.xlu0 %v2413, 16
    %v3468 = vpop.permute.xlu0 %3467
    %3469 = vrot.lane.b32.xlu0 %v2445, 16
    %v3470 = vpop.permute.xlu0 %3469
    %3471 = vrot.lane.b32.xlu0 %v2448, 16
    %v3472 = vpop.permute.xlu0 %3471
    %3473 = vrot.lane.b32.xlu0 %v2480, 16
    %v3474 = vpop.permute.xlu0 %3473
    %3475 = vrot.lane.b32.xlu0 %v2483, 16
    %v3476 = vpop.permute.xlu0 %3475
    %3477 = vrot.lane.b32.xlu0 %v2515, 16
    %v3478 = vpop.permute.xlu0 %3477
    %3479 = vrot.lane.b32.xlu0 %v2518, 16
    %v3480 = vpop.permute.xlu0 %3479
    %3481 = vrot.lane.b32.xlu0 %v2550, 16
    %v3482 = vpop.permute.xlu0 %3481
    %3483 = vrot.lane.b32.xlu0 %v2553, 16
    %v3484 = vpop.permute.xlu0 %3483
    %3485 = vrot.lane.b32.xlu0 %v2585, 16
    %v3486 = vpop.permute.xlu0 %3485
    %3487 = vrot.lane.b32.xlu0 %v2588, 16
    %v3488 = vpop.permute.xlu0 %3487
    %3521 = vrot.lane.b32.xlu0 %v3127, 24
    %v3522 = vpop.permute.xlu0 %3521
    %3523 = vrot.lane.b32.xlu0 %v3130, 24
    %v3524 = vpop.permute.xlu0 %3523
    %3525 = vrot.lane.b32.xlu0 %v3162, 24
    %v3526 = vpop.permute.xlu0 %3525
    %3527 = vrot.lane.b32.xlu0 %v3165, 24
    %v3528 = vpop.permute.xlu0 %3527
    %3529 = vrot.lane.b32.xlu0 %v3197, 24
    %v3530 = vpop.permute.xlu0 %3529
    %3531 = vrot.lane.b32.xlu0 %v3200, 24
    %v3532 = vpop.permute.xlu0 %3531
    %3533 = vrot.lane.b32.xlu0 %v3232, 24
    %v3534 = vpop.permute.xlu0 %3533
    %3535 = vrot.lane.b32.xlu0 %v3235, 24
    %v3536 = vpop.permute.xlu0 %3535
    %3537 = vrot.lane.b32.xlu0 %v3267, 24
    %v3538 = vpop.permute.xlu0 %3537
    %3539 = vrot.lane.b32.xlu0 %v3270, 24
    %v3540 = vpop.permute.xlu0 %3539
    %3541 = vrot.lane.b32.xlu0 %v3302, 24
    %v3542 = vpop.permute.xlu0 %3541
    %3543 = vrot.lane.b32.xlu0 %v3305, 24
    %v3544 = vpop.permute.xlu0 %3543
    %3545 = vrot.lane.b32.xlu0 %v3337, 24
    %v3546 = vpop.permute.xlu0 %3545
    %3547 = vrot.lane.b32.xlu0 %v3340, 24
    %v3548 = vpop.permute.xlu0 %3547
    %3549 = vrot.lane.b32.xlu0 %v3372, 24
    %v3550 = vpop.permute.xlu0 %3549
    %3551 = vrot.lane.b32.xlu0 %v3375, 24
    %v3552 = vpop.permute.xlu0 %3551
    %v3569 = vsel %vm236, %v766, %v3394
    %v3570 = vsel %vm236, %v769, %v3396
    %v3571 = vsel %vm236, %v801, %v3398
    %v3572 = vsel %vm236, %v804, %v3400
    %v3573 = vsel %vm236, %v836, %v3402
    %v3574 = vsel %vm236, %v839, %v3404
    %v3575 = vsel %vm236, %v871, %v3406
    %v3576 = vsel %vm236, %v874, %v3408
    %v3577 = vsel %vm236, %v906, %v3410
    %v3578 = vsel %vm236, %v909, %v3412
    %v3579 = vsel %vm236, %v941, %v3414
    %v3580 = vsel %vm236, %v944, %v3416
    %v3581 = vsel %vm236, %v976, %v3418
    %v3582 = vsel %vm236, %v979, %v3420
    %v3583 = vsel %vm236, %v1011, %v3422
    %v3584 = vsel %vm236, %v1014, %v3424
    %v3585 = vsel %vm559, %v3569, %v3458
    %v3586 = vsel %vm559, %v3570, %v3460
    %v3587 = vsel %vm559, %v3571, %v3462
    %v3588 = vsel %vm559, %v3572, %v3464
    %v3589 = vsel %vm559, %v3573, %v3466
    %v3590 = vsel %vm559, %v3574, %v3468
    %v3591 = vsel %vm559, %v3575, %v3470
    %v3592 = vsel %vm559, %v3576, %v3472
    %v3593 = vsel %vm559, %v3577, %v3474
    %v3594 = vsel %vm559, %v3578, %v3476
    %v3595 = vsel %vm559, %v3579, %v3478
    %v3596 = vsel %vm559, %v3580, %v3480
    %v3597 = vsel %vm559, %v3581, %v3482
    %v3598 = vsel %vm559, %v3582, %v3484
    %v3599 = vsel %vm559, %v3583, %v3486
    %v3600 = vsel %vm559, %v3584, %v3488
    %vm3601 = vcmask 195584
    %v3602 = vsel %vm3601, %v3585, %v3522
    %v3603 = vsel %vm3601, %v3586, %v3524
    %v3604 = vsel %vm3601, %v3587, %v3526
    %v3605 = vsel %vm3601, %v3588, %v3528
    %v3606 = vsel %vm3601, %v3589, %v3530
    %v3607 = vsel %vm3601, %v3590, %v3532
    %v3608 = vsel %vm3601, %v3591, %v3534
    %v3609 = vsel %vm3601, %v3592, %v3536
    %v3610 = vsel %vm3601, %v3593, %v3538
    %v3611 = vsel %vm3601, %v3594, %v3540
    %v3612 = vsel %vm3601, %v3595, %v3542
    %v3613 = vsel %vm3601, %v3596, %v3544
    %v3614 = vsel %vm3601, %v3597, %v3546
    %v3615 = vsel %vm3601, %v3598, %v3548
    %v3616 = vsel %vm3601, %v3599, %v3550
    %v3617 = vsel %vm3601, %v3600, %v3552
    %v3618 = vld [vmem:[#allocation4] sm:$0xff]
    %v3619 = vld [vmem:[#allocation4 + $0x8] sm:$0xff]
    %v3620 = vld [vmem:[#allocation4 + $0x10] sm:$0xff]
    %v3621 = vld [vmem:[#allocation4 + $0x18] sm:$0xff]
    %v3622 = vld [vmem:[%s6] sm:$0x1]
    %v3624 = vperm.slane %v3622, 0
    %v3627 = vsel %vm82, %v3602, 0
    %v3630 = vsel %vm82, %v3603, 0
    %v3633 = vsel %vm82, %v3604, 0
    %v3636 = vsel %vm82, %v3605, 0
    %v3639 = vsel %vm82, %v3606, 0
    %v3642 = vsel %vm82, %v3607, 0
    %v3645 = vsel %vm82, %v3608, 0
    %v3648 = vsel %vm82, %v3609, 0
    %v3651 = vsel %vm82, %v3610, 0
    %v3654 = vsel %vm82, %v3611, 0
    %v3657 = vsel %vm82, %v3612, 0
    %v3660 = vsel %vm82, %v3613, 0
    %v3663 = vsel %vm82, %v3614, 0
    %v3666 = vsel %vm82, %v3615, 0
    %v3669 = vsel %vm82, %v3616, 0
    %v3672 = vsel %vm82, %v3617, 0
    %3674 = vmatpush.msra.mxu0 0.0
    %3675 = vmatpush.msra.mxu0 0.0
    %3676 = vmatpush.msra.mxu0 0.0
    %3677 = vmatpush.msra.mxu0 0.0
    %3678 = vmatpush.msra.mxu0 0.0
    %3679 = vmatpush.msra.mxu0 0.0
    %3680 = vmatpush.msra.mxu0 0.0
    %3681 = vmatpush.msra.mxu0 0.0
    %3682 = vmatpush.msra.mxu0 0.0
    %3683 = vmatpush.msra.mxu0 0.0
    %3684 = vmatpush.msra.mxu0 0.0
    %3685 = vmatpush.msra.mxu0 0.0
    %3686 = vmatpush.msra.mxu0 %v3621
    %3687 = vmatpush.msra.mxu0 %v3620
    %3688 = vmatpush.msra.mxu0 %v3619
    %3689 = vmatpush.msra.mxu0 %v3618
    %3690 = vmatmul.f32.gmra.mxu0 %v3627
    %v3691 = vpop.f32.mrf.mxu0
    %v3692 = vadd.f32 %v3624, %v3691
    %3693 = vmatmul.f32.gmra.mxu0 %v3630
    %v3694 = vpop.f32.mrf.mxu0
    %v3695 = vadd.f32 %v3624, %v3694
    %3696 = vmatmul.f32.gmra.mxu0 %v3633
    %v3697 = vpop.f32.mrf.mxu0
    %v3698 = vadd.f32 %v3624, %v3697
    %3699 = vmatmul.f32.gmra.mxu0 %v3636
    %v3700 = vpop.f32.mrf.mxu0
    %v3701 = vadd.f32 %v3624, %v3700
    %3702 = vmatmul.f32.gmra.mxu0 %v3639
    %v3703 = vpop.f32.mrf.mxu0
    %v3704 = vadd.f32 %v3624, %v3703
    %3705 = vmatmul.f32.gmra.mxu0 %v3642
    %v3706 = vpop.f32.mrf.mxu0
    %v3707 = vadd.f32 %v3624, %v3706
    %3708 = vmatmul.f32.gmra.mxu0 %v3645
    %v3709 = vpop.f32.mrf.mxu0
    %v3710 = vadd.f32 %v3624, %v3709
    %3711 = vmatmul.f32.gmra.mxu0 %v3648
    %v3712 = vpop.f32.mrf.mxu0
    %v3713 = vadd.f32 %v3624, %v3712
    %3714 = vmatmul.f32.gmra.mxu0 %v3651
    %v3715 = vpop.f32.mrf.mxu0
    %v3716 = vadd.f32 %v3624, %v3715
    %3717 = vmatmul.f32.gmra.mxu0 %v3654
    %v3718 = vpop.f32.mrf.mxu0
    %v3719 = vadd.f32 %v3624, %v3718
    %3720 = vmatmul.f32.gmra.mxu0 %v3657
    %v3721 = vpop.f32.mrf.mxu0
    %v3722 = vadd.f32 %v3624, %v3721
    %3723 = vmatmul.f32.gmra.mxu0 %v3660
    %v3724 = vpop.f32.mrf.mxu0
    %v3725 = vadd.f32 %v3624, %v3724
    %3726 = vmatmul.f32.gmra.mxu0 %v3663
    %v3727 = vpop.f32.mrf.mxu0
    %v3728 = vadd.f32 %v3624, %v3727
    %3729 = vmatmul.f32.gmra.mxu0 %v3666
    %v3730 = vpop.f32.mrf.mxu0
    %v3731 = vadd.f32 %v3624, %v3730
    %3732 = vmatmul.f32.gmra.mxu0 %v3669
    %v3733 = vpop.f32.mrf.mxu0
    %v3734 = vadd.f32 %v3624, %v3733
    %3735 = vmatmul.f32.gmra.mxu0 %v3672
    %v3736 = vpop.f32.mrf.mxu0
    %v3737 = vadd.f32 %v3624, %v3736
    %3738 = vdwg.mxu0
    %3739 = vst.msk [vmem:[%s7] sm:$0xff] %vm82, %v3692
    %3740 = vst.msk [vmem:[%s7 + $0x8] sm:$0xff] %vm82, %v3695
    %3741 = vst.msk [vmem:[%s7 + $0x10] sm:$0xff] %vm82, %v3698
    %3742 = vst.msk [vmem:[%s7 + $0x18] sm:$0xff] %vm82, %v3701
    %3743 = vst.msk [vmem:[%s7 + $0x20] sm:$0xff] %vm82, %v3704
    %3744 = vst.msk [vmem:[%s7 + $0x28] sm:$0xff] %vm82, %v3707
    %3745 = vst.msk [vmem:[%s7 + $0x30] sm:$0xff] %vm82, %v3710
    %3746 = vst.msk [vmem:[%s7 + $0x38] sm:$0xff] %vm82, %v3713
    %3747 = vst.msk [vmem:[%s7 + $0x40] sm:$0xff] %vm82, %v3716
    %3748 = vst.msk [vmem:[%s7 + $0x48] sm:$0xff] %vm82, %v3719
    %3749 = vst.msk [vmem:[%s7 + $0x50] sm:$0xff] %vm82, %v3722
    %3750 = vst.msk [vmem:[%s7 + $0x58] sm:$0xff] %vm82, %v3725
    %3751 = vst.msk [vmem:[%s7 + $0x60] sm:$0xff] %vm82, %v3728
    %3752 = vst.msk [vmem:[%s7 + $0x68] sm:$0xff] %vm82, %v3731
    %3753 = vst.msk [vmem:[%s7 + $0x70] sm:$0xff] %vm82, %v3734
    %3754 = vst.msk [vmem:[%s7 + $0x78] sm:$0xff] %vm82, %v3737
    // Predicated region
    $region38: #{tpu_custom_call.1} parent=1 // pred_check
      _
    $region39: #{tpu_custom_call.1} parent=1 // pred_check_branch
      %3756 = sbr.rel (0) target = $region41
    $region40: #{tpu_custom_call.1} parent=1 // pred_region
      _
    $region41: #{tpu_custom_call.1} parent=1 // pred_fallthru
      _
    // Predicated region
    $region42: #{tpu_custom_call.1} parent=1 // pred_check
      _
    $region43: #{tpu_custom_call.1} parent=1 // pred_check_branch
      %3758 = sbr.rel (0) target = $region45
    $region44: #{tpu_custom_call.1} parent=1 // pred_region
      _
    $region45: #{tpu_custom_call.1} parent=1 // pred_fallthru
      _
    %3759 = vsyncpa [#allocation3], 1
    %3760 = vsyncpa [#allocation5], 1

</llo_original>
